<compile_context>
chip_gen: v7x
topology: tpu7x:2x2x1
jax: 0.10.0
libtpu: 0.0.40
codegen_flags: <defaults>
</compile_context>

<pallas_src>
import math

import jax
import jax.numpy as jnp
from jax.experimental import pallas as pl
from jax.experimental.pallas import tpu as pltpu

MM_DTYPE = jnp.bfloat16      # MXU operand dtype (accumulation is always f32)
LN_EPS = 1e-5
NEG_INF = -1e30              # finite "minus infinity" for masking


# ----------------------------------------------------------------------------
# Fused encoder kernel: grid = (batch, num_layers).  One sequence per batch
# step; the (L, D) activation is carried across the layer axis in VMEM scratch.
# ----------------------------------------------------------------------------
def _encoder_kernel(x_ref, mask_ref, s_ref, c_ref,
                    sel_s_ref, sel_c_ref,
                    wq_s_ref, wq_c_ref, wv_ref,
                    rr_s_ref, rr_c_ref, rw_s_ref, rw_c_ref,
                    g1_ref, be1_ref, w1_ref, b1_ref, w2_ref, b2_ref,
                    g2_ref, be2_ref, wo_ref, bo_ref,
                    out_ref, xs_ref):
    l = pl.program_id(1)
    n_layers = pl.num_programs(1)
    f32 = jnp.float32

    # Layer 0: pull this sequence into the VMEM-resident activation scratch.
    @pl.when(l == 0)
    def _():
        xs_ref[...] = x_ref[0]

    x = xs_ref[...]                        # (L, D) float32
    L, D = x.shape
    H = wq_s_ref.shape[1]
    half = wq_s_ref.shape[3]

    keep = mask_ref[0]                     # (1, L)  1.0 = real token
    S = s_ref[...]                         # (L, half)  sin(pos * freq)
    C = c_ref[...]                         # (L, half)  cos(pos * freq)

    # ---------------- relative multi-head attention (heads batched) ---------
    xb = x.astype(MM_DTYPE)
    x_h = jnp.broadcast_to(xb, (H, L, D))  # (H, L, D)

    # Per-head projections (single batched dot per tensor, no lane slicing):
    #   q split into sin/cos halves via pre-split weights,
    #   k = x extracted per head via identity selectors,
    #   v projected into disjoint per-head column blocks ("scattered" layout).
    q_s = jnp.einsum('hld,hdi->hli', x_h, wq_s_ref[0], preferred_element_type=f32)
    q_c = jnp.einsum('hld,hdi->hli', x_h, wq_c_ref[0], preferred_element_type=f32)
    k_s = jnp.einsum('hld,hdi->hli', x_h, sel_s_ref[...], preferred_element_type=f32)
    k_c = jnp.einsum('hld,hdi->hli', x_h, sel_c_ref[...], preferred_element_type=f32)
    v_f = jnp.einsum('hld,hde->hle', x_h, wv_ref[0], preferred_element_type=f32)

    rr_s, rr_c = rr_s_ref[0], rr_c_ref[0]  # (H, 1, half)
    rw_s, rw_c = rw_s_ref[0], rw_c_ref[0]

    S_h = jnp.broadcast_to(S, (H, L, half))
    C_h = jnp.broadcast_to(C, (H, L, half))

    def mm(a, b):  # batched (per-head) MXU matmul, bf16 operands, f32 accum
        return jnp.einsum('hqi,hki->hqk', a.astype(MM_DTYPE), b.astype(MM_DTYPE),
                          preferred_element_type=f32)

    # AC[q,k] = (q + r_r_bias) . k
    ac = mm(q_s + rr_s, k_s) + mm(q_c + rr_c, k_c)
    # BD[q,k] = (q + r_w_bias) . pos_embed(k - q)   (the "_shift" term)
    a_s = q_s + rw_s
    a_c = q_c + rw_c
    bd = mm(a_s * C + a_c * S, S_h) + mm(a_c * C - a_s * S, C_h)
    # E[q,k]  = k . pos_embed(q - k)                (the "_transpose_shift" term)
    e = mm(S_h, k_s * C + k_c * S) + mm(C_h, k_c * C - k_s * S)

    logits = ac + bd + e                                   # scale == 1
    logits = jnp.where(keep > 0.5, logits, NEG_INF)        # mask over keys
    m = jnp.max(logits, axis=-1, keepdims=True)
    p = jnp.exp(logits - m)
    denom = jnp.sum(p, axis=-1, keepdims=True)
    p = p * pl.reciprocal(denom, approx=True)              # softmax (EUP recip)

    attn = jnp.einsum('hqk,hkd->hqd', p.astype(MM_DTYPE), v_f.astype(MM_DTYPE),
                      preferred_element_type=f32)          # (H, L, D)

    # Heads already live in disjoint column blocks -> merge is a plain vreg
    # add-reduce over the leading head axis (no concat, no matmuls in the loop).
    attn_out = attn[0]
    for h in range(1, H):
        attn_out = attn_out + attn[h]

    # ---------------- residual + LayerNorm 1 --------------------------------
    y = x + attn_out
    mu = jnp.mean(y, axis=-1, keepdims=True)
    yc = y - mu
    var = jnp.mean(yc * yc, axis=-1, keepdims=True)
    y = yc * jax.lax.rsqrt(var + LN_EPS) * g1_ref[0] + be1_ref[0]

    # ---------------- feedforward: Linear -> ReLU -> Linear -----------------
    h1 = jnp.dot(y.astype(MM_DTYPE), w1_ref[0], preferred_element_type=f32) + b1_ref[0]
    h1 = jnp.maximum(h1, 0.0)
    h2 = jnp.dot(h1.astype(MM_DTYPE), w2_ref[0], preferred_element_type=f32) + b2_ref[0]

    # ---------------- residual + LayerNorm 2 --------------------------------
    z = y + h2
    mu2 = jnp.mean(z, axis=-1, keepdims=True)
    zc = z - mu2
    var2 = jnp.mean(zc * zc, axis=-1, keepdims=True)
    z = zc * jax.lax.rsqrt(var2 + LN_EPS) * g2_ref[0] + be2_ref[0]

    xs_ref[...] = z                                        # carry to next layer

    # ---------------- final projection head (last layer only) ---------------
    @pl.when(l == n_layers - 1)
    def _():
        out_ref[0] = (jnp.dot(z.astype(MM_DTYPE), wo_ref[...],
                              preferred_element_type=f32) + bo_ref[...])


# ----------------------------------------------------------------------------
# Host-side preparation: sinusoid tables, parameter init, weight pre-splitting.
# ----------------------------------------------------------------------------
def _sinusoid_tables(L, head_dim):
    # fairseq/TENER-style RelativeSinusoidalPositionalEmbedding frequencies:
    # exp(-log(10000) * i / (half_dim - 1)), first half sin / second half cos.
    half = head_dim // 2
    denom = max(half - 1, 1)
    freq = jnp.exp(jnp.arange(half, dtype=jnp.float32)
                   * -(math.log(10000.0) / denom))
    pos = jnp.arange(L, dtype=jnp.float32)
    ang = pos[:, None] * freq[None, :]
    return jnp.sin(ang), jnp.cos(ang)          # each (L, half)


def init_params(key, num_layers, D, n_head, ffn_dim, output_dim):
    hd = D // n_head

    def xavier(k, shape):
        std = math.sqrt(2.0 / (shape[0] + shape[-1]))
        return (std * jax.random.normal(k, shape)).astype(jnp.float32)

    layers = []
    for i in range(num_layers):
        ks = jax.random.split(jax.random.fold_in(key, i), 5)
        layers.append(dict(
            wqv=xavier(ks[0], (D, 2 * D)),             # qv_linear (bias=False)
            rr=xavier(ks[1], (n_head, hd)),            # r_r_bias
            rw=xavier(ks[2], (n_head, hd)),            # r_w_bias
            g1=jnp.ones((D,), jnp.float32), be1=jnp.zeros((D,), jnp.float32),
            w1=xavier(ks[3], (D, ffn_dim)), b1=jnp.zeros((ffn_dim,), jnp.float32),
            w2=xavier(ks[4], (ffn_dim, D)), b2=jnp.zeros((D,), jnp.float32),
            g2=jnp.ones((D,), jnp.float32), be2=jnp.zeros((D,), jnp.float32),
        ))
    w_out = xavier(jax.random.fold_in(key, 10_000), (D, output_dim))
    b_out = jnp.zeros((output_dim,), jnp.float32)
    return layers, w_out, b_out


def prepare_weights(layers, w_out, b_out, n_head):
    """Stack per-layer params and pre-split them per head for the fused kernel."""
    D = layers[0]['wqv'].shape[0]
    H = n_head
    hd = D // H
    half = hd // 2

    # identity selectors that extract head h's (sin / cos) columns of x (k = x)
    eye = jnp.eye(D, dtype=jnp.float32).reshape(D, H, hd).transpose(1, 0, 2)
    sel_s = eye[:, :, :half].astype(MM_DTYPE)          # (H, D, half)
    sel_c = eye[:, :, half:].astype(MM_DTYPE)
    # scatter mask: head h keeps only its own output columns of v
    col_head = jnp.arange(D) // hd
    scatter = (col_head[None, :] == jnp.arange(H)[:, None]).astype(jnp.float32)

    def per_layer(p):
        wq = p['wqv'][:, :D]
        wv = p['wqv'][:, D:]
        wq_h = wq.reshape(D, H, hd).transpose(1, 0, 2)          # (H, D, hd)
        wv_sc = wv[None, :, :] * scatter[:, None, :]            # (H, D, D)
        return dict(
            wq_s=wq_h[:, :, :half].astype(MM_DTYPE),
            wq_c=wq_h[:, :, half:].astype(MM_DTYPE),
            wv_sc=wv_sc.astype(MM_DTYPE),
            rr_s=p['rr'][:, None, :half], rr_c=p['rr'][:, None, half:],
            rw_s=p['rw'][:, None, :half], rw_c=p['rw'][:, None, half:],
            g1=p['g1'][None, :], be1=p['be1'][None, :],
            w1=p['w1'].astype(MM_DTYPE), b1=p['b1'][None, :],
            w2=p['w2'].astype(MM_DTYPE), b2=p['b2'][None, :],
            g2=p['g2'][None, :], be2=p['be2'][None, :],
        )

    per = [per_layer(p) for p in layers]
    stacked = {k: jnp.stack([d[k] for d in per], axis=0) for k in per[0]}
    stacked['sel_s'] = sel_s
    stacked['sel_c'] = sel_c
    stacked['w_out'] = w_out.astype(MM_DTYPE)
    stacked['b_out'] = b_out[None, :]
    return stacked


# ----------------------------------------------------------------------------
# Wrapper: single fused pallas_call for the whole encoder.
# ----------------------------------------------------------------------------
def transformer_encoder(x, mask, w, n_head):
    B, L, D = x.shape
    hd = D // n_head
    assert hd % 2 == 0 and hd >= 4
    NL = w['wq_s'].shape[0]
    O = w['w_out'].shape[-1]

    S, C = _sinusoid_tables(L, hd)
    maskf = mask.astype(jnp.float32).reshape(B, 1, L)

    def batch_spec(shape):      # per-sequence block, indexed by grid axis b
        return pl.BlockSpec((1,) + shape[1:],
                            lambda b, l: (b,) + (0,) * (len(shape) - 1))

    def layer_spec(shape):      # per-layer stacked weights, indexed by axis l
        return pl.BlockSpec((1,) + shape[1:],
                            lambda b, l: (l,) + (0,) * (len(shape) - 1))

    def const_spec(shape):      # shared tables / final head weights
        return pl.BlockSpec(shape, lambda b, l: (0,) * len(shape))

    args = (x, maskf, S, C,
            w['sel_s'], w['sel_c'],
            w['wq_s'], w['wq_c'], w['wv_sc'],
            w['rr_s'], w['rr_c'], w['rw_s'], w['rw_c'],
            w['g1'], w['be1'], w['w1'], w['b1'], w['w2'], w['b2'],
            w['g2'], w['be2'], w['w_out'], w['b_out'])

    in_specs = [batch_spec(x.shape), batch_spec(maskf.shape),
                const_spec(S.shape), const_spec(C.shape),
                const_spec(w['sel_s'].shape), const_spec(w['sel_c'].shape)]
    in_specs += [layer_spec(w[k].shape) for k in
                 ('wq_s', 'wq_c', 'wv_sc', 'rr_s', 'rr_c', 'rw_s', 'rw_c',
                  'g1', 'be1', 'w1', 'b1', 'w2', 'b2', 'g2', 'be2')]
    in_specs += [const_spec(w['w_out'].shape), const_spec(w['b_out'].shape)]

    return pl.pallas_call(
        _encoder_kernel,
        out_shape=jax.ShapeDtypeStruct((B, L, O), jnp.float32),
        grid=(B, NL),
        in_specs=in_specs,
        out_specs=pl.BlockSpec((1, L, O), lambda b, l: (b, 0, 0)),
        scratch_shapes=[pltpu.VMEM((L, D), jnp.float32)],
        compiler_params=pltpu.CompilerParams(
            dimension_semantics=("parallel", "arbitrary"),
            vmem_limit_bytes=32 * 1024 * 1024),
    )(*args)


if __name__ == "__main__":
    key = jax.random.PRNGKey(0)
    B, L = 2, 8
    num_layers, embed_dim, n_head, ffn_dim, output_dim = 2, 32, 4, 64, 10

    kx, kp = jax.random.split(key)
    x = jax.random.normal(kx, (B, L, embed_dim), dtype=jnp.float32)
    mask = jnp.array([[True] * L,
                      [True] * (L - 2) + [False] * 2])     # (B, L) bool

    layers, w_out, b_out = init_params(kp, num_layers, embed_dim, n_head,
                                       ffn_dim, output_dim)
    weights = prepare_weights(layers, w_out, b_out, n_head)

    out = transformer_encoder(x, mask, weights, n_head)
    out = jax.block_until_ready(out)

    assert out.shape == (B, L, output_dim)
    assert bool(jnp.all(jnp.isfinite(out)))
    print("KERNEL_OK")
</pallas_src>

<mosaic_0001>
module attributes {stable_mosaic.version = 11 : i64} {
  func.func @_encoder_kernel(%arg0: i32, %arg1: i32, %arg2: memref<1x8x32xf32, #tpu.memory_space<vmem>>, %arg3: memref<1x1x8xf32, #tpu.memory_space<vmem>>, %arg4: memref<8x4xf32, #tpu.memory_space<vmem>>, %arg5: memref<8x4xf32, #tpu.memory_space<vmem>>, %arg6: memref<4x32x4xbf16, #tpu.memory_space<vmem>>, %arg7: memref<4x32x4xbf16, #tpu.memory_space<vmem>>, %arg8: memref<1x4x32x4xbf16, #tpu.memory_space<vmem>>, %arg9: memref<1x4x32x4xbf16, #tpu.memory_space<vmem>>, %arg10: memref<1x4x32x32xbf16, #tpu.memory_space<vmem>>, %arg11: memref<1x4x1x4xf32, #tpu.memory_space<vmem>>, %arg12: memref<1x4x1x4xf32, #tpu.memory_space<vmem>>, %arg13: memref<1x4x1x4xf32, #tpu.memory_space<vmem>>, %arg14: memref<1x4x1x4xf32, #tpu.memory_space<vmem>>, %arg15: memref<1x1x32xf32, #tpu.memory_space<vmem>>, %arg16: memref<1x1x32xf32, #tpu.memory_space<vmem>>, %arg17: memref<1x32x64xbf16, #tpu.memory_space<vmem>>, %arg18: memref<1x1x64xf32, #tpu.memory_space<vmem>>, %arg19: memref<1x64x32xbf16, #tpu.memory_space<vmem>>, %arg20: memref<1x1x32xf32, #tpu.memory_space<vmem>>, %arg21: memref<1x1x32xf32, #tpu.memory_space<vmem>>, %arg22: memref<1x1x32xf32, #tpu.memory_space<vmem>>, %arg23: memref<32x10xbf16, #tpu.memory_space<vmem>>, %arg24: memref<1x10xf32, #tpu.memory_space<vmem>>, %arg25: memref<1x8x10xf32, #tpu.memory_space<vmem>>, %arg26: memref<8x32xf32, #tpu.memory_space<vmem>>) attributes {dimension_semantics = [#tpu.dimension_semantics<parallel>, #tpu.dimension_semantics<arbitrary>], iteration_bounds = array<i64: 2, 2>, scalar_prefetch = 0 : i64, scratch_operands = 1 : i64, tpu.core_type = #tpu.core_type<tc>, window_params = [{transform_indices = @transform_0, window_bounds = array<i64: 1, 8, 32>}, {transform_indices = @transform_1, window_bounds = array<i64: 1, 1, 8>}, {pipeline_mode = #tpu.pipeline_mode<synchronous>, transform_indices = @transform_2, window_bounds = array<i64: 8, 4>}, {pipeline_mode = #tpu.pipeline_mode<synchronous>, transform_indices = @transform_3, window_bounds = array<i64: 8, 4>}, {pipeline_mode = #tpu.pipeline_mode<synchronous>, transform_indices = @transform_4, window_bounds = array<i64: 4, 32, 4>}, {pipeline_mode = #tpu.pipeline_mode<synchronous>, transform_indices = @transform_5, window_bounds = array<i64: 4, 32, 4>}, {transform_indices = @transform_6, window_bounds = array<i64: 1, 4, 32, 4>}, {transform_indices = @transform_7, window_bounds = array<i64: 1, 4, 32, 4>}, {transform_indices = @transform_8, window_bounds = array<i64: 1, 4, 32, 32>}, {transform_indices = @transform_9, window_bounds = array<i64: 1, 4, 1, 4>}, {transform_indices = @transform_10, window_bounds = array<i64: 1, 4, 1, 4>}, {transform_indices = @transform_11, window_bounds = array<i64: 1, 4, 1, 4>}, {transform_indices = @transform_12, window_bounds = array<i64: 1, 4, 1, 4>}, {transform_indices = @transform_13, window_bounds = array<i64: 1, 1, 32>}, {transform_indices = @transform_14, window_bounds = array<i64: 1, 1, 32>}, {transform_indices = @transform_15, window_bounds = array<i64: 1, 32, 64>}, {transform_indices = @transform_16, window_bounds = array<i64: 1, 1, 64>}, {transform_indices = @transform_17, window_bounds = array<i64: 1, 64, 32>}, {transform_indices = @transform_18, window_bounds = array<i64: 1, 1, 32>}, {transform_indices = @transform_19, window_bounds = array<i64: 1, 1, 32>}, {transform_indices = @transform_20, window_bounds = array<i64: 1, 1, 32>}, {pipeline_mode = #tpu.pipeline_mode<synchronous>, transform_indices = @transform_21, window_bounds = array<i64: 32, 10>}, {pipeline_mode = #tpu.pipeline_mode<synchronous>, transform_indices = @transform_22, window_bounds = array<i64: 1, 10>}, {transform_indices = @transform_23, window_bounds = array<i64: 1, 8, 10>}]} {
    %c0_i32 = arith.constant 0 : i32
    %0 = arith.cmpi eq, %arg1, %c0_i32 : i32
    %1 = arith.extui %0 : i1 to i32
    %c0_i32_0 = arith.constant 0 : i32
    %2 = arith.cmpi ne, %1, %c0_i32_0 : i32
    scf.if %2 {
      %c0_98 = arith.constant 0 : index
      %c0_99 = arith.constant 0 : index
      %c0_100 = arith.constant 0 : index
      %197 = vector.load %arg2[%c0_98, %c0_99, %c0_100] : memref<1x8x32xf32, #tpu.memory_space<vmem>>, vector<1x8x32xf32>
      %198 = vector.shape_cast %197 : vector<1x8x32xf32> to vector<8x32xf32>
      %c0_101 = arith.constant 0 : index
      %c0_102 = arith.constant 0 : index
      %199 = vector.load %arg26[%c0_101, %c0_102] : memref<8x32xf32, #tpu.memory_space<vmem>>, vector<8x32xf32>
      tpu.vector_store %arg26[%c0_101, %c0_102], %198 {strides = array<i32>} : memref<8x32xf32, #tpu.memory_space<vmem>>, vector<8x32xf32>,
    } else {
    }
    %c0 = arith.constant 0 : index
    %c0_1 = arith.constant 0 : index
    %3 = vector.load %arg26[%c0, %c0_1] : memref<8x32xf32, #tpu.memory_space<vmem>>, vector<8x32xf32>
    %c0_2 = arith.constant 0 : index
    %c0_3 = arith.constant 0 : index
    %c0_4 = arith.constant 0 : index
    %4 = vector.load %arg3[%c0_2, %c0_3, %c0_4] : memref<1x1x8xf32, #tpu.memory_space<vmem>>, vector<1x1x8xf32>
    %5 = vector.shape_cast %4 : vector<1x1x8xf32> to vector<1x8xf32>
    %c0_5 = arith.constant 0 : index
    %c0_6 = arith.constant 0 : index
    %6 = vector.load %arg4[%c0_5, %c0_6] : memref<8x4xf32, #tpu.memory_space<vmem>>, vector<8x4xf32>
    %c0_7 = arith.constant 0 : index
    %c0_8 = arith.constant 0 : index
    %7 = vector.load %arg5[%c0_7, %c0_8] : memref<8x4xf32, #tpu.memory_space<vmem>>, vector<8x4xf32>
    %8 = arith.truncf %3 : vector<8x32xf32> to vector<8x32xbf16>
    %9 = vector.shape_cast %8 : vector<8x32xbf16> to vector<1x8x32xbf16>
    %10 = vector.broadcast %9 : vector<1x8x32xbf16> to vector<4x8x32xbf16>
    %c0_9 = arith.constant 0 : index
    %c0_10 = arith.constant 0 : index
    %c0_11 = arith.constant 0 : index
    %c0_12 = arith.constant 0 : index
    %11 = vector.load %arg8[%c0_9, %c0_10, %c0_11, %c0_12] : memref<1x4x32x4xbf16, #tpu.memory_space<vmem>>, vector<1x4x32x4xbf16>
    %12 = vector.shape_cast %11 : vector<1x4x32x4xbf16> to vector<4x32x4xbf16>
    "tpu.trace_start"() <{level = 10 : i32, message = "hld,hdi->hli"}> : () -> ()
    %cst = arith.constant dense<0.000000e+00> : vector<4x8x4xf32>
    %13 = tpu.matmul %10, %12, %cst {dimension_numbers = #tpu.dot_dimension_numbers<[2], [1], [1], [2], [0, 0, 0, 1, 1, 2], [0], [0]>} : vector<4x8x32xbf16>, vector<4x32x4xbf16>, vector<4x8x4xf32> -> vector<4x8x4xf32>
    "tpu.trace_stop"() : () -> ()
    %c0_13 = arith.constant 0 : index
    %c0_14 = arith.constant 0 : index
    %c0_15 = arith.constant 0 : index
    %c0_16 = arith.constant 0 : index
    %14 = vector.load %arg9[%c0_13, %c0_14, %c0_15, %c0_16] : memref<1x4x32x4xbf16, #tpu.memory_space<vmem>>, vector<1x4x32x4xbf16>
    %15 = vector.shape_cast %14 : vector<1x4x32x4xbf16> to vector<4x32x4xbf16>
    "tpu.trace_start"() <{level = 10 : i32, message = "hld,hdi->hli"}> : () -> ()
    %cst_17 = arith.constant dense<0.000000e+00> : vector<4x8x4xf32>
    %16 = tpu.matmul %10, %15, %cst_17 {dimension_numbers = #tpu.dot_dimension_numbers<[2], [1], [1], [2], [0, 0, 0, 1, 1, 2], [0], [0]>} : vector<4x8x32xbf16>, vector<4x32x4xbf16>, vector<4x8x4xf32> -> vector<4x8x4xf32>
    "tpu.trace_stop"() : () -> ()
    %c0_18 = arith.constant 0 : index
    %c0_19 = arith.constant 0 : index
    %c0_20 = arith.constant 0 : index
    %17 = vector.load %arg6[%c0_18, %c0_19, %c0_20] : memref<4x32x4xbf16, #tpu.memory_space<vmem>>, vector<4x32x4xbf16>
    "tpu.trace_start"() <{level = 10 : i32, message = "hld,hdi->hli"}> : () -> ()
    %cst_21 = arith.constant dense<0.000000e+00> : vector<4x8x4xf32>
    %18 = tpu.matmul %10, %17, %cst_21 {dimension_numbers = #tpu.dot_dimension_numbers<[2], [1], [1], [2], [0, 0, 0, 1, 1, 2], [0], [0]>} : vector<4x8x32xbf16>, vector<4x32x4xbf16>, vector<4x8x4xf32> -> vector<4x8x4xf32>
    "tpu.trace_stop"() : () -> ()
    %c0_22 = arith.constant 0 : index
    %c0_23 = arith.constant 0 : index
    %c0_24 = arith.constant 0 : index
    %19 = vector.load %arg7[%c0_22, %c0_23, %c0_24] : memref<4x32x4xbf16, #tpu.memory_space<vmem>>, vector<4x32x4xbf16>
    "tpu.trace_start"() <{level = 10 : i32, message = "hld,hdi->hli"}> : () -> ()
    %cst_25 = arith.constant dense<0.000000e+00> : vector<4x8x4xf32>
    %20 = tpu.matmul %10, %19, %cst_25 {dimension_numbers = #tpu.dot_dimension_numbers<[2], [1], [1], [2], [0, 0, 0, 1, 1, 2], [0], [0]>} : vector<4x8x32xbf16>, vector<4x32x4xbf16>, vector<4x8x4xf32> -> vector<4x8x4xf32>
    "tpu.trace_stop"() : () -> ()
    %c0_26 = arith.constant 0 : index
    %c0_27 = arith.constant 0 : index
    %c0_28 = arith.constant 0 : index
    %c0_29 = arith.constant 0 : index
    %21 = vector.load %arg10[%c0_26, %c0_27, %c0_28, %c0_29] : memref<1x4x32x32xbf16, #tpu.memory_space<vmem>>, vector<1x4x32x32xbf16>
    %22 = vector.shape_cast %21 : vector<1x4x32x32xbf16> to vector<4x32x32xbf16>
    "tpu.trace_start"() <{level = 10 : i32, message = "hld,hde->hle"}> : () -> ()
    %cst_30 = arith.constant dense<0.000000e+00> : vector<4x8x32xf32>
    %23 = tpu.matmul %10, %22, %cst_30 {dimension_numbers = #tpu.dot_dimension_numbers<[2], [1], [1], [2], [0, 0, 0, 1, 1, 2], [0], [0]>} : vector<4x8x32xbf16>, vector<4x32x32xbf16>, vector<4x8x32xf32> -> vector<4x8x32xf32>
    "tpu.trace_stop"() : () -> ()
    %c0_31 = arith.constant 0 : index
    %c0_32 = arith.constant 0 : index
    %c0_33 = arith.constant 0 : index
    %c0_34 = arith.constant 0 : index
    %24 = vector.load %arg11[%c0_31, %c0_32, %c0_33, %c0_34] : memref<1x4x1x4xf32, #tpu.memory_space<vmem>>, vector<1x4x1x4xf32>
    %25 = vector.shape_cast %24 : vector<1x4x1x4xf32> to vector<4x1x4xf32>
    %c0_35 = arith.constant 0 : index
    %c0_36 = arith.constant 0 : index
    %c0_37 = arith.constant 0 : index
    %c0_38 = arith.constant 0 : index
    %26 = vector.load %arg12[%c0_35, %c0_36, %c0_37, %c0_38] : memref<1x4x1x4xf32, #tpu.memory_space<vmem>>, vector<1x4x1x4xf32>
    %27 = vector.shape_cast %26 : vector<1x4x1x4xf32> to vector<4x1x4xf32>
    %c0_39 = arith.constant 0 : index
    %c0_40 = arith.constant 0 : index
    %c0_41 = arith.constant 0 : index
    %c0_42 = arith.constant 0 : index
    %28 = vector.load %arg13[%c0_39, %c0_40, %c0_41, %c0_42] : memref<1x4x1x4xf32, #tpu.memory_space<vmem>>, vector<1x4x1x4xf32>
    %29 = vector.shape_cast %28 : vector<1x4x1x4xf32> to vector<4x1x4xf32>
    %c0_43 = arith.constant 0 : index
    %c0_44 = arith.constant 0 : index
    %c0_45 = arith.constant 0 : index
    %c0_46 = arith.constant 0 : index
    %30 = vector.load %arg14[%c0_43, %c0_44, %c0_45, %c0_46] : memref<1x4x1x4xf32, #tpu.memory_space<vmem>>, vector<1x4x1x4xf32>
    %31 = vector.shape_cast %30 : vector<1x4x1x4xf32> to vector<4x1x4xf32>
    %32 = vector.shape_cast %6 : vector<8x4xf32> to vector<1x8x4xf32>
    %33 = vector.broadcast %32 : vector<1x8x4xf32> to vector<4x8x4xf32>
    %34 = vector.shape_cast %7 : vector<8x4xf32> to vector<1x8x4xf32>
    %35 = vector.broadcast %34 : vector<1x8x4xf32> to vector<4x8x4xf32>
    %36 = vector.broadcast %25 : vector<4x1x4xf32> to vector<4x8x4xf32>
    %37 = arith.addf %13, %36 : vector<4x8x4xf32>
    %38 = arith.truncf %37 : vector<4x8x4xf32> to vector<4x8x4xbf16>
    %39 = arith.truncf %18 : vector<4x8x4xf32> to vector<4x8x4xbf16>
    "tpu.trace_start"() <{level = 10 : i32, message = "hqi,hki->hqk"}> : () -> ()
    %cst_47 = arith.constant dense<0.000000e+00> : vector<4x8x8xf32>
    %40 = tpu.matmul %38, %39, %cst_47 {dimension_numbers = #tpu.dot_dimension_numbers<[2], [2], [1], [1], [0, 0, 0, 1, 1, 1], [0], [0]>} : vector<4x8x4xbf16>, vector<4x8x4xbf16>, vector<4x8x8xf32> -> vector<4x8x8xf32>
    "tpu.trace_stop"() : () -> ()
    %41 = vector.broadcast %27 : vector<4x1x4xf32> to vector<4x8x4xf32>
    %42 = arith.addf %16, %41 : vector<4x8x4xf32>
    %43 = arith.truncf %42 : vector<4x8x4xf32> to vector<4x8x4xbf16>
    %44 = arith.truncf %20 : vector<4x8x4xf32> to vector<4x8x4xbf16>
    "tpu.trace_start"() <{level = 10 : i32, message = "hqi,hki->hqk"}> : () -> ()
    %cst_48 = arith.constant dense<0.000000e+00> : vector<4x8x8xf32>
    %45 = tpu.matmul %43, %44, %cst_48 {dimension_numbers = #tpu.dot_dimension_numbers<[2], [2], [1], [1], [0, 0, 0, 1, 1, 1], [0], [0]>} : vector<4x8x4xbf16>, vector<4x8x4xbf16>, vector<4x8x8xf32> -> vector<4x8x8xf32>
    "tpu.trace_stop"() : () -> ()
    %46 = arith.addf %40, %45 : vector<4x8x8xf32>
    %47 = vector.broadcast %29 : vector<4x1x4xf32> to vector<4x8x4xf32>
    %48 = arith.addf %13, %47 : vector<4x8x4xf32>
    %49 = vector.broadcast %31 : vector<4x1x4xf32> to vector<4x8x4xf32>
    %50 = arith.addf %16, %49 : vector<4x8x4xf32>
    %51 = vector.shape_cast %7 : vector<8x4xf32> to vector<1x8x4xf32>
    %52 = vector.broadcast %51 : vector<1x8x4xf32> to vector<4x8x4xf32>
    %53 = arith.mulf %48, %52 : vector<4x8x4xf32>
    %54 = vector.shape_cast %6 : vector<8x4xf32> to vector<1x8x4xf32>
    %55 = vector.broadcast %54 : vector<1x8x4xf32> to vector<4x8x4xf32>
    %56 = arith.mulf %50, %55 : vector<4x8x4xf32>
    %57 = arith.addf %53, %56 : vector<4x8x4xf32>
    %58 = arith.truncf %57 : vector<4x8x4xf32> to vector<4x8x4xbf16>
    %59 = arith.truncf %33 : vector<4x8x4xf32> to vector<4x8x4xbf16>
    "tpu.trace_start"() <{level = 10 : i32, message = "hqi,hki->hqk"}> : () -> ()
    %cst_49 = arith.constant dense<0.000000e+00> : vector<4x8x8xf32>
    %60 = tpu.matmul %58, %59, %cst_49 {dimension_numbers = #tpu.dot_dimension_numbers<[2], [2], [1], [1], [0, 0, 0, 1, 1, 1], [0], [0]>} : vector<4x8x4xbf16>, vector<4x8x4xbf16>, vector<4x8x8xf32> -> vector<4x8x8xf32>
    "tpu.trace_stop"() : () -> ()
    %61 = vector.shape_cast %7 : vector<8x4xf32> to vector<1x8x4xf32>
    %62 = vector.broadcast %61 : vector<1x8x4xf32> to vector<4x8x4xf32>
    %63 = arith.mulf %50, %62 : vector<4x8x4xf32>
    %64 = vector.shape_cast %6 : vector<8x4xf32> to vector<1x8x4xf32>
    %65 = vector.broadcast %64 : vector<1x8x4xf32> to vector<4x8x4xf32>
    %66 = arith.mulf %48, %65 : vector<4x8x4xf32>
    %67 = arith.subf %63, %66 : vector<4x8x4xf32>
    %68 = arith.truncf %67 : vector<4x8x4xf32> to vector<4x8x4xbf16>
    %69 = arith.truncf %35 : vector<4x8x4xf32> to vector<4x8x4xbf16>
    "tpu.trace_start"() <{level = 10 : i32, message = "hqi,hki->hqk"}> : () -> ()
    %cst_50 = arith.constant dense<0.000000e+00> : vector<4x8x8xf32>
    %70 = tpu.matmul %68, %69, %cst_50 {dimension_numbers = #tpu.dot_dimension_numbers<[2], [2], [1], [1], [0, 0, 0, 1, 1, 1], [0], [0]>} : vector<4x8x4xbf16>, vector<4x8x4xbf16>, vector<4x8x8xf32> -> vector<4x8x8xf32>
    "tpu.trace_stop"() : () -> ()
    %71 = arith.addf %60, %70 : vector<4x8x8xf32>
    %72 = vector.shape_cast %7 : vector<8x4xf32> to vector<1x8x4xf32>
    %73 = vector.broadcast %72 : vector<1x8x4xf32> to vector<4x8x4xf32>
    %74 = arith.mulf %18, %73 : vector<4x8x4xf32>
    %75 = vector.shape_cast %6 : vector<8x4xf32> to vector<1x8x4xf32>
    %76 = vector.broadcast %75 : vector<1x8x4xf32> to vector<4x8x4xf32>
    %77 = arith.mulf %20, %76 : vector<4x8x4xf32>
    %78 = arith.addf %74, %77 : vector<4x8x4xf32>
    %79 = arith.truncf %33 : vector<4x8x4xf32> to vector<4x8x4xbf16>
    %80 = arith.truncf %78 : vector<4x8x4xf32> to vector<4x8x4xbf16>
    "tpu.trace_start"() <{level = 10 : i32, message = "hqi,hki->hqk"}> : () -> ()
    %cst_51 = arith.constant dense<0.000000e+00> : vector<4x8x8xf32>
    %81 = tpu.matmul %79, %80, %cst_51 {dimension_numbers = #tpu.dot_dimension_numbers<[2], [2], [1], [1], [0, 0, 0, 1, 1, 1], [0], [0]>} : vector<4x8x4xbf16>, vector<4x8x4xbf16>, vector<4x8x8xf32> -> vector<4x8x8xf32>
    "tpu.trace_stop"() : () -> ()
    %82 = vector.shape_cast %7 : vector<8x4xf32> to vector<1x8x4xf32>
    %83 = vector.broadcast %82 : vector<1x8x4xf32> to vector<4x8x4xf32>
    %84 = arith.mulf %20, %83 : vector<4x8x4xf32>
    %85 = vector.shape_cast %6 : vector<8x4xf32> to vector<1x8x4xf32>
    %86 = vector.broadcast %85 : vector<1x8x4xf32> to vector<4x8x4xf32>
    %87 = arith.mulf %18, %86 : vector<4x8x4xf32>
    %88 = arith.subf %84, %87 : vector<4x8x4xf32>
    %89 = arith.truncf %35 : vector<4x8x4xf32> to vector<4x8x4xbf16>
    %90 = arith.truncf %88 : vector<4x8x4xf32> to vector<4x8x4xbf16>
    "tpu.trace_start"() <{level = 10 : i32, message = "hqi,hki->hqk"}> : () -> ()
    %cst_52 = arith.constant dense<0.000000e+00> : vector<4x8x8xf32>
    %91 = tpu.matmul %89, %90, %cst_52 {dimension_numbers = #tpu.dot_dimension_numbers<[2], [2], [1], [1], [0, 0, 0, 1, 1, 1], [0], [0]>} : vector<4x8x4xbf16>, vector<4x8x4xbf16>, vector<4x8x8xf32> -> vector<4x8x8xf32>
    "tpu.trace_stop"() : () -> ()
    %92 = arith.addf %81, %91 : vector<4x8x8xf32>
    %93 = arith.addf %46, %71 : vector<4x8x8xf32>
    %94 = arith.addf %93, %92 : vector<4x8x8xf32>
    %cst_53 = arith.constant 5.000000e-01 : f32
    %95 = vector.broadcast %cst_53 : f32 to vector<1x8xf32>
    %96 = arith.cmpf ogt, %5, %95 : vector<1x8xf32>
    %cst_54 = arith.constant -1.000000e+30 : f32
    %97 = vector.shape_cast %96 : vector<1x8xi1> to vector<1x1x8xi1>
    %98 = vector.broadcast %97 : vector<1x1x8xi1> to vector<4x8x8xi1>
    %99 = vector.broadcast %cst_54 : f32 to vector<4x8x8xf32>
    %100 = arith.select %98, %94, %99 : vector<4x8x8xi1>, vector<4x8x8xf32>
    %cst_55 = arith.constant dense<0xFF800000> : vector<4x8xf32>
    %101 = vector.multi_reduction <maximumf>, %100, %cst_55 [2] : vector<4x8x8xf32> to vector<4x8xf32>
    %102 = vector.shape_cast %101 : vector<4x8xf32> to vector<4x8x1xf32>
    %103 = vector.broadcast %102 : vector<4x8x1xf32> to vector<4x8x8xf32>
    %104 = arith.subf %100, %103 : vector<4x8x8xf32>
    %105 = math.exp %104 : vector<4x8x8xf32>
    %cst_56 = arith.constant dense<0.000000e+00> : vector<4x8xf32>
    %106 = vector.multi_reduction <add>, %105, %cst_56 [2] : vector<4x8x8xf32> to vector<4x8xf32>
    %107 = vector.shape_cast %106 : vector<4x8xf32> to vector<4x8x1xf32>
    %108 = tpu.reciprocal %107 {approx = true} : vector<4x8x1xf32> -> vector<4x8x1xf32>
    %109 = vector.broadcast %108 : vector<4x8x1xf32> to vector<4x8x8xf32>
    %110 = arith.mulf %105, %109 : vector<4x8x8xf32>
    %111 = arith.truncf %110 : vector<4x8x8xf32> to vector<4x8x8xbf16>
    %112 = arith.truncf %23 : vector<4x8x32xf32> to vector<4x8x32xbf16>
    "tpu.trace_start"() <{level = 10 : i32, message = "hqk,hkd->hqd"}> : () -> ()
    %cst_57 = arith.constant dense<0.000000e+00> : vector<4x8x32xf32>
    %113 = tpu.matmul %111, %112, %cst_57 {dimension_numbers = #tpu.dot_dimension_numbers<[2], [1], [1], [2], [0, 0, 0, 1, 1, 2], [0], [0]>} : vector<4x8x8xbf16>, vector<4x8x32xbf16>, vector<4x8x32xf32> -> vector<4x8x32xf32>
    "tpu.trace_stop"() : () -> ()
    %114 = vector.extract_strided_slice %113 {offsets = [0, 0, 0], sizes = [1, 8, 32], strides = [1, 1, 1]} : vector<4x8x32xf32> to vector<1x8x32xf32>
    %115 = vector.shape_cast %114 : vector<1x8x32xf32> to vector<8x32xf32>
    %116 = vector.extract_strided_slice %113 {offsets = [1, 0, 0], sizes = [1, 8, 32], strides = [1, 1, 1]} : vector<4x8x32xf32> to vector<1x8x32xf32>
    %117 = vector.shape_cast %116 : vector<1x8x32xf32> to vector<8x32xf32>
    %118 = arith.addf %115, %117 : vector<8x32xf32>
    %119 = vector.extract_strided_slice %113 {offsets = [2, 0, 0], sizes = [1, 8, 32], strides = [1, 1, 1]} : vector<4x8x32xf32> to vector<1x8x32xf32>
    %120 = vector.shape_cast %119 : vector<1x8x32xf32> to vector<8x32xf32>
    %121 = arith.addf %118, %120 : vector<8x32xf32>
    %122 = vector.extract_strided_slice %113 {offsets = [3, 0, 0], sizes = [1, 8, 32], strides = [1, 1, 1]} : vector<4x8x32xf32> to vector<1x8x32xf32>
    %123 = vector.shape_cast %122 : vector<1x8x32xf32> to vector<8x32xf32>
    %124 = arith.addf %121, %123 : vector<8x32xf32>
    %125 = arith.addf %3, %124 : vector<8x32xf32>
    %cst_58 = arith.constant dense<0.000000e+00> : vector<8xf32>
    %126 = vector.multi_reduction <add>, %125, %cst_58 [1] : vector<8x32xf32> to vector<8xf32>
    %127 = vector.shape_cast %126 : vector<8xf32> to vector<8x1xf32>
    %cst_59 = arith.constant 3.200000e+01 : f32
    %128 = vector.broadcast %cst_59 : f32 to vector<8x1xf32>
    %129 = arith.divf %127, %128 : vector<8x1xf32>
    %130 = vector.broadcast %129 : vector<8x1xf32> to vector<8x32xf32>
    %131 = arith.subf %125, %130 : vector<8x32xf32>
    %132 = arith.mulf %131, %131 : vector<8x32xf32>
    %cst_60 = arith.constant dense<0.000000e+00> : vector<8xf32>
    %133 = vector.multi_reduction <add>, %132, %cst_60 [1] : vector<8x32xf32> to vector<8xf32>
    %134 = vector.shape_cast %133 : vector<8xf32> to vector<8x1xf32>
    %cst_61 = arith.constant 3.200000e+01 : f32
    %135 = vector.broadcast %cst_61 : f32 to vector<8x1xf32>
    %136 = arith.divf %134, %135 : vector<8x1xf32>
    %cst_62 = arith.constant 9.99999974E-6 : f32
    %137 = vector.broadcast %cst_62 : f32 to vector<8x1xf32>
    %138 = arith.addf %136, %137 : vector<8x1xf32>
    %139 = math.rsqrt %138 : vector<8x1xf32>
    %140 = vector.broadcast %139 : vector<8x1xf32> to vector<8x32xf32>
    %141 = arith.mulf %131, %140 : vector<8x32xf32>
    %c0_63 = arith.constant 0 : index
    %c0_64 = arith.constant 0 : index
    %c0_65 = arith.constant 0 : index
    %142 = vector.load %arg15[%c0_63, %c0_64, %c0_65] : memref<1x1x32xf32, #tpu.memory_space<vmem>>, vector<1x1x32xf32>
    %143 = vector.shape_cast %142 : vector<1x1x32xf32> to vector<1x32xf32>
    %144 = vector.broadcast %143 : vector<1x32xf32> to vector<8x32xf32>
    %145 = arith.mulf %141, %144 : vector<8x32xf32>
    %c0_66 = arith.constant 0 : index
    %c0_67 = arith.constant 0 : index
    %c0_68 = arith.constant 0 : index
    %146 = vector.load %arg16[%c0_66, %c0_67, %c0_68] : memref<1x1x32xf32, #tpu.memory_space<vmem>>, vector<1x1x32xf32>
    %147 = vector.shape_cast %146 : vector<1x1x32xf32> to vector<1x32xf32>
    %148 = vector.broadcast %147 : vector<1x32xf32> to vector<8x32xf32>
    %149 = arith.addf %145, %148 : vector<8x32xf32>
    %150 = arith.truncf %149 : vector<8x32xf32> to vector<8x32xbf16>
    %c0_69 = arith.constant 0 : index
    %c0_70 = arith.constant 0 : index
    %c0_71 = arith.constant 0 : index
    %151 = vector.load %arg17[%c0_69, %c0_70, %c0_71] : memref<1x32x64xbf16, #tpu.memory_space<vmem>>, vector<1x32x64xbf16>
    %152 = vector.shape_cast %151 : vector<1x32x64xbf16> to vector<32x64xbf16>
    %cst_72 = arith.constant dense<0.000000e+00> : vector<8x64xf32>
    %153 = tpu.matmul %150, %152, %cst_72 {dimension_numbers = #tpu.dot_dimension_numbers<[1], [0], [0], [1], [0, 0, 1, 1], [], []>} : vector<8x32xbf16>, vector<32x64xbf16>, vector<8x64xf32> -> vector<8x64xf32>
    %c0_73 = arith.constant 0 : index
    %c0_74 = arith.constant 0 : index
    %c0_75 = arith.constant 0 : index
    %154 = vector.load %arg18[%c0_73, %c0_74, %c0_75] : memref<1x1x64xf32, #tpu.memory_space<vmem>>, vector<1x1x64xf32>
    %155 = vector.shape_cast %154 : vector<1x1x64xf32> to vector<1x64xf32>
    %156 = vector.broadcast %155 : vector<1x64xf32> to vector<8x64xf32>
    %157 = arith.addf %153, %156 : vector<8x64xf32>
    %cst_76 = arith.constant 0.000000e+00 : f32
    %158 = vector.broadcast %cst_76 : f32 to vector<8x64xf32>
    %159 = arith.maximumf %157, %158 : vector<8x64xf32>
    %160 = arith.truncf %159 : vector<8x64xf32> to vector<8x64xbf16>
    %c0_77 = arith.constant 0 : index
    %c0_78 = arith.constant 0 : index
    %c0_79 = arith.constant 0 : index
    %161 = vector.load %arg19[%c0_77, %c0_78, %c0_79] : memref<1x64x32xbf16, #tpu.memory_space<vmem>>, vector<1x64x32xbf16>
    %162 = vector.shape_cast %161 : vector<1x64x32xbf16> to vector<64x32xbf16>
    %cst_80 = arith.constant dense<0.000000e+00> : vector<8x32xf32>
    %163 = tpu.matmul %160, %162, %cst_80 {dimension_numbers = #tpu.dot_dimension_numbers<[1], [0], [0], [1], [0, 0, 1, 1], [], []>} : vector<8x64xbf16>, vector<64x32xbf16>, vector<8x32xf32> -> vector<8x32xf32>
    %c0_81 = arith.constant 0 : index
    %c0_82 = arith.constant 0 : index
    %c0_83 = arith.constant 0 : index
    %164 = vector.load %arg20[%c0_81, %c0_82, %c0_83] : memref<1x1x32xf32, #tpu.memory_space<vmem>>, vector<1x1x32xf32>
    %165 = vector.shape_cast %164 : vector<1x1x32xf32> to vector<1x32xf32>
    %166 = vector.broadcast %165 : vector<1x32xf32> to vector<8x32xf32>
    %167 = arith.addf %163, %166 : vector<8x32xf32>
    %168 = arith.addf %149, %167 : vector<8x32xf32>
    %cst_84 = arith.constant dense<0.000000e+00> : vector<8xf32>
    %169 = vector.multi_reduction <add>, %168, %cst_84 [1] : vector<8x32xf32> to vector<8xf32>
    %170 = vector.shape_cast %169 : vector<8xf32> to vector<8x1xf32>
    %cst_85 = arith.constant 3.200000e+01 : f32
    %171 = vector.broadcast %cst_85 : f32 to vector<8x1xf32>
    %172 = arith.divf %170, %171 : vector<8x1xf32>
    %173 = vector.broadcast %172 : vector<8x1xf32> to vector<8x32xf32>
    %174 = arith.subf %168, %173 : vector<8x32xf32>
    %175 = arith.mulf %174, %174 : vector<8x32xf32>
    %cst_86 = arith.constant dense<0.000000e+00> : vector<8xf32>
    %176 = vector.multi_reduction <add>, %175, %cst_86 [1] : vector<8x32xf32> to vector<8xf32>
    %177 = vector.shape_cast %176 : vector<8xf32> to vector<8x1xf32>
    %cst_87 = arith.constant 3.200000e+01 : f32
    %178 = vector.broadcast %cst_87 : f32 to vector<8x1xf32>
    %179 = arith.divf %177, %178 : vector<8x1xf32>
    %cst_88 = arith.constant 9.99999974E-6 : f32
    %180 = vector.broadcast %cst_88 : f32 to vector<8x1xf32>
    %181 = arith.addf %179, %180 : vector<8x1xf32>
    %182 = math.rsqrt %181 : vector<8x1xf32>
    %183 = vector.broadcast %182 : vector<8x1xf32> to vector<8x32xf32>
    %184 = arith.mulf %174, %183 : vector<8x32xf32>
    %c0_89 = arith.constant 0 : index
    %c0_90 = arith.constant 0 : index
    %c0_91 = arith.constant 0 : index
    %185 = vector.load %arg21[%c0_89, %c0_90, %c0_91] : memref<1x1x32xf32, #tpu.memory_space<vmem>>, vector<1x1x32xf32>
    %186 = vector.shape_cast %185 : vector<1x1x32xf32> to vector<1x32xf32>
    %187 = vector.broadcast %186 : vector<1x32xf32> to vector<8x32xf32>
    %188 = arith.mulf %184, %187 : vector<8x32xf32>
    %c0_92 = arith.constant 0 : index
    %c0_93 = arith.constant 0 : index
    %c0_94 = arith.constant 0 : index
    %189 = vector.load %arg22[%c0_92, %c0_93, %c0_94] : memref<1x1x32xf32, #tpu.memory_space<vmem>>, vector<1x1x32xf32>
    %190 = vector.shape_cast %189 : vector<1x1x32xf32> to vector<1x32xf32>
    %191 = vector.broadcast %190 : vector<1x32xf32> to vector<8x32xf32>
    %192 = arith.addf %188, %191 : vector<8x32xf32>
    %c0_95 = arith.constant 0 : index
    %c0_96 = arith.constant 0 : index
    %193 = vector.load %arg26[%c0_95, %c0_96] : memref<8x32xf32, #tpu.memory_space<vmem>>, vector<8x32xf32>
    tpu.vector_store %arg26[%c0_95, %c0_96], %192 {strides = array<i32>} : memref<8x32xf32, #tpu.memory_space<vmem>>, vector<8x32xf32>,
    %c1_i32 = arith.constant 1 : i32
    %194 = arith.cmpi eq, %arg1, %c1_i32 : i32
    %195 = arith.extui %194 : i1 to i32
    %c0_i32_97 = arith.constant 0 : i32
    %196 = arith.cmpi ne, %195, %c0_i32_97 : i32
    scf.if %196 {
      %197 = arith.truncf %192 : vector<8x32xf32> to vector<8x32xbf16>
      %c0_98 = arith.constant 0 : index
      %c0_99 = arith.constant 0 : index
      %198 = vector.load %arg23[%c0_98, %c0_99] : memref<32x10xbf16, #tpu.memory_space<vmem>>, vector<32x10xbf16>
      %cst_100 = arith.constant dense<0.000000e+00> : vector<8x10xf32>
      %199 = tpu.matmul %197, %198, %cst_100 {dimension_numbers = #tpu.dot_dimension_numbers<[1], [0], [0], [1], [0, 0, 1, 1], [], []>} : vector<8x32xbf16>, vector<32x10xbf16>, vector<8x10xf32> -> vector<8x10xf32>
      %c0_101 = arith.constant 0 : index
      %c0_102 = arith.constant 0 : index
      %200 = vector.load %arg24[%c0_101, %c0_102] : memref<1x10xf32, #tpu.memory_space<vmem>>, vector<1x10xf32>
      %201 = vector.broadcast %200 : vector<1x10xf32> to vector<8x10xf32>
      %202 = arith.addf %199, %201 : vector<8x10xf32>
      %c0_103 = arith.constant 0 : index
      %c0_104 = arith.constant 0 : index
      %c0_105 = arith.constant 0 : index
      %203 = vector.load %arg25[%c0_103, %c0_104, %c0_105] : memref<1x8x10xf32, #tpu.memory_space<vmem>>, vector<1x8x10xf32>
      %204 = vector.shape_cast %203 : vector<1x8x10xf32> to vector<8x10xf32>
      %205 = vector.shape_cast %202 : vector<8x10xf32> to vector<1x8x10xf32>
      tpu.vector_store %arg25[%c0_103, %c0_104, %c0_105], %205 {strides = array<i32>} : memref<1x8x10xf32, #tpu.memory_space<vmem>>, vector<1x8x10xf32>,
    } else {
    }
    return
  }
  func.func @transform_0(%arg0: i32, %arg1: i32) -> (i32, i32, i32) {
    %c0_i32 = arith.constant 0 : i32
    %c0_i32_0 = arith.constant 0 : i32
    %c0_i32_1 = arith.constant 0 : i32
    return %arg0, %c0_i32, %c0_i32_0 : i32, i32, i32
  }
  func.func @transform_1(%arg0: i32, %arg1: i32) -> (i32, i32, i32) {
    %c0_i32 = arith.constant 0 : i32
    %c0_i32_0 = arith.constant 0 : i32
    %c0_i32_1 = arith.constant 0 : i32
    return %arg0, %c0_i32, %c0_i32_0 : i32, i32, i32
  }
  func.func @transform_2(%arg0: i32, %arg1: i32) -> (i32, i32) {
    %c0_i32 = arith.constant 0 : i32
    %c0_i32_0 = arith.constant 0 : i32
    %c0_i32_1 = arith.constant 0 : i32
    return %c0_i32, %c0_i32_0 : i32, i32
  }
  func.func @transform_3(%arg0: i32, %arg1: i32) -> (i32, i32) {
    %c0_i32 = arith.constant 0 : i32
    %c0_i32_0 = arith.constant 0 : i32
    %c0_i32_1 = arith.constant 0 : i32
    return %c0_i32, %c0_i32_0 : i32, i32
  }
  func.func @transform_4(%arg0: i32, %arg1: i32) -> (i32, i32, i32) {
    %c0_i32 = arith.constant 0 : i32
    %c0_i32_0 = arith.constant 0 : i32
    %c0_i32_1 = arith.constant 0 : i32
    %c0_i32_2 = arith.constant 0 : i32
    return %c0_i32, %c0_i32_0, %c0_i32_1 : i32, i32, i32
  }
  func.func @transform_5(%arg0: i32, %arg1: i32) -> (i32, i32, i32) {
    %c0_i32 = arith.constant 0 : i32
    %c0_i32_0 = arith.constant 0 : i32
    %c0_i32_1 = arith.constant 0 : i32
    %c0_i32_2 = arith.constant 0 : i32
    return %c0_i32, %c0_i32_0, %c0_i32_1 : i32, i32, i32
  }
  func.func @transform_6(%arg0: i32, %arg1: i32) -> (i32, i32, i32, i32) {
    %c0_i32 = arith.constant 0 : i32
    %c0_i32_0 = arith.constant 0 : i32
    %c0_i32_1 = arith.constant 0 : i32
    %c0_i32_2 = arith.constant 0 : i32
    return %arg1, %c0_i32, %c0_i32_0, %c0_i32_1 : i32, i32, i32, i32
  }
  func.func @transform_7(%arg0: i32, %arg1: i32) -> (i32, i32, i32, i32) {
    %c0_i32 = arith.constant 0 : i32
    %c0_i32_0 = arith.constant 0 : i32
    %c0_i32_1 = arith.constant 0 : i32
    %c0_i32_2 = arith.constant 0 : i32
    return %arg1, %c0_i32, %c0_i32_0, %c0_i32_1 : i32, i32, i32, i32
  }
  func.func @transform_8(%arg0: i32, %arg1: i32) -> (i32, i32, i32, i32) {
    %c0_i32 = arith.constant 0 : i32
    %c0_i32_0 = arith.constant 0 : i32
    %c0_i32_1 = arith.constant 0 : i32
    %c0_i32_2 = arith.constant 0 : i32
    return %arg1, %c0_i32, %c0_i32_0, %c0_i32_1 : i32, i32, i32, i32
  }
  func.func @transform_9(%arg0: i32, %arg1: i32) -> (i32, i32, i32, i32) {
    %c0_i32 = arith.constant 0 : i32
    %c0_i32_0 = arith.constant 0 : i32
    %c0_i32_1 = arith.constant 0 : i32
    %c0_i32_2 = arith.constant 0 : i32
    return %arg1, %c0_i32, %c0_i32_0, %c0_i32_1 : i32, i32, i32, i32
  }
  func.func @transform_10(%arg0: i32, %arg1: i32) -> (i32, i32, i32, i32) {
    %c0_i32 = arith.constant 0 : i32
    %c0_i32_0 = arith.constant 0 : i32
    %c0_i32_1 = arith.constant 0 : i32
    %c0_i32_2 = arith.constant 0 : i32
    return %arg1, %c0_i32, %c0_i32_0, %c0_i32_1 : i32, i32, i32, i32
  }
  func.func @transform_11(%arg0: i32, %arg1: i32) -> (i32, i32, i32, i32) {
    %c0_i32 = arith.constant 0 : i32
    %c0_i32_0 = arith.constant 0 : i32
    %c0_i32_1 = arith.constant 0 : i32
    %c0_i32_2 = arith.constant 0 : i32
    return %arg1, %c0_i32, %c0_i32_0, %c0_i32_1 : i32, i32, i32, i32
  }
  func.func @transform_12(%arg0: i32, %arg1: i32) -> (i32, i32, i32, i32) {
    %c0_i32 = arith.constant 0 : i32
    %c0_i32_0 = arith.constant 0 : i32
    %c0_i32_1 = arith.constant 0 : i32
    %c0_i32_2 = arith.constant 0 : i32
    return %arg1, %c0_i32, %c0_i32_0, %c0_i32_1 : i32, i32, i32, i32
  }
  func.func @transform_13(%arg0: i32, %arg1: i32) -> (i32, i32, i32) {
    %c0_i32 = arith.constant 0 : i32
    %c0_i32_0 = arith.constant 0 : i32
    %c0_i32_1 = arith.constant 0 : i32
    return %arg1, %c0_i32, %c0_i32_0 : i32, i32, i32
  }
  func.func @transform_14(%arg0: i32, %arg1: i32) -> (i32, i32, i32) {
    %c0_i32 = arith.constant 0 : i32
    %c0_i32_0 = arith.constant 0 : i32
    %c0_i32_1 = arith.constant 0 : i32
    return %arg1, %c0_i32, %c0_i32_0 : i32, i32, i32
  }
  func.func @transform_15(%arg0: i32, %arg1: i32) -> (i32, i32, i32) {
    %c0_i32 = arith.constant 0 : i32
    %c0_i32_0 = arith.constant 0 : i32
    %c0_i32_1 = arith.constant 0 : i32
    return %arg1, %c0_i32, %c0_i32_0 : i32, i32, i32
  }
  func.func @transform_16(%arg0: i32, %arg1: i32) -> (i32, i32, i32) {
    %c0_i32 = arith.constant 0 : i32
    %c0_i32_0 = arith.constant 0 : i32
    %c0_i32_1 = arith.constant 0 : i32
    return %arg1, %c0_i32, %c0_i32_0 : i32, i32, i32
  }
  func.func @transform_17(%arg0: i32, %arg1: i32) -> (i32, i32, i32) {
    %c0_i32 = arith.constant 0 : i32
    %c0_i32_0 = arith.constant 0 : i32
    %c0_i32_1 = arith.constant 0 : i32
    return %arg1, %c0_i32, %c0_i32_0 : i32, i32, i32
  }
  func.func @transform_18(%arg0: i32, %arg1: i32) -> (i32, i32, i32) {
    %c0_i32 = arith.constant 0 : i32
    %c0_i32_0 = arith.constant 0 : i32
    %c0_i32_1 = arith.constant 0 : i32
    return %arg1, %c0_i32, %c0_i32_0 : i32, i32, i32
  }
  func.func @transform_19(%arg0: i32, %arg1: i32) -> (i32, i32, i32) {
    %c0_i32 = arith.constant 0 : i32
    %c0_i32_0 = arith.constant 0 : i32
    %c0_i32_1 = arith.constant 0 : i32
    return %arg1, %c0_i32, %c0_i32_0 : i32, i32, i32
  }
  func.func @transform_20(%arg0: i32, %arg1: i32) -> (i32, i32, i32) {
    %c0_i32 = arith.constant 0 : i32
    %c0_i32_0 = arith.constant 0 : i32
    %c0_i32_1 = arith.constant 0 : i32
    return %arg1, %c0_i32, %c0_i32_0 : i32, i32, i32
  }
  func.func @transform_21(%arg0: i32, %arg1: i32) -> (i32, i32) {
    %c0_i32 = arith.constant 0 : i32
    %c0_i32_0 = arith.constant 0 : i32
    %c0_i32_1 = arith.constant 0 : i32
    return %c0_i32, %c0_i32_0 : i32, i32
  }
  func.func @transform_22(%arg0: i32, %arg1: i32) -> (i32, i32) {
    %c0_i32 = arith.constant 0 : i32
    %c0_i32_0 = arith.constant 0 : i32
    %c0_i32_1 = arith.constant 0 : i32
    return %c0_i32, %c0_i32_0 : i32, i32
  }
  func.func @transform_23(%arg0: i32, %arg1: i32) -> (i32, i32, i32) {
    %c0_i32 = arith.constant 0 : i32
    %c0_i32_0 = arith.constant 0 : i32
    %c0_i32_1 = arith.constant 0 : i32
    return %arg0, %c0_i32, %c0_i32_0 : i32, i32, i32
  }
}

</mosaic_0001>

<llo_original>
// kernel: tpu_custom_call.1
$region0: #{tpu_custom_call.1}
  #allocation0 [shape = 'u32[]', space=smem, size = 0x4, offset = 0x4, fixed_abs, tag = 'smem constant byte address 0x4 - core index']
  #allocation1 [shape = 'u32[144,128]{1,0:T(1,128)}', space=vmem, size = 0x12000, scoped, tag = 'internal scratch']
  #allocation2 [shape = 'f32[8,32]{1,0:T(8,128)}', space=vmem, size = 0x1000, scoped, tag = 'scratch operand']
  %s0 = inlined_call_operand.vmem [shape: f32[2,8,32], index: 0, kind: input, shape index: {}]
  %s1 = inlined_call_operand.vmem [shape: f32[2,1,8], index: 1, kind: input, shape index: {}]
  %s2 = inlined_call_operand.vmem [shape: f32[8,4], index: 2, kind: input, shape index: {}]
  %s3 = inlined_call_operand.vmem [shape: f32[8,4], index: 3, kind: input, shape index: {}]
  %s4 = inlined_call_operand.vmem [shape: bf16[4,32,4], index: 4, kind: input, shape index: {}]
  %s5 = inlined_call_operand.vmem [shape: bf16[4,32,4], index: 5, kind: input, shape index: {}]
  %s6 = inlined_call_operand.vmem [shape: bf16[2,4,32,4], index: 6, kind: input, shape index: {}]
  %s7 = inlined_call_operand.vmem [shape: bf16[2,4,32,4], index: 7, kind: input, shape index: {}]
  %s8 = inlined_call_operand.vmem [shape: bf16[2,4,32,32], index: 8, kind: input, shape index: {}]
  %s9 = inlined_call_operand.vmem [shape: f32[2,4,1,4], index: 9, kind: input, shape index: {}]
  %s10 = inlined_call_operand.vmem [shape: f32[2,4,1,4], index: 10, kind: input, shape index: {}]
  %s11 = inlined_call_operand.vmem [shape: f32[2,4,1,4], index: 11, kind: input, shape index: {}]
  %s12 = inlined_call_operand.vmem [shape: f32[2,4,1,4], index: 12, kind: input, shape index: {}]
  %s13 = inlined_call_operand.vmem [shape: f32[2,1,32], index: 13, kind: input, shape index: {}]
  %s14 = inlined_call_operand.vmem [shape: f32[2,1,32], index: 14, kind: input, shape index: {}]
  %s15 = inlined_call_operand.vmem [shape: bf16[2,32,64], index: 15, kind: input, shape index: {}]
  %s16 = inlined_call_operand.vmem [shape: f32[2,1,64], index: 16, kind: input, shape index: {}]
  %s17 = inlined_call_operand.vmem [shape: bf16[2,64,32], index: 17, kind: input, shape index: {}]
  %s18 = inlined_call_operand.vmem [shape: f32[2,1,32], index: 18, kind: input, shape index: {}]
  %s19 = inlined_call_operand.vmem [shape: f32[2,1,32], index: 19, kind: input, shape index: {}]
  %s20 = inlined_call_operand.vmem [shape: f32[2,1,32], index: 20, kind: input, shape index: {}]
  %s21 = inlined_call_operand.vmem [shape: bf16[32,10], index: 21, kind: input, shape index: {}]
  %s22 = inlined_call_operand.vmem [shape: f32[1,10], index: 22, kind: input, shape index: {}]
  %s23 = inlined_call_operand.hbm [shape: f32[2,8,10], index: 23, kind: output, shape index: {}]
  %s24 = sld [smem:[#allocation0]]
  $region133: #{tpu_custom_call.1} parent=0
    _
  %s26 = ssub.s32 1, %s24
  %s27 = scalar_select 0, %s26, %s24
  $region1: #{tpu_custom_call.1} parent=0
    #allocation3 [shape = 'u8[8192]{0}', space=vmem, size = 0x2000, scoped, tag = 'output window, operand 0']
    #allocation4 [shape = 's32[2]{0}', space=sflag, size = 0x8, scoped, tag = 'scoped memory for tpu_custom_call.1']
    %28 = vsyncpa [#allocation4], 0
    %s29 = scalar_lea.sflag [#allocation4], 1
    %30 = vsyncpa %s29, 0
    loop: start=0, step=1, limit=6
    $region2: #{tpu_custom_call.1} parent=1 // loop_pre_header
      _
    $region3: #{tpu_custom_call.1} parent=1 // loop_header
      %s32 = sphi 0, %s36
      %p33 = scmp.ge.s32.totalorder %s32, 6
      %s39 = sphi 0, %s51
      %s40 = sphi 0, %s47
      %s41 = sphi 0, %s39
      %s42 = sphi 0, %s40
      %s43 = sphi 0, %s41
      %s44 = sphi 0, %s42
      %s54 = sphi 0, %s56
      %s57 = sphi 0, %s54
      %s58 = sphi 0, %s57
      %s74 = sphi 0, %s58
      %s80 = sphi 0, %s82
      %s83 = sphi 0, %s80
      %s84 = sphi 0, %s83
      %s100 = sphi 0, %s84
      %s104 = sphi 0, %s104
      %s106 = sphi 0, %s104
      %s107 = sphi 0, %s106
      %s121 = sphi 0, %s107
      %s125 = sphi 0, %s125
      %s127 = sphi 0, %s125
      %s128 = sphi 0, %s127
      %s142 = sphi 0, %s128
      %s146 = sphi 0, %s146
      %s148 = sphi 0, %s146
      %s149 = sphi 0, %s148
      %s163 = sphi 0, %s149
      %s167 = sphi 0, %s167
      %s169 = sphi 0, %s167
      %s170 = sphi 0, %s169
      %s184 = sphi 0, %s170
      %s190 = sphi 0, %s192
      %s193 = sphi 0, %s190
      %s194 = sphi 0, %s193
      %s210 = sphi 0, %s194
      %s216 = sphi 0, %s218
      %s219 = sphi 0, %s216
      %s220 = sphi 0, %s219
      %s236 = sphi 0, %s220
      %s242 = sphi 0, %s244
      %s245 = sphi 0, %s242
      %s246 = sphi 0, %s245
      %s262 = sphi 0, %s246
      %s268 = sphi 0, %s270
      %s271 = sphi 0, %s268
      %s272 = sphi 0, %s271
      %s288 = sphi 0, %s272
      %s294 = sphi 0, %s296
      %s297 = sphi 0, %s294
      %s298 = sphi 0, %s297
      %s314 = sphi 0, %s298
      %s320 = sphi 0, %s322
      %s323 = sphi 0, %s320
      %s324 = sphi 0, %s323
      %s340 = sphi 0, %s324
      %s346 = sphi 0, %s348
      %s349 = sphi 0, %s346
      %s350 = sphi 0, %s349
      %s366 = sphi 0, %s350
      %s372 = sphi 0, %s374
      %s375 = sphi 0, %s372
      %s376 = sphi 0, %s375
      %s392 = sphi 0, %s376
      %s398 = sphi 0, %s400
      %s401 = sphi 0, %s398
      %s402 = sphi 0, %s401
      %s418 = sphi 0, %s402
      %s424 = sphi 0, %s426
      %s427 = sphi 0, %s424
      %s428 = sphi 0, %s427
      %s444 = sphi 0, %s428
      %s450 = sphi 0, %s452
      %s453 = sphi 0, %s450
      %s454 = sphi 0, %s453
      %s470 = sphi 0, %s454
      %s476 = sphi 0, %s478
      %s479 = sphi 0, %s476
      %s480 = sphi 0, %s479
      %s496 = sphi 0, %s480
      %s502 = sphi 0, %s504
      %s505 = sphi 0, %s502
      %s506 = sphi 0, %s505
      %s522 = sphi 0, %s506
      %s528 = sphi 0, %s530
      %s531 = sphi 0, %s528
      %s532 = sphi 0, %s531
      %s548 = sphi 0, %s532
      %s554 = sphi 0, %s556
      %s557 = sphi 0, %s554
      %s558 = sphi 0, %s557
      %s574 = sphi 0, %s558
      %s578 = sphi 0, %s578
      %s580 = sphi 0, %s578
      %s581 = sphi 0, %s580
      %s595 = sphi 0, %s581
      %s599 = sphi 0, %s599
      %s601 = sphi 0, %s599
      %s602 = sphi 0, %s601
      %s616 = sphi 0, %s602
      %s622 = sphi 0, %s624
      %s625 = sphi 0, %s622
      %s626 = sphi 0, %s625
      %s642 = sphi 0, %s626
    $region4: #{tpu_custom_call.1} parent=1 // loop_header_branch
      %35 = sbr.rel (%p33) target = $region8
    $region5: #{tpu_custom_call.1} parent=1 // loop_body
      %s37 = ssub.s32 %s32, 1
      %s38 = ssub.s32 %s32, 2
      %s45 = sadd.s32 1, %s40
      %p46 = scmp.ge.s32.totalorder %s45, 2
      %s47 = scalar_select %p46, 0, %s45
      %s48 = sadd.s32 1, %s39
      %s49 = scalar_select %p46, %s48, %s39
      %p50 = scmp.ge.s32.totalorder %s49, 2
      %s51 = scalar_select %p50, 0, %s49
      %s52 = ssub.s32 %s39, %s51
      %p53 = scmp.eq.s32.totalorder %s52, 0
      %s55 = sadd.s32 %s54, 1
      %s56 = scalar_select %p53, %s54, %s55
      %p59 = pneg %p53
      %p60 = scmp.eq.s32.totalorder %s32, 3
      %p61 = por %p59, %p60
      %p62 = scmp.ne.s32.totalorder %s54, %s57
      %p63 = scmp.eq.s32.totalorder %s32, 0
      %p64 = por %p62, %p63
      %p65 = scmp.ne.s32.totalorder %s54, %s57
      %p66 = scmp.eq.s32.totalorder %s37, 3
      %p67 = por %p65, %p66
      %p68 = scmp.ne.s32.totalorder %s57, %s58
      %p69 = scmp.eq.s32.totalorder %s37, 0
      %p70 = por %p68, %p69
      %p71 = scmp.ne.s32.totalorder %s57, %s58
      %p72 = scmp.eq.s32.totalorder %s38, 3
      %p73 = por %p71, %p72
      %p75 = scmp.ne.s32.totalorder %s58, %s74
      %p76 = scmp.eq.s32.totalorder %s38, 0
      %p77 = por %p75, %p76
      %s78 = ssub.s32 %s39, %s51
      %p79 = scmp.eq.s32.totalorder %s78, 0
      %s81 = sadd.s32 %s80, 1
      %s82 = scalar_select %p79, %s80, %s81
      %p85 = pneg %p79
      %p86 = scmp.eq.s32.totalorder %s32, 3
      %p87 = por %p85, %p86
      %p88 = scmp.ne.s32.totalorder %s80, %s83
      %p89 = scmp.eq.s32.totalorder %s32, 0
      %p90 = por %p88, %p89
      %p91 = scmp.ne.s32.totalorder %s80, %s83
      %p92 = scmp.eq.s32.totalorder %s37, 3
      %p93 = por %p91, %p92
      %p94 = scmp.ne.s32.totalorder %s83, %s84
      %p95 = scmp.eq.s32.totalorder %s37, 0
      %p96 = por %p94, %p95
      %p97 = scmp.ne.s32.totalorder %s83, %s84
      %p98 = scmp.eq.s32.totalorder %s38, 3
      %p99 = por %p97, %p98
      %p101 = scmp.ne.s32.totalorder %s84, %s100
      %p102 = scmp.eq.s32.totalorder %s38, 0
      %p103 = por %p101, %p102
      %s105 = sadd.s32 %s104, 1
      %p108 = scmp.eq.s32.totalorder %s32, 3
      %p109 = scmp.ne.s32.totalorder %s104, %s106
      %p110 = scmp.eq.s32.totalorder %s32, 0
      %p111 = por %p109, %p110
      %p112 = scmp.ne.s32.totalorder %s104, %s106
      %p113 = scmp.eq.s32.totalorder %s37, 3
      %p114 = por %p112, %p113
      %p115 = scmp.ne.s32.totalorder %s106, %s107
      %p116 = scmp.eq.s32.totalorder %s37, 0
      %p117 = por %p115, %p116
      %p118 = scmp.ne.s32.totalorder %s106, %s107
      %p119 = scmp.eq.s32.totalorder %s38, 3
      %p120 = por %p118, %p119
      %p122 = scmp.ne.s32.totalorder %s107, %s121
      %p123 = scmp.eq.s32.totalorder %s38, 0
      %p124 = por %p122, %p123
      %s126 = sadd.s32 %s125, 1
      %p129 = scmp.eq.s32.totalorder %s32, 3
      %p130 = scmp.ne.s32.totalorder %s125, %s127
      %p131 = scmp.eq.s32.totalorder %s32, 0
      %p132 = por %p130, %p131
      %p133 = scmp.ne.s32.totalorder %s125, %s127
      %p134 = scmp.eq.s32.totalorder %s37, 3
      %p135 = por %p133, %p134
      %p136 = scmp.ne.s32.totalorder %s127, %s128
      %p137 = scmp.eq.s32.totalorder %s37, 0
      %p138 = por %p136, %p137
      %p139 = scmp.ne.s32.totalorder %s127, %s128
      %p140 = scmp.eq.s32.totalorder %s38, 3
      %p141 = por %p139, %p140
      %p143 = scmp.ne.s32.totalorder %s128, %s142
      %p144 = scmp.eq.s32.totalorder %s38, 0
      %p145 = por %p143, %p144
      %s147 = sadd.s32 %s146, 1
      %p150 = scmp.eq.s32.totalorder %s32, 3
      %p151 = scmp.ne.s32.totalorder %s146, %s148
      %p152 = scmp.eq.s32.totalorder %s32, 0
      %p153 = por %p151, %p152
      %p154 = scmp.ne.s32.totalorder %s146, %s148
      %p155 = scmp.eq.s32.totalorder %s37, 3
      %p156 = por %p154, %p155
      %p157 = scmp.ne.s32.totalorder %s148, %s149
      %p158 = scmp.eq.s32.totalorder %s37, 0
      %p159 = por %p157, %p158
      %p160 = scmp.ne.s32.totalorder %s148, %s149
      %p161 = scmp.eq.s32.totalorder %s38, 3
      %p162 = por %p160, %p161
      %p164 = scmp.ne.s32.totalorder %s149, %s163
      %p165 = scmp.eq.s32.totalorder %s38, 0
      %p166 = por %p164, %p165
      %s168 = sadd.s32 %s167, 1
      %p171 = scmp.eq.s32.totalorder %s32, 3
      %p172 = scmp.ne.s32.totalorder %s167, %s169
      %p173 = scmp.eq.s32.totalorder %s32, 0
      %p174 = por %p172, %p173
      %p175 = scmp.ne.s32.totalorder %s167, %s169
      %p176 = scmp.eq.s32.totalorder %s37, 3
      %p177 = por %p175, %p176
      %p178 = scmp.ne.s32.totalorder %s169, %s170
      %p179 = scmp.eq.s32.totalorder %s37, 0
      %p180 = por %p178, %p179
      %p181 = scmp.ne.s32.totalorder %s169, %s170
      %p182 = scmp.eq.s32.totalorder %s38, 3
      %p183 = por %p181, %p182
      %p185 = scmp.ne.s32.totalorder %s170, %s184
      %p186 = scmp.eq.s32.totalorder %s38, 0
      %p187 = por %p185, %p186
      %s188 = ssub.s32 %s40, %s47
      %p189 = scmp.eq.s32.totalorder %s188, 0
      %s191 = sadd.s32 %s190, 1
      %s192 = scalar_select %p189, %s190, %s191
      %p195 = pneg %p189
      %p196 = scmp.eq.s32.totalorder %s32, 3
      %p197 = por %p195, %p196
      %p198 = scmp.ne.s32.totalorder %s190, %s193
      %p199 = scmp.eq.s32.totalorder %s32, 0
      %p200 = por %p198, %p199
      %p201 = scmp.ne.s32.totalorder %s190, %s193
      %p202 = scmp.eq.s32.totalorder %s37, 3
      %p203 = por %p201, %p202
      %p204 = scmp.ne.s32.totalorder %s193, %s194
      %p205 = scmp.eq.s32.totalorder %s37, 0
      %p206 = por %p204, %p205
      %p207 = scmp.ne.s32.totalorder %s193, %s194
      %p208 = scmp.eq.s32.totalorder %s38, 3
      %p209 = por %p207, %p208
      %p211 = scmp.ne.s32.totalorder %s194, %s210
      %p212 = scmp.eq.s32.totalorder %s38, 0
      %p213 = por %p211, %p212
      %s214 = ssub.s32 %s40, %s47
      %p215 = scmp.eq.s32.totalorder %s214, 0
      %s217 = sadd.s32 %s216, 1
      %s218 = scalar_select %p215, %s216, %s217
      %p221 = pneg %p215
      %p222 = scmp.eq.s32.totalorder %s32, 3
      %p223 = por %p221, %p222
      %p224 = scmp.ne.s32.totalorder %s216, %s219
      %p225 = scmp.eq.s32.totalorder %s32, 0
      %p226 = por %p224, %p225
      %p227 = scmp.ne.s32.totalorder %s216, %s219
      %p228 = scmp.eq.s32.totalorder %s37, 3
      %p229 = por %p227, %p228
      %p230 = scmp.ne.s32.totalorder %s219, %s220
      %p231 = scmp.eq.s32.totalorder %s37, 0
      %p232 = por %p230, %p231
      %p233 = scmp.ne.s32.totalorder %s219, %s220
      %p234 = scmp.eq.s32.totalorder %s38, 3
      %p235 = por %p233, %p234
      %p237 = scmp.ne.s32.totalorder %s220, %s236
      %p238 = scmp.eq.s32.totalorder %s38, 0
      %p239 = por %p237, %p238
      %s240 = ssub.s32 %s40, %s47
      %p241 = scmp.eq.s32.totalorder %s240, 0
      %s243 = sadd.s32 %s242, 1
      %s244 = scalar_select %p241, %s242, %s243
      %p247 = pneg %p241
      %p248 = scmp.eq.s32.totalorder %s32, 3
      %p249 = por %p247, %p248
      %p250 = scmp.ne.s32.totalorder %s242, %s245
      %p251 = scmp.eq.s32.totalorder %s32, 0
      %p252 = por %p250, %p251
      %p253 = scmp.ne.s32.totalorder %s242, %s245
      %p254 = scmp.eq.s32.totalorder %s37, 3
      %p255 = por %p253, %p254
      %p256 = scmp.ne.s32.totalorder %s245, %s246
      %p257 = scmp.eq.s32.totalorder %s37, 0
      %p258 = por %p256, %p257
      %p259 = scmp.ne.s32.totalorder %s245, %s246
      %p260 = scmp.eq.s32.totalorder %s38, 3
      %p261 = por %p259, %p260
      %p263 = scmp.ne.s32.totalorder %s246, %s262
      %p264 = scmp.eq.s32.totalorder %s38, 0
      %p265 = por %p263, %p264
      %s266 = ssub.s32 %s40, %s47
      %p267 = scmp.eq.s32.totalorder %s266, 0
      %s269 = sadd.s32 %s268, 1
      %s270 = scalar_select %p267, %s268, %s269
      %p273 = pneg %p267
      %p274 = scmp.eq.s32.totalorder %s32, 3
      %p275 = por %p273, %p274
      %p276 = scmp.ne.s32.totalorder %s268, %s271
      %p277 = scmp.eq.s32.totalorder %s32, 0
      %p278 = por %p276, %p277
      %p279 = scmp.ne.s32.totalorder %s268, %s271
      %p280 = scmp.eq.s32.totalorder %s37, 3
      %p281 = por %p279, %p280
      %p282 = scmp.ne.s32.totalorder %s271, %s272
      %p283 = scmp.eq.s32.totalorder %s37, 0
      %p284 = por %p282, %p283
      %p285 = scmp.ne.s32.totalorder %s271, %s272
      %p286 = scmp.eq.s32.totalorder %s38, 3
      %p287 = por %p285, %p286
      %p289 = scmp.ne.s32.totalorder %s272, %s288
      %p290 = scmp.eq.s32.totalorder %s38, 0
      %p291 = por %p289, %p290
      %s292 = ssub.s32 %s40, %s47
      %p293 = scmp.eq.s32.totalorder %s292, 0
      %s295 = sadd.s32 %s294, 1
      %s296 = scalar_select %p293, %s294, %s295
      %p299 = pneg %p293
      %p300 = scmp.eq.s32.totalorder %s32, 3
      %p301 = por %p299, %p300
      %p302 = scmp.ne.s32.totalorder %s294, %s297
      %p303 = scmp.eq.s32.totalorder %s32, 0
      %p304 = por %p302, %p303
      %p305 = scmp.ne.s32.totalorder %s294, %s297
      %p306 = scmp.eq.s32.totalorder %s37, 3
      %p307 = por %p305, %p306
      %p308 = scmp.ne.s32.totalorder %s297, %s298
      %p309 = scmp.eq.s32.totalorder %s37, 0
      %p310 = por %p308, %p309
      %p311 = scmp.ne.s32.totalorder %s297, %s298
      %p312 = scmp.eq.s32.totalorder %s38, 3
      %p313 = por %p311, %p312
      %p315 = scmp.ne.s32.totalorder %s298, %s314
      %p316 = scmp.eq.s32.totalorder %s38, 0
      %p317 = por %p315, %p316
      %s318 = ssub.s32 %s40, %s47
      %p319 = scmp.eq.s32.totalorder %s318, 0
      %s321 = sadd.s32 %s320, 1
      %s322 = scalar_select %p319, %s320, %s321
      %p325 = pneg %p319
      %p326 = scmp.eq.s32.totalorder %s32, 3
      %p327 = por %p325, %p326
      %p328 = scmp.ne.s32.totalorder %s320, %s323
      %p329 = scmp.eq.s32.totalorder %s32, 0
      %p330 = por %p328, %p329
      %p331 = scmp.ne.s32.totalorder %s320, %s323
      %p332 = scmp.eq.s32.totalorder %s37, 3
      %p333 = por %p331, %p332
      %p334 = scmp.ne.s32.totalorder %s323, %s324
      %p335 = scmp.eq.s32.totalorder %s37, 0
      %p336 = por %p334, %p335
      %p337 = scmp.ne.s32.totalorder %s323, %s324
      %p338 = scmp.eq.s32.totalorder %s38, 3
      %p339 = por %p337, %p338
      %p341 = scmp.ne.s32.totalorder %s324, %s340
      %p342 = scmp.eq.s32.totalorder %s38, 0
      %p343 = por %p341, %p342
      %s344 = ssub.s32 %s40, %s47
      %p345 = scmp.eq.s32.totalorder %s344, 0
      %s347 = sadd.s32 %s346, 1
      %s348 = scalar_select %p345, %s346, %s347
      %p351 = pneg %p345
      %p352 = scmp.eq.s32.totalorder %s32, 3
      %p353 = por %p351, %p352
      %p354 = scmp.ne.s32.totalorder %s346, %s349
      %p355 = scmp.eq.s32.totalorder %s32, 0
      %p356 = por %p354, %p355
      %p357 = scmp.ne.s32.totalorder %s346, %s349
      %p358 = scmp.eq.s32.totalorder %s37, 3
      %p359 = por %p357, %p358
      %p360 = scmp.ne.s32.totalorder %s349, %s350
      %p361 = scmp.eq.s32.totalorder %s37, 0
      %p362 = por %p360, %p361
      %p363 = scmp.ne.s32.totalorder %s349, %s350
      %p364 = scmp.eq.s32.totalorder %s38, 3
      %p365 = por %p363, %p364
      %p367 = scmp.ne.s32.totalorder %s350, %s366
      %p368 = scmp.eq.s32.totalorder %s38, 0
      %p369 = por %p367, %p368
      %s370 = ssub.s32 %s40, %s47
      %p371 = scmp.eq.s32.totalorder %s370, 0
      %s373 = sadd.s32 %s372, 1
      %s374 = scalar_select %p371, %s372, %s373
      %p377 = pneg %p371
      %p378 = scmp.eq.s32.totalorder %s32, 3
      %p379 = por %p377, %p378
      %p380 = scmp.ne.s32.totalorder %s372, %s375
      %p381 = scmp.eq.s32.totalorder %s32, 0
      %p382 = por %p380, %p381
      %p383 = scmp.ne.s32.totalorder %s372, %s375
      %p384 = scmp.eq.s32.totalorder %s37, 3
      %p385 = por %p383, %p384
      %p386 = scmp.ne.s32.totalorder %s375, %s376
      %p387 = scmp.eq.s32.totalorder %s37, 0
      %p388 = por %p386, %p387
      %p389 = scmp.ne.s32.totalorder %s375, %s376
      %p390 = scmp.eq.s32.totalorder %s38, 3
      %p391 = por %p389, %p390
      %p393 = scmp.ne.s32.totalorder %s376, %s392
      %p394 = scmp.eq.s32.totalorder %s38, 0
      %p395 = por %p393, %p394
      %s396 = ssub.s32 %s40, %s47
      %p397 = scmp.eq.s32.totalorder %s396, 0
      %s399 = sadd.s32 %s398, 1
      %s400 = scalar_select %p397, %s398, %s399
      %p403 = pneg %p397
      %p404 = scmp.eq.s32.totalorder %s32, 3
      %p405 = por %p403, %p404
      %p406 = scmp.ne.s32.totalorder %s398, %s401
      %p407 = scmp.eq.s32.totalorder %s32, 0
      %p408 = por %p406, %p407
      %p409 = scmp.ne.s32.totalorder %s398, %s401
      %p410 = scmp.eq.s32.totalorder %s37, 3
      %p411 = por %p409, %p410
      %p412 = scmp.ne.s32.totalorder %s401, %s402
      %p413 = scmp.eq.s32.totalorder %s37, 0
      %p414 = por %p412, %p413
      %p415 = scmp.ne.s32.totalorder %s401, %s402
      %p416 = scmp.eq.s32.totalorder %s38, 3
      %p417 = por %p415, %p416
      %p419 = scmp.ne.s32.totalorder %s402, %s418
      %p420 = scmp.eq.s32.totalorder %s38, 0
      %p421 = por %p419, %p420
      %s422 = ssub.s32 %s40, %s47
      %p423 = scmp.eq.s32.totalorder %s422, 0
      %s425 = sadd.s32 %s424, 1
      %s426 = scalar_select %p423, %s424, %s425
      %p429 = pneg %p423
      %p430 = scmp.eq.s32.totalorder %s32, 3
      %p431 = por %p429, %p430
      %p432 = scmp.ne.s32.totalorder %s424, %s427
      %p433 = scmp.eq.s32.totalorder %s32, 0
      %p434 = por %p432, %p433
      %p435 = scmp.ne.s32.totalorder %s424, %s427
      %p436 = scmp.eq.s32.totalorder %s37, 3
      %p437 = por %p435, %p436
      %p438 = scmp.ne.s32.totalorder %s427, %s428
      %p439 = scmp.eq.s32.totalorder %s37, 0
      %p440 = por %p438, %p439
      %p441 = scmp.ne.s32.totalorder %s427, %s428
      %p442 = scmp.eq.s32.totalorder %s38, 3
      %p443 = por %p441, %p442
      %p445 = scmp.ne.s32.totalorder %s428, %s444
      %p446 = scmp.eq.s32.totalorder %s38, 0
      %p447 = por %p445, %p446
      %s448 = ssub.s32 %s40, %s47
      %p449 = scmp.eq.s32.totalorder %s448, 0
      %s451 = sadd.s32 %s450, 1
      %s452 = scalar_select %p449, %s450, %s451
      %p455 = pneg %p449
      %p456 = scmp.eq.s32.totalorder %s32, 3
      %p457 = por %p455, %p456
      %p458 = scmp.ne.s32.totalorder %s450, %s453
      %p459 = scmp.eq.s32.totalorder %s32, 0
      %p460 = por %p458, %p459
      %p461 = scmp.ne.s32.totalorder %s450, %s453
      %p462 = scmp.eq.s32.totalorder %s37, 3
      %p463 = por %p461, %p462
      %p464 = scmp.ne.s32.totalorder %s453, %s454
      %p465 = scmp.eq.s32.totalorder %s37, 0
      %p466 = por %p464, %p465
      %p467 = scmp.ne.s32.totalorder %s453, %s454
      %p468 = scmp.eq.s32.totalorder %s38, 3
      %p469 = por %p467, %p468
      %p471 = scmp.ne.s32.totalorder %s454, %s470
      %p472 = scmp.eq.s32.totalorder %s38, 0
      %p473 = por %p471, %p472
      %s474 = ssub.s32 %s40, %s47
      %p475 = scmp.eq.s32.totalorder %s474, 0
      %s477 = sadd.s32 %s476, 1
      %s478 = scalar_select %p475, %s476, %s477
      %p481 = pneg %p475
      %p482 = scmp.eq.s32.totalorder %s32, 3
      %p483 = por %p481, %p482
      %p484 = scmp.ne.s32.totalorder %s476, %s479
      %p485 = scmp.eq.s32.totalorder %s32, 0
      %p486 = por %p484, %p485
      %p487 = scmp.ne.s32.totalorder %s476, %s479
      %p488 = scmp.eq.s32.totalorder %s37, 3
      %p489 = por %p487, %p488
      %p490 = scmp.ne.s32.totalorder %s479, %s480
      %p491 = scmp.eq.s32.totalorder %s37, 0
      %p492 = por %p490, %p491
      %p493 = scmp.ne.s32.totalorder %s479, %s480
      %p494 = scmp.eq.s32.totalorder %s38, 3
      %p495 = por %p493, %p494
      %p497 = scmp.ne.s32.totalorder %s480, %s496
      %p498 = scmp.eq.s32.totalorder %s38, 0
      %p499 = por %p497, %p498
      %s500 = ssub.s32 %s40, %s47
      %p501 = scmp.eq.s32.totalorder %s500, 0
      %s503 = sadd.s32 %s502, 1
      %s504 = scalar_select %p501, %s502, %s503
      %p507 = pneg %p501
      %p508 = scmp.eq.s32.totalorder %s32, 3
      %p509 = por %p507, %p508
      %p510 = scmp.ne.s32.totalorder %s502, %s505
      %p511 = scmp.eq.s32.totalorder %s32, 0
      %p512 = por %p510, %p511
      %p513 = scmp.ne.s32.totalorder %s502, %s505
      %p514 = scmp.eq.s32.totalorder %s37, 3
      %p515 = por %p513, %p514
      %p516 = scmp.ne.s32.totalorder %s505, %s506
      %p517 = scmp.eq.s32.totalorder %s37, 0
      %p518 = por %p516, %p517
      %p519 = scmp.ne.s32.totalorder %s505, %s506
      %p520 = scmp.eq.s32.totalorder %s38, 3
      %p521 = por %p519, %p520
      %p523 = scmp.ne.s32.totalorder %s506, %s522
      %p524 = scmp.eq.s32.totalorder %s38, 0
      %p525 = por %p523, %p524
      %s526 = ssub.s32 %s40, %s47
      %p527 = scmp.eq.s32.totalorder %s526, 0
      %s529 = sadd.s32 %s528, 1
      %s530 = scalar_select %p527, %s528, %s529
      %p533 = pneg %p527
      %p534 = scmp.eq.s32.totalorder %s32, 3
      %p535 = por %p533, %p534
      %p536 = scmp.ne.s32.totalorder %s528, %s531
      %p537 = scmp.eq.s32.totalorder %s32, 0
      %p538 = por %p536, %p537
      %p539 = scmp.ne.s32.totalorder %s528, %s531
      %p540 = scmp.eq.s32.totalorder %s37, 3
      %p541 = por %p539, %p540
      %p542 = scmp.ne.s32.totalorder %s531, %s532
      %p543 = scmp.eq.s32.totalorder %s37, 0
      %p544 = por %p542, %p543
      %p545 = scmp.ne.s32.totalorder %s531, %s532
      %p546 = scmp.eq.s32.totalorder %s38, 3
      %p547 = por %p545, %p546
      %p549 = scmp.ne.s32.totalorder %s532, %s548
      %p550 = scmp.eq.s32.totalorder %s38, 0
      %p551 = por %p549, %p550
      %s552 = ssub.s32 %s40, %s47
      %p553 = scmp.eq.s32.totalorder %s552, 0
      %s555 = sadd.s32 %s554, 1
      %s556 = scalar_select %p553, %s554, %s555
      %p559 = pneg %p553
      %p560 = scmp.eq.s32.totalorder %s32, 3
      %p561 = por %p559, %p560
      %p562 = scmp.ne.s32.totalorder %s554, %s557
      %p563 = scmp.eq.s32.totalorder %s32, 0
      %p564 = por %p562, %p563
      %p565 = scmp.ne.s32.totalorder %s554, %s557
      %p566 = scmp.eq.s32.totalorder %s37, 3
      %p567 = por %p565, %p566
      %p568 = scmp.ne.s32.totalorder %s557, %s558
      %p569 = scmp.eq.s32.totalorder %s37, 0
      %p570 = por %p568, %p569
      %p571 = scmp.ne.s32.totalorder %s557, %s558
      %p572 = scmp.eq.s32.totalorder %s38, 3
      %p573 = por %p571, %p572
      %p575 = scmp.ne.s32.totalorder %s558, %s574
      %p576 = scmp.eq.s32.totalorder %s38, 0
      %p577 = por %p575, %p576
      %s579 = sadd.s32 %s578, 1
      %p582 = scmp.eq.s32.totalorder %s32, 3
      %p583 = scmp.ne.s32.totalorder %s578, %s580
      %p584 = scmp.eq.s32.totalorder %s32, 0
      %p585 = por %p583, %p584
      %p586 = scmp.ne.s32.totalorder %s578, %s580
      %p587 = scmp.eq.s32.totalorder %s37, 3
      %p588 = por %p586, %p587
      %p589 = scmp.ne.s32.totalorder %s580, %s581
      %p590 = scmp.eq.s32.totalorder %s37, 0
      %p591 = por %p589, %p590
      %p592 = scmp.ne.s32.totalorder %s580, %s581
      %p593 = scmp.eq.s32.totalorder %s38, 3
      %p594 = por %p592, %p593
      %p596 = scmp.ne.s32.totalorder %s581, %s595
      %p597 = scmp.eq.s32.totalorder %s38, 0
      %p598 = por %p596, %p597
      %s600 = sadd.s32 %s599, 1
      %p603 = scmp.eq.s32.totalorder %s32, 3
      %p604 = scmp.ne.s32.totalorder %s599, %s601
      %p605 = scmp.eq.s32.totalorder %s32, 0
      %p606 = por %p604, %p605
      %p607 = scmp.ne.s32.totalorder %s599, %s601
      %p608 = scmp.eq.s32.totalorder %s37, 3
      %p609 = por %p607, %p608
      %p610 = scmp.ne.s32.totalorder %s601, %s602
      %p611 = scmp.eq.s32.totalorder %s37, 0
      %p612 = por %p610, %p611
      %p613 = scmp.ne.s32.totalorder %s601, %s602
      %p614 = scmp.eq.s32.totalorder %s38, 3
      %p615 = por %p613, %p614
      %p617 = scmp.ne.s32.totalorder %s602, %s616
      %p618 = scmp.eq.s32.totalorder %s38, 0
      %p619 = por %p617, %p618
      %s620 = ssub.s32 %s39, %s51
      %p621 = scmp.eq.s32.totalorder %s620, 0
      %s623 = sadd.s32 %s622, 1
      %s624 = scalar_select %p621, %s622, %s623
      %p627 = pneg %p621
      %p628 = scmp.eq.s32.totalorder %s32, 3
      %p629 = por %p627, %p628
      %p630 = scmp.ne.s32.totalorder %s622, %s625
      %p631 = scmp.eq.s32.totalorder %s32, 0
      %p632 = por %p630, %p631
      %p633 = scmp.ne.s32.totalorder %s622, %s625
      %p634 = scmp.eq.s32.totalorder %s37, 3
      %p635 = por %p633, %p634
      %p636 = scmp.ne.s32.totalorder %s625, %s626
      %p637 = scmp.eq.s32.totalorder %s37, 0
      %p638 = por %p636, %p637
      %p639 = scmp.ne.s32.totalorder %s625, %s626
      %p640 = scmp.eq.s32.totalorder %s38, 3
      %p641 = por %p639, %p640
      %p643 = scmp.ne.s32.totalorder %s626, %s642
      %p644 = scmp.eq.s32.totalorder %s38, 0
      %p645 = por %p643, %p644
      %p646 = scmp.le.s32.totalorder 1, %s32
      %p647 = scmp.lt.s32.totalorder %s32, 5
      %p648 = pnand %p646, %p647
      %p649 = pneg %p648
      // Predicated region
      $region9: #{tpu_custom_call.1} parent=5 // pred_check
        _
      $region10: #{tpu_custom_call.1} parent=5 // pred_check_branch
        %651 = sbr.rel (%p648) target = $region12
      $region11: #{tpu_custom_call.1} parent=5 // pred_region
        %s652 = ssub.s32 %s32, 1
        // Predicated region
        $region13: #{tpu_custom_call.1} parent=11 // pred_check
          %p653 = pneg %p117
        $region14: #{tpu_custom_call.1} parent=11 // pred_check_branch
          %655 = sbr.rel (%p653) target = $region16
        $region15: #{tpu_custom_call.1} parent=11 // pred_region
          _
        $region16: #{tpu_custom_call.1} parent=11 // pred_fallthru
          _
        // Predicated region
        $region17: #{tpu_custom_call.1} parent=11 // pred_check
          %p656 = pneg %p138
        $region18: #{tpu_custom_call.1} parent=11 // pred_check_branch
          %658 = sbr.rel (%p656) target = $region20
        $region19: #{tpu_custom_call.1} parent=11 // pred_region
          _
        $region20: #{tpu_custom_call.1} parent=11 // pred_fallthru
          _
        // Predicated region
        $region21: #{tpu_custom_call.1} parent=11 // pred_check
          %p659 = pneg %p159
        $region22: #{tpu_custom_call.1} parent=11 // pred_check_branch
          %661 = sbr.rel (%p659) target = $region24
        $region23: #{tpu_custom_call.1} parent=11 // pred_region
          _
        $region24: #{tpu_custom_call.1} parent=11 // pred_fallthru
          _
        // Predicated region
        $region25: #{tpu_custom_call.1} parent=11 // pred_check
          %p662 = pneg %p180
        $region26: #{tpu_custom_call.1} parent=11 // pred_check_branch
          %664 = sbr.rel (%p662) target = $region28
        $region27: #{tpu_custom_call.1} parent=11 // pred_region
          _
        $region28: #{tpu_custom_call.1} parent=11 // pred_fallthru
          _
        // Predicated region
        $region29: #{tpu_custom_call.1} parent=11 // pred_check
          %p665 = pneg %p591
        $region30: #{tpu_custom_call.1} parent=11 // pred_check_branch
          %667 = sbr.rel (%p665) target = $region32
        $region31: #{tpu_custom_call.1} parent=11 // pred_region
          _
        $region32: #{tpu_custom_call.1} parent=11 // pred_fallthru
          _
        // Predicated region
        $region33: #{tpu_custom_call.1} parent=11 // pred_check
          %p668 = pneg %p612
        $region34: #{tpu_custom_call.1} parent=11 // pred_check_branch
          %670 = sbr.rel (%p668) target = $region36
        $region35: #{tpu_custom_call.1} parent=11 // pred_region
          _
        $region36: #{tpu_custom_call.1} parent=11 // pred_fallthru
          _
      $region12: #{tpu_custom_call.1} parent=5 // pred_fallthru
        _
      %p671 = scmp.lt.s32.totalorder %s32, 4
      // Predicated region
      $region37: #{tpu_custom_call.1} parent=5 // pred_check
        %p672 = pneg %p671
      $region38: #{tpu_custom_call.1} parent=5 // pred_check_branch
        %674 = sbr.rel (%p672) target = $region40
      $region39: #{tpu_custom_call.1} parent=5 // pred_region
        // Predicated region
        $region41: #{tpu_custom_call.1} parent=39 // pred_check
          %p675 = pneg %p64
        $region42: #{tpu_custom_call.1} parent=39 // pred_check_branch
          %677 = sbr.rel (%p675) target = $region44
        $region43: #{tpu_custom_call.1} parent=39 // pred_region
          %p678 = scmp.lt.s32.totalorder %s39, 1
          %s679 = scalar_select %p678, %s39, 1
          %s680 = smul.addr %s679, 8
          %s681 = scalar_lea.vmem %s0, %s680
        $region44: #{tpu_custom_call.1} parent=39 // pred_fallthru
          _
        // Predicated region
        $region45: #{tpu_custom_call.1} parent=39 // pred_check
          %p682 = pneg %p90
        $region46: #{tpu_custom_call.1} parent=39 // pred_check_branch
          %684 = sbr.rel (%p682) target = $region48
        $region47: #{tpu_custom_call.1} parent=39 // pred_region
          %p685 = scmp.lt.s32.totalorder %s39, 1
          %s686 = scalar_select %p685, %s39, 1
          %s687 = scalar_lea.vmem %s1, %s686
        $region48: #{tpu_custom_call.1} parent=39 // pred_fallthru
          _
        // Predicated region
        $region49: #{tpu_custom_call.1} parent=39 // pred_check
          %p688 = pneg %p200
        $region50: #{tpu_custom_call.1} parent=39 // pred_check_branch
          %690 = sbr.rel (%p688) target = $region52
        $region51: #{tpu_custom_call.1} parent=39 // pred_region
          %p691 = scmp.lt.s32.totalorder %s40, 1
          %s692 = scalar_select %p691, %s40, 1
          %s693 = smul.addr %s692, 16
          %s694 = smul.addr %s693, 4
          %s695 = scalar_lea.vmem %s6, %s694
        $region52: #{tpu_custom_call.1} parent=39 // pred_fallthru
          _
        // Predicated region
        $region53: #{tpu_custom_call.1} parent=39 // pred_check
          %p696 = pneg %p226
        $region54: #{tpu_custom_call.1} parent=39 // pred_check_branch
          %698 = sbr.rel (%p696) target = $region56
        $region55: #{tpu_custom_call.1} parent=39 // pred_region
          %p699 = scmp.lt.s32.totalorder %s40, 1
          %s700 = scalar_select %p699, %s40, 1
          %s701 = smul.addr %s700, 16
          %s702 = smul.addr %s701, 4
          %s703 = scalar_lea.vmem %s7, %s702
        $region56: #{tpu_custom_call.1} parent=39 // pred_fallthru
          _
        // Predicated region
        $region57: #{tpu_custom_call.1} parent=39 // pred_check
          %p704 = pneg %p252
        $region58: #{tpu_custom_call.1} parent=39 // pred_check_branch
          %706 = sbr.rel (%p704) target = $region60
        $region59: #{tpu_custom_call.1} parent=39 // pred_region
          %p707 = scmp.lt.s32.totalorder %s40, 1
          %s708 = scalar_select %p707, %s40, 1
          %s709 = smul.addr %s708, 16
          %s710 = smul.addr %s709, 4
          %s711 = scalar_lea.vmem %s8, %s710
        $region60: #{tpu_custom_call.1} parent=39 // pred_fallthru
          _
        // Predicated region
        $region61: #{tpu_custom_call.1} parent=39 // pred_check
          %p712 = pneg %p278
        $region62: #{tpu_custom_call.1} parent=39 // pred_check_branch
          %714 = sbr.rel (%p712) target = $region64
        $region63: #{tpu_custom_call.1} parent=39 // pred_region
          %p715 = scmp.lt.s32.totalorder %s40, 1
          %s716 = scalar_select %p715, %s40, 1
          %s717 = smul.addr %s716, 4
          %s718 = scalar_lea.vmem %s9, %s717
        $region64: #{tpu_custom_call.1} parent=39 // pred_fallthru
          _
        // Predicated region
        $region65: #{tpu_custom_call.1} parent=39 // pred_check
          %p719 = pneg %p304
        $region66: #{tpu_custom_call.1} parent=39 // pred_check_branch
          %721 = sbr.rel (%p719) target = $region68
        $region67: #{tpu_custom_call.1} parent=39 // pred_region
          %p722 = scmp.lt.s32.totalorder %s40, 1
          %s723 = scalar_select %p722, %s40, 1
          %s724 = smul.addr %s723, 4
          %s725 = scalar_lea.vmem %s10, %s724
        $region68: #{tpu_custom_call.1} parent=39 // pred_fallthru
          _
        // Predicated region
        $region69: #{tpu_custom_call.1} parent=39 // pred_check
          %p726 = pneg %p330
        $region70: #{tpu_custom_call.1} parent=39 // pred_check_branch
          %728 = sbr.rel (%p726) target = $region72
        $region71: #{tpu_custom_call.1} parent=39 // pred_region
          %p729 = scmp.lt.s32.totalorder %s40, 1
          %s730 = scalar_select %p729, %s40, 1
          %s731 = smul.addr %s730, 4
          %s732 = scalar_lea.vmem %s11, %s731
        $region72: #{tpu_custom_call.1} parent=39 // pred_fallthru
          _
        // Predicated region
        $region73: #{tpu_custom_call.1} parent=39 // pred_check
          %p733 = pneg %p356
        $region74: #{tpu_custom_call.1} parent=39 // pred_check_branch
          %735 = sbr.rel (%p733) target = $region76
        $region75: #{tpu_custom_call.1} parent=39 // pred_region
          %p736 = scmp.lt.s32.totalorder %s40, 1
          %s737 = scalar_select %p736, %s40, 1
          %s738 = smul.addr %s737, 4
          %s739 = scalar_lea.vmem %s12, %s738
        $region76: #{tpu_custom_call.1} parent=39 // pred_fallthru
          _
        // Predicated region
        $region77: #{tpu_custom_call.1} parent=39 // pred_check
          %p740 = pneg %p382
        $region78: #{tpu_custom_call.1} parent=39 // pred_check_branch
          %742 = sbr.rel (%p740) target = $region80
        $region79: #{tpu_custom_call.1} parent=39 // pred_region
          %p743 = scmp.lt.s32.totalorder %s40, 1
          %s744 = scalar_select %p743, %s40, 1
          %s745 = scalar_lea.vmem %s13, %s744
        $region80: #{tpu_custom_call.1} parent=39 // pred_fallthru
          _
        // Predicated region
        $region81: #{tpu_custom_call.1} parent=39 // pred_check
          %p746 = pneg %p408
        $region82: #{tpu_custom_call.1} parent=39 // pred_check_branch
          %748 = sbr.rel (%p746) target = $region84
        $region83: #{tpu_custom_call.1} parent=39 // pred_region
          %p749 = scmp.lt.s32.totalorder %s40, 1
          %s750 = scalar_select %p749, %s40, 1
          %s751 = scalar_lea.vmem %s14, %s750
        $region84: #{tpu_custom_call.1} parent=39 // pred_fallthru
          _
        // Predicated region
        $region85: #{tpu_custom_call.1} parent=39 // pred_check
          %p752 = pneg %p434
        $region86: #{tpu_custom_call.1} parent=39 // pred_check_branch
          %754 = sbr.rel (%p752) target = $region88
        $region87: #{tpu_custom_call.1} parent=39 // pred_region
          %p755 = scmp.lt.s32.totalorder %s40, 1
          %s756 = scalar_select %p755, %s40, 1
          %s757 = smul.addr %s756, 4
          %s758 = smul.addr %s757, 4
          %s759 = scalar_lea.vmem %s15, %s758
        $region88: #{tpu_custom_call.1} parent=39 // pred_fallthru
          _
        // Predicated region
        $region89: #{tpu_custom_call.1} parent=39 // pred_check
          %p760 = pneg %p460
        $region90: #{tpu_custom_call.1} parent=39 // pred_check_branch
          %762 = sbr.rel (%p760) target = $region92
        $region91: #{tpu_custom_call.1} parent=39 // pred_region
          %p763 = scmp.lt.s32.totalorder %s40, 1
          %s764 = scalar_select %p763, %s40, 1
          %s765 = scalar_lea.vmem %s16, %s764
        $region92: #{tpu_custom_call.1} parent=39 // pred_fallthru
          _
        // Predicated region
        $region93: #{tpu_custom_call.1} parent=39 // pred_check
          %p766 = pneg %p486
        $region94: #{tpu_custom_call.1} parent=39 // pred_check_branch
          %768 = sbr.rel (%p766) target = $region96
        $region95: #{tpu_custom_call.1} parent=39 // pred_region
          %p769 = scmp.lt.s32.totalorder %s40, 1
          %s770 = scalar_select %p769, %s40, 1
          %s771 = smul.addr %s770, 8
          %s772 = smul.addr %s771, 4
          %s773 = scalar_lea.vmem %s17, %s772
        $region96: #{tpu_custom_call.1} parent=39 // pred_fallthru
          _
        // Predicated region
        $region97: #{tpu_custom_call.1} parent=39 // pred_check
          %p774 = pneg %p512
        $region98: #{tpu_custom_call.1} parent=39 // pred_check_branch
          %776 = sbr.rel (%p774) target = $region100
        $region99: #{tpu_custom_call.1} parent=39 // pred_region
          %p777 = scmp.lt.s32.totalorder %s40, 1
          %s778 = scalar_select %p777, %s40, 1
          %s779 = scalar_lea.vmem %s18, %s778
        $region100: #{tpu_custom_call.1} parent=39 // pred_fallthru
          _
        // Predicated region
        $region101: #{tpu_custom_call.1} parent=39 // pred_check
          %p780 = pneg %p538
        $region102: #{tpu_custom_call.1} parent=39 // pred_check_branch
          %782 = sbr.rel (%p780) target = $region104
        $region103: #{tpu_custom_call.1} parent=39 // pred_region
          %p783 = scmp.lt.s32.totalorder %s40, 1
          %s784 = scalar_select %p783, %s40, 1
          %s785 = scalar_lea.vmem %s19, %s784
        $region104: #{tpu_custom_call.1} parent=39 // pred_fallthru
          _
        // Predicated region
        $region105: #{tpu_custom_call.1} parent=39 // pred_check
          %p786 = pneg %p564
        $region106: #{tpu_custom_call.1} parent=39 // pred_check_branch
          %788 = sbr.rel (%p786) target = $region108
        $region107: #{tpu_custom_call.1} parent=39 // pred_region
          %p789 = scmp.lt.s32.totalorder %s40, 1
          %s790 = scalar_select %p789, %s40, 1
          %s791 = scalar_lea.vmem %s20, %s790
        $region108: #{tpu_custom_call.1} parent=39 // pred_fallthru
          _
      $region40: #{tpu_custom_call.1} parent=5 // pred_fallthru
        _
      %p792 = scmp.le.s32.totalorder 1, %s32
      %p793 = scmp.lt.s32.totalorder %s32, 5
      %p794 = pnand %p792, %p793
      %p795 = pneg %p794
      // Predicated region
      $region109: #{tpu_custom_call.1} parent=5 // pred_check
        _
      $region110: #{tpu_custom_call.1} parent=5 // pred_check_branch
        %797 = sbr.rel (%p794) target = $region112
      $region111: #{tpu_custom_call.1} parent=5 // pred_region
        %s798 = ssub.s32 %s32, 1
        %p799 = scmp.lt.s32.totalorder %s41, 1
        %s800 = scalar_select %p799, %s41, 1
        %s801 = smul.addr %s800, 8
        %s802 = scalar_lea.vmem %s0, %s801
        %p803 = pneg %p70
        %p804 = pneg %p67
        %p805 = scmp.lt.s32.totalorder %s41, 1
        %s806 = scalar_select %p805, %s41, 1
        %s807 = scalar_lea.vmem %s1, %s806
        %p808 = pneg %p96
        %p809 = pneg %p93
        %p810 = pneg %p117
        %p811 = pneg %p114
        %p812 = pneg %p138
        %p813 = pneg %p135
        %p814 = pneg %p159
        %p815 = pneg %p156
        %p816 = pneg %p180
        %p817 = pneg %p177
        %p818 = scmp.lt.s32.totalorder %s42, 1
        %s819 = scalar_select %p818, %s42, 1
        %s820 = smul.addr %s819, 16
        %s821 = smul.addr %s820, 4
        %s822 = scalar_lea.vmem %s6, %s821
        %p823 = pneg %p206
        %p824 = pneg %p203
        %p825 = scmp.lt.s32.totalorder %s42, 1
        %s826 = scalar_select %p825, %s42, 1
        %s827 = smul.addr %s826, 16
        %s828 = smul.addr %s827, 4
        %s829 = scalar_lea.vmem %s7, %s828
        %p830 = pneg %p232
        %p831 = pneg %p229
        %p832 = scmp.lt.s32.totalorder %s42, 1
        %s833 = scalar_select %p832, %s42, 1
        %s834 = smul.addr %s833, 16
        %s835 = smul.addr %s834, 4
        %s836 = scalar_lea.vmem %s8, %s835
        %p837 = pneg %p258
        %p838 = pneg %p255
        %p839 = scmp.lt.s32.totalorder %s42, 1
        %s840 = scalar_select %p839, %s42, 1
        %s841 = smul.addr %s840, 4
        %s842 = scalar_lea.vmem %s9, %s841
        %p843 = pneg %p284
        %p844 = pneg %p281
        %p845 = scmp.lt.s32.totalorder %s42, 1
        %s846 = scalar_select %p845, %s42, 1
        %s847 = smul.addr %s846, 4
        %s848 = scalar_lea.vmem %s10, %s847
        %p849 = pneg %p310
        %p850 = pneg %p307
        %p851 = scmp.lt.s32.totalorder %s42, 1
        %s852 = scalar_select %p851, %s42, 1
        %s853 = smul.addr %s852, 4
        %s854 = scalar_lea.vmem %s11, %s853
        %p855 = pneg %p336
        %p856 = pneg %p333
        %p857 = scmp.lt.s32.totalorder %s42, 1
        %s858 = scalar_select %p857, %s42, 1
        %s859 = smul.addr %s858, 4
        %s860 = scalar_lea.vmem %s12, %s859
        %p861 = pneg %p362
        %p862 = pneg %p359
        %p863 = scmp.lt.s32.totalorder %s42, 1
        %s864 = scalar_select %p863, %s42, 1
        %s865 = scalar_lea.vmem %s13, %s864
        %p866 = pneg %p388
        %p867 = pneg %p385
        %p868 = scmp.lt.s32.totalorder %s42, 1
        %s869 = scalar_select %p868, %s42, 1
        %s870 = scalar_lea.vmem %s14, %s869
        %p871 = pneg %p414
        %p872 = pneg %p411
        %p873 = scmp.lt.s32.totalorder %s42, 1
        %s874 = scalar_select %p873, %s42, 1
        %s875 = smul.addr %s874, 4
        %s876 = smul.addr %s875, 4
        %s877 = scalar_lea.vmem %s15, %s876
        %p878 = pneg %p440
        %p879 = pneg %p437
        %p880 = scmp.lt.s32.totalorder %s42, 1
        %s881 = scalar_select %p880, %s42, 1
        %s882 = scalar_lea.vmem %s16, %s881
        %p883 = pneg %p466
        %p884 = pneg %p463
        %p885 = scmp.lt.s32.totalorder %s42, 1
        %s886 = scalar_select %p885, %s42, 1
        %s887 = smul.addr %s886, 8
        %s888 = smul.addr %s887, 4
        %s889 = scalar_lea.vmem %s17, %s888
        %p890 = pneg %p492
        %p891 = pneg %p489
        %p892 = scmp.lt.s32.totalorder %s42, 1
        %s893 = scalar_select %p892, %s42, 1
        %s894 = scalar_lea.vmem %s18, %s893
        %p895 = pneg %p518
        %p896 = pneg %p515
        %p897 = scmp.lt.s32.totalorder %s42, 1
        %s898 = scalar_select %p897, %s42, 1
        %s899 = scalar_lea.vmem %s19, %s898
        %p900 = pneg %p544
        %p901 = pneg %p541
        %p902 = scmp.lt.s32.totalorder %s42, 1
        %s903 = scalar_select %p902, %s42, 1
        %s904 = scalar_lea.vmem %s20, %s903
        %p905 = pneg %p570
        %p906 = pneg %p567
        %p907 = pneg %p591
        %p908 = pneg %p588
        %p909 = pneg %p612
        %p910 = pneg %p609
        %p911 = pneg %p638
        %p912 = pneg %p635
        %s913 = sand.u32 %s625, 1
        %s914 = scalar_lea.sflag [#allocation4], %s913
        %s915 = sand.u32 %s625, 1
        %s916 = smul.addr %s915, 8
        %s917 = scalar_lea.vmem [#allocation3], %s916
        %p918 = scmp.lt.s32.totalorder %s41, 1
        %s919 = scalar_select %p918, %s41, 1
        %s920 = smul.addr %s919, 8
        %s921 = scalar_lea.vmem %s0, %s920
        %p922 = scmp.lt.s32.totalorder %s41, 1
        %s923 = scalar_select %p922, %s41, 1
        %s924 = scalar_lea.vmem %s1, %s923
        %p925 = scmp.lt.s32.totalorder %s42, 1
        %s926 = scalar_select %p925, %s42, 1
        %s927 = smul.addr %s926, 16
        %s928 = smul.addr %s927, 4
        %s929 = scalar_lea.vmem %s6, %s928
        %p930 = scmp.lt.s32.totalorder %s42, 1
        %s931 = scalar_select %p930, %s42, 1
        %s932 = smul.addr %s931, 16
        %s933 = smul.addr %s932, 4
        %s934 = scalar_lea.vmem %s7, %s933
        %p935 = scmp.lt.s32.totalorder %s42, 1
        %s936 = scalar_select %p935, %s42, 1
        %s937 = smul.addr %s936, 16
        %s938 = smul.addr %s937, 4
        %s939 = scalar_lea.vmem %s8, %s938
        %p940 = scmp.lt.s32.totalorder %s42, 1
        %s941 = scalar_select %p940, %s42, 1
        %s942 = smul.addr %s941, 4
        %s943 = scalar_lea.vmem %s9, %s942
        %p944 = scmp.lt.s32.totalorder %s42, 1
        %s945 = scalar_select %p944, %s42, 1
        %s946 = smul.addr %s945, 4
        %s947 = scalar_lea.vmem %s10, %s946
        %p948 = scmp.lt.s32.totalorder %s42, 1
        %s949 = scalar_select %p948, %s42, 1
        %s950 = smul.addr %s949, 4
        %s951 = scalar_lea.vmem %s11, %s950
        %p952 = scmp.lt.s32.totalorder %s42, 1
        %s953 = scalar_select %p952, %s42, 1
        %s954 = smul.addr %s953, 4
        %s955 = scalar_lea.vmem %s12, %s954
        %p956 = scmp.lt.s32.totalorder %s42, 1
        %s957 = scalar_select %p956, %s42, 1
        %s958 = scalar_lea.vmem %s13, %s957
        %p959 = scmp.lt.s32.totalorder %s42, 1
        %s960 = scalar_select %p959, %s42, 1
        %s961 = scalar_lea.vmem %s14, %s960
        %p962 = scmp.lt.s32.totalorder %s42, 1
        %s963 = scalar_select %p962, %s42, 1
        %s964 = smul.addr %s963, 4
        %s965 = smul.addr %s964, 4
        %s966 = scalar_lea.vmem %s15, %s965
        %p967 = scmp.lt.s32.totalorder %s42, 1
        %s968 = scalar_select %p967, %s42, 1
        %s969 = scalar_lea.vmem %s16, %s968
        %p970 = scmp.lt.s32.totalorder %s42, 1
        %s971 = scalar_select %p970, %s42, 1
        %s972 = smul.addr %s971, 8
        %s973 = smul.addr %s972, 4
        %s974 = scalar_lea.vmem %s17, %s973
        %p975 = scmp.lt.s32.totalorder %s42, 1
        %s976 = scalar_select %p975, %s42, 1
        %s977 = scalar_lea.vmem %s18, %s976
        %p978 = scmp.lt.s32.totalorder %s42, 1
        %s979 = scalar_select %p978, %s42, 1
        %s980 = scalar_lea.vmem %s19, %s979
        %p981 = scmp.lt.s32.totalorder %s42, 1
        %s982 = scalar_select %p981, %s42, 1
        %s983 = scalar_lea.vmem %s20, %s982
        %p985 = scmp.eq.s32.totalorder %s42, 0
        // Predicated region
        $region113: #{tpu_custom_call.1} parent=111 // pred_check
          %p986 = pneg %p985
        $region114: #{tpu_custom_call.1} parent=111 // pred_check_branch
          %988 = sbr.rel (%p986) target = $region116
        $region115: #{tpu_custom_call.1} parent=111 // pred_region
          %v989 = vld [vmem:[%s921] sm:$0xff]
          %vm990 = vcmask 261120
          %991 = vst.msk [vmem:[#allocation2] sm:$0xff] %vm990, %v989
        $region116: #{tpu_custom_call.1} parent=111 // pred_fallthru
          _
        %v992 = vld [vmem:[#allocation2] sm:$0xff]
        %v993 = vld [vmem:[%s924] sm:$0x1]
        %v994 = vld [vmem:[%s2] sm:$0xff]
        %v995 = vld [vmem:[%s3] sm:$0xff]
        %v996 = vpack.c.bf16 %v992, %v992
        %v997 = vld [vmem:[%s929] sm:$0xf]
        %v998 = vld [vmem:[%s929 + $0x4] sm:$0xf]
        %v999 = vld [vmem:[%s929 + $0x8] sm:$0xf]
        %v1000 = vld [vmem:[%s929 + $0xc] sm:$0xf]
        %v1001 = vld [vmem:[%s929 + $0x10] sm:$0xf]
        %v1002 = vld [vmem:[%s929 + $0x14] sm:$0xf]
        %v1003 = vld [vmem:[%s929 + $0x18] sm:$0xf]
        %v1004 = vld [vmem:[%s929 + $0x1c] sm:$0xf]
        %v1005 = vld [vmem:[%s929 + $0x20] sm:$0xf]
        %v1006 = vld [vmem:[%s929 + $0x24] sm:$0xf]
        %v1007 = vld [vmem:[%s929 + $0x28] sm:$0xf]
        %v1008 = vld [vmem:[%s929 + $0x2c] sm:$0xf]
        %v1009 = vld [vmem:[%s929 + $0x30] sm:$0xf]
        %v1010 = vld [vmem:[%s929 + $0x34] sm:$0xf]
        %v1011 = vld [vmem:[%s929 + $0x38] sm:$0xf]
        %v1012 = vld [vmem:[%s929 + $0x3c] sm:$0xf]
        %v1017 = vunpack.c.l.b16 %v997
        %v1018 = vunpack.c.l.b16 %v998
        %v1019 = vunpack.c.l.b16 %v999
        %v1020 = vunpack.c.l.b16 %v1000
        %v1021 = vpack.c.b16 %v1018, %v1017
        %v1022 = vpack.c.b16 %v1020, %v1019
        %vm1025 = vcmask 261120
        %v1027 = vsel %vm1025, %v996, 0
        %1029 = vmatprep.subr.bf16.mxu0 0
        %1030 = vmatpush1.bf16.msra.mxu0 %v1021
        %1031 = vmatprep.subr.bf16.mxu0 0
        %1032 = vmatpush1.bf16.msra.mxu0 %v1022
        %1033 = vmatprep.subr.bf16.mxu0 0
        %1034 = vmatpush1.bf16.msra.mxu0 0
        %1035 = vmatprep.subr.bf16.mxu0 0
        %1036 = vmatpush1.bf16.msra.mxu0 0
        %1037 = vmatprep.subr.bf16.mxu0 0
        %1038 = vmatpush1.bf16.msra.mxu0 0
        %1039 = vmatprep.subr.bf16.mxu0 0
        %1040 = vmatpush1.bf16.msra.mxu0 0
        %1041 = vmatprep.subr.bf16.mxu0 0
        %1042 = vmatpush1.bf16.msra.mxu0 0
        %1043 = vmatprep.subr.bf16.mxu0 0
        %1044 = vmatpush1.bf16.msra.mxu0 0
        %1045 = vmatprep.subr.bf16.mxu0 0
        %1046 = vmatpush1.bf16.msra.mxu0 0
        %1047 = vmatprep.subr.bf16.mxu0 0
        %1048 = vmatpush1.bf16.msra.mxu0 0
        %1049 = vmatprep.subr.bf16.mxu0 0
        %1050 = vmatpush1.bf16.msra.mxu0 0
        %1051 = vmatprep.subr.bf16.mxu0 0
        %1052 = vmatpush1.bf16.msra.mxu0 0
        %1053 = vmatprep.subr.bf16.mxu0 0
        %1054 = vmatpush1.bf16.msra.mxu0 0
        %1055 = vmatprep.subr.bf16.mxu0 0
        %1056 = vmatpush1.bf16.msra.mxu0 0
        %1057 = vmatprep.subr.bf16.mxu0 0
        %1058 = vmatpush1.bf16.msra.mxu0 0
        %1059 = vmatprep.subr.bf16.mxu0 0
        %1060 = vmatpush1.bf16.msra.mxu0 0
        %1061 = vmatprep.mubr.bf16.mxu0 0
        %1062 = vmatmul.mubr.bf16.gmra.mrb[0].mxu0 %v1027
        %v1063 = vpop.f32.mrb[0].mxu0
        %v1064 = vadd.f32 0.0, %v1063
        %v1065 = vpop.f32.mrb[0].mxu0
        %v1066 = vpop.f32.mrb[0].mxu0
        %v1067 = vpop.f32.mrb[0].mxu0
        %1068 = vdwg.mxu0
        %v1073 = vunpack.c.l.b16 %v1001
        %v1074 = vunpack.c.l.b16 %v1002
        %v1075 = vunpack.c.l.b16 %v1003
        %v1076 = vunpack.c.l.b16 %v1004
        %v1077 = vpack.c.b16 %v1074, %v1073
        %v1078 = vpack.c.b16 %v1076, %v1075
        %1081 = vmatprep.subr.bf16.mxu0 0
        %1082 = vmatpush1.bf16.msra.mxu0 %v1077
        %1083 = vmatprep.subr.bf16.mxu0 0
        %1084 = vmatpush1.bf16.msra.mxu0 %v1078
        %1085 = vmatprep.subr.bf16.mxu0 0
        %1086 = vmatpush1.bf16.msra.mxu0 0
        %1087 = vmatprep.subr.bf16.mxu0 0
        %1088 = vmatpush1.bf16.msra.mxu0 0
        %1089 = vmatprep.subr.bf16.mxu0 0
        %1090 = vmatpush1.bf16.msra.mxu0 0
        %1091 = vmatprep.subr.bf16.mxu0 0
        %1092 = vmatpush1.bf16.msra.mxu0 0
        %1093 = vmatprep.subr.bf16.mxu0 0
        %1094 = vmatpush1.bf16.msra.mxu0 0
        %1095 = vmatprep.subr.bf16.mxu0 0
        %1096 = vmatpush1.bf16.msra.mxu0 0
        %1097 = vmatprep.subr.bf16.mxu0 0
        %1098 = vmatpush1.bf16.msra.mxu0 0
        %1099 = vmatprep.subr.bf16.mxu0 0
        %1100 = vmatpush1.bf16.msra.mxu0 0
        %1101 = vmatprep.subr.bf16.mxu0 0
        %1102 = vmatpush1.bf16.msra.mxu0 0
        %1103 = vmatprep.subr.bf16.mxu0 0
        %1104 = vmatpush1.bf16.msra.mxu0 0
        %1105 = vmatprep.subr.bf16.mxu0 0
        %1106 = vmatpush1.bf16.msra.mxu0 0
        %1107 = vmatprep.subr.bf16.mxu0 0
        %1108 = vmatpush1.bf16.msra.mxu0 0
        %1109 = vmatprep.subr.bf16.mxu0 0
        %1110 = vmatpush1.bf16.msra.mxu0 0
        %1111 = vmatprep.subr.bf16.mxu0 0
        %1112 = vmatpush1.bf16.msra.mxu0 0
        %1113 = vmatprep.mubr.bf16.mxu0 0
        %1114 = vmatmul.mubr.bf16.gmra.mrb[0].mxu0 %v1027
        %v1115 = vpop.f32.mrb[0].mxu0
        %v1116 = vadd.f32 0.0, %v1115
        %v1117 = vpop.f32.mrb[0].mxu0
        %v1118 = vpop.f32.mrb[0].mxu0
        %v1119 = vpop.f32.mrb[0].mxu0
        %1120 = vdwg.mxu0
        %v1125 = vunpack.c.l.b16 %v1005
        %v1126 = vunpack.c.l.b16 %v1006
        %v1127 = vunpack.c.l.b16 %v1007
        %v1128 = vunpack.c.l.b16 %v1008
        %v1129 = vpack.c.b16 %v1126, %v1125
        %v1130 = vpack.c.b16 %v1128, %v1127
        %1133 = vmatprep.subr.bf16.mxu0 0
        %1134 = vmatpush1.bf16.msra.mxu0 %v1129
        %1135 = vmatprep.subr.bf16.mxu0 0
        %1136 = vmatpush1.bf16.msra.mxu0 %v1130
        %1137 = vmatprep.subr.bf16.mxu0 0
        %1138 = vmatpush1.bf16.msra.mxu0 0
        %1139 = vmatprep.subr.bf16.mxu0 0
        %1140 = vmatpush1.bf16.msra.mxu0 0
        %1141 = vmatprep.subr.bf16.mxu0 0
        %1142 = vmatpush1.bf16.msra.mxu0 0
        %1143 = vmatprep.subr.bf16.mxu0 0
        %1144 = vmatpush1.bf16.msra.mxu0 0
        %1145 = vmatprep.subr.bf16.mxu0 0
        %1146 = vmatpush1.bf16.msra.mxu0 0
        %1147 = vmatprep.subr.bf16.mxu0 0
        %1148 = vmatpush1.bf16.msra.mxu0 0
        %1149 = vmatprep.subr.bf16.mxu0 0
        %1150 = vmatpush1.bf16.msra.mxu0 0
        %1151 = vmatprep.subr.bf16.mxu0 0
        %1152 = vmatpush1.bf16.msra.mxu0 0
        %1153 = vmatprep.subr.bf16.mxu0 0
        %1154 = vmatpush1.bf16.msra.mxu0 0
        %1155 = vmatprep.subr.bf16.mxu0 0
        %1156 = vmatpush1.bf16.msra.mxu0 0
        %1157 = vmatprep.subr.bf16.mxu0 0
        %1158 = vmatpush1.bf16.msra.mxu0 0
        %1159 = vmatprep.subr.bf16.mxu0 0
        %1160 = vmatpush1.bf16.msra.mxu0 0
        %1161 = vmatprep.subr.bf16.mxu0 0
        %1162 = vmatpush1.bf16.msra.mxu0 0
        %1163 = vmatprep.subr.bf16.mxu0 0
        %1164 = vmatpush1.bf16.msra.mxu0 0
        %1165 = vmatprep.mubr.bf16.mxu0 0
        %1166 = vmatmul.mubr.bf16.gmra.mrb[0].mxu0 %v1027
        %v1167 = vpop.f32.mrb[0].mxu0
        %v1168 = vadd.f32 0.0, %v1167
        %v1169 = vpop.f32.mrb[0].mxu0
        %v1170 = vpop.f32.mrb[0].mxu0
        %v1171 = vpop.f32.mrb[0].mxu0
        %1172 = vdwg.mxu0
        %v1177 = vunpack.c.l.b16 %v1009
        %v1178 = vunpack.c.l.b16 %v1010
        %v1179 = vunpack.c.l.b16 %v1011
        %v1180 = vunpack.c.l.b16 %v1012
        %v1181 = vpack.c.b16 %v1178, %v1177
        %v1182 = vpack.c.b16 %v1180, %v1179
        %1185 = vmatprep.subr.bf16.mxu0 0
        %1186 = vmatpush1.bf16.msra.mxu0 %v1181
        %1187 = vmatprep.subr.bf16.mxu0 0
        %1188 = vmatpush1.bf16.msra.mxu0 %v1182
        %1189 = vmatprep.subr.bf16.mxu0 0
        %1190 = vmatpush1.bf16.msra.mxu0 0
        %1191 = vmatprep.subr.bf16.mxu0 0
        %1192 = vmatpush1.bf16.msra.mxu0 0
        %1193 = vmatprep.subr.bf16.mxu0 0
        %1194 = vmatpush1.bf16.msra.mxu0 0
        %1195 = vmatprep.subr.bf16.mxu0 0
        %1196 = vmatpush1.bf16.msra.mxu0 0
        %1197 = vmatprep.subr.bf16.mxu0 0
        %1198 = vmatpush1.bf16.msra.mxu0 0
        %1199 = vmatprep.subr.bf16.mxu0 0
        %1200 = vmatpush1.bf16.msra.mxu0 0
        %1201 = vmatprep.subr.bf16.mxu0 0
        %1202 = vmatpush1.bf16.msra.mxu0 0
        %1203 = vmatprep.subr.bf16.mxu0 0
        %1204 = vmatpush1.bf16.msra.mxu0 0
        %1205 = vmatprep.subr.bf16.mxu0 0
        %1206 = vmatpush1.bf16.msra.mxu0 0
        %1207 = vmatprep.subr.bf16.mxu0 0
        %1208 = vmatpush1.bf16.msra.mxu0 0
        %1209 = vmatprep.subr.bf16.mxu0 0
        %1210 = vmatpush1.bf16.msra.mxu0 0
        %1211 = vmatprep.subr.bf16.mxu0 0
        %1212 = vmatpush1.bf16.msra.mxu0 0
        %1213 = vmatprep.subr.bf16.mxu0 0
        %1214 = vmatpush1.bf16.msra.mxu0 0
        %1215 = vmatprep.subr.bf16.mxu0 0
        %1216 = vmatpush1.bf16.msra.mxu0 0
        %1217 = vmatprep.mubr.bf16.mxu0 0
        %1218 = vmatmul.mubr.bf16.gmra.mrb[0].mxu0 %v1027
        %v1219 = vpop.f32.mrb[0].mxu0
        %v1220 = vadd.f32 0.0, %v1219
        %v1221 = vpop.f32.mrb[0].mxu0
        %v1222 = vpop.f32.mrb[0].mxu0
        %v1223 = vpop.f32.mrb[0].mxu0
        %1224 = vdwg.mxu0
        %v1225 = vld [vmem:[%s934] sm:$0xf]
        %v1226 = vld [vmem:[%s934 + $0x4] sm:$0xf]
        %v1227 = vld [vmem:[%s934 + $0x8] sm:$0xf]
        %v1228 = vld [vmem:[%s934 + $0xc] sm:$0xf]
        %v1229 = vld [vmem:[%s934 + $0x10] sm:$0xf]
        %v1230 = vld [vmem:[%s934 + $0x14] sm:$0xf]
        %v1231 = vld [vmem:[%s934 + $0x18] sm:$0xf]
        %v1232 = vld [vmem:[%s934 + $0x1c] sm:$0xf]
        %v1233 = vld [vmem:[%s934 + $0x20] sm:$0xf]
        %v1234 = vld [vmem:[%s934 + $0x24] sm:$0xf]
        %v1235 = vld [vmem:[%s934 + $0x28] sm:$0xf]
        %v1236 = vld [vmem:[%s934 + $0x2c] sm:$0xf]
        %v1237 = vld [vmem:[%s934 + $0x30] sm:$0xf]
        %v1238 = vld [vmem:[%s934 + $0x34] sm:$0xf]
        %v1239 = vld [vmem:[%s934 + $0x38] sm:$0xf]
        %v1240 = vld [vmem:[%s934 + $0x3c] sm:$0xf]
        %v1245 = vunpack.c.l.b16 %v1225
        %v1246 = vunpack.c.l.b16 %v1226
        %v1247 = vunpack.c.l.b16 %v1227
        %v1248 = vunpack.c.l.b16 %v1228
        %v1249 = vpack.c.b16 %v1246, %v1245
        %v1250 = vpack.c.b16 %v1248, %v1247
        %1253 = vmatprep.subr.bf16.mxu0 0
        %1254 = vmatpush1.bf16.msra.mxu0 %v1249
        %1255 = vmatprep.subr.bf16.mxu0 0
        %1256 = vmatpush1.bf16.msra.mxu0 %v1250
        %1257 = vmatprep.subr.bf16.mxu0 0
        %1258 = vmatpush1.bf16.msra.mxu0 0
        %1259 = vmatprep.subr.bf16.mxu0 0
        %1260 = vmatpush1.bf16.msra.mxu0 0
        %1261 = vmatprep.subr.bf16.mxu0 0
        %1262 = vmatpush1.bf16.msra.mxu0 0
        %1263 = vmatprep.subr.bf16.mxu0 0
        %1264 = vmatpush1.bf16.msra.mxu0 0
        %1265 = vmatprep.subr.bf16.mxu0 0
        %1266 = vmatpush1.bf16.msra.mxu0 0
        %1267 = vmatprep.subr.bf16.mxu0 0
        %1268 = vmatpush1.bf16.msra.mxu0 0
        %1269 = vmatprep.subr.bf16.mxu0 0
        %1270 = vmatpush1.bf16.msra.mxu0 0
        %1271 = vmatprep.subr.bf16.mxu0 0
        %1272 = vmatpush1.bf16.msra.mxu0 0
        %1273 = vmatprep.subr.bf16.mxu0 0
        %1274 = vmatpush1.bf16.msra.mxu0 0
        %1275 = vmatprep.subr.bf16.mxu0 0
        %1276 = vmatpush1.bf16.msra.mxu0 0
        %1277 = vmatprep.subr.bf16.mxu0 0
        %1278 = vmatpush1.bf16.msra.mxu0 0
        %1279 = vmatprep.subr.bf16.mxu0 0
        %1280 = vmatpush1.bf16.msra.mxu0 0
        %1281 = vmatprep.subr.bf16.mxu0 0
        %1282 = vmatpush1.bf16.msra.mxu0 0
        %1283 = vmatprep.subr.bf16.mxu0 0
        %1284 = vmatpush1.bf16.msra.mxu0 0
        %1285 = vmatprep.mubr.bf16.mxu0 0
        %1286 = vmatmul.mubr.bf16.gmra.mrb[0].mxu0 %v1027
        %v1287 = vpop.f32.mrb[0].mxu0
        %v1288 = vadd.f32 0.0, %v1287
        %v1289 = vpop.f32.mrb[0].mxu0
        %v1290 = vpop.f32.mrb[0].mxu0
        %v1291 = vpop.f32.mrb[0].mxu0
        %1292 = vdwg.mxu0
        %v1297 = vunpack.c.l.b16 %v1229
        %v1298 = vunpack.c.l.b16 %v1230
        %v1299 = vunpack.c.l.b16 %v1231
        %v1300 = vunpack.c.l.b16 %v1232
        %v1301 = vpack.c.b16 %v1298, %v1297
        %v1302 = vpack.c.b16 %v1300, %v1299
        %1305 = vmatprep.subr.bf16.mxu0 0
        %1306 = vmatpush1.bf16.msra.mxu0 %v1301
        %1307 = vmatprep.subr.bf16.mxu0 0
        %1308 = vmatpush1.bf16.msra.mxu0 %v1302
        %1309 = vmatprep.subr.bf16.mxu0 0
        %1310 = vmatpush1.bf16.msra.mxu0 0
        %1311 = vmatprep.subr.bf16.mxu0 0
        %1312 = vmatpush1.bf16.msra.mxu0 0
        %1313 = vmatprep.subr.bf16.mxu0 0
        %1314 = vmatpush1.bf16.msra.mxu0 0
        %1315 = vmatprep.subr.bf16.mxu0 0
        %1316 = vmatpush1.bf16.msra.mxu0 0
        %1317 = vmatprep.subr.bf16.mxu0 0
        %1318 = vmatpush1.bf16.msra.mxu0 0
        %1319 = vmatprep.subr.bf16.mxu0 0
        %1320 = vmatpush1.bf16.msra.mxu0 0
        %1321 = vmatprep.subr.bf16.mxu0 0
        %1322 = vmatpush1.bf16.msra.mxu0 0
        %1323 = vmatprep.subr.bf16.mxu0 0
        %1324 = vmatpush1.bf16.msra.mxu0 0
        %1325 = vmatprep.subr.bf16.mxu0 0
        %1326 = vmatpush1.bf16.msra.mxu0 0
        %1327 = vmatprep.subr.bf16.mxu0 0
        %1328 = vmatpush1.bf16.msra.mxu0 0
        %1329 = vmatprep.subr.bf16.mxu0 0
        %1330 = vmatpush1.bf16.msra.mxu0 0
        %1331 = vmatprep.subr.bf16.mxu0 0
        %1332 = vmatpush1.bf16.msra.mxu0 0
        %1333 = vmatprep.subr.bf16.mxu0 0
        %1334 = vmatpush1.bf16.msra.mxu0 0
        %1335 = vmatprep.subr.bf16.mxu0 0
        %1336 = vmatpush1.bf16.msra.mxu0 0
        %1337 = vmatprep.mubr.bf16.mxu0 0
        %1338 = vmatmul.mubr.bf16.gmra.mrb[0].mxu0 %v1027
        %v1339 = vpop.f32.mrb[0].mxu0
        %v1340 = vadd.f32 0.0, %v1339
        %v1341 = vpop.f32.mrb[0].mxu0
        %v1342 = vpop.f32.mrb[0].mxu0
        %v1343 = vpop.f32.mrb[0].mxu0
        %1344 = vdwg.mxu0
        %v1349 = vunpack.c.l.b16 %v1233
        %v1350 = vunpack.c.l.b16 %v1234
        %v1351 = vunpack.c.l.b16 %v1235
        %v1352 = vunpack.c.l.b16 %v1236
        %v1353 = vpack.c.b16 %v1350, %v1349
        %v1354 = vpack.c.b16 %v1352, %v1351
        %1357 = vmatprep.subr.bf16.mxu0 0
        %1358 = vmatpush1.bf16.msra.mxu0 %v1353
        %1359 = vmatprep.subr.bf16.mxu0 0
        %1360 = vmatpush1.bf16.msra.mxu0 %v1354
        %1361 = vmatprep.subr.bf16.mxu0 0
        %1362 = vmatpush1.bf16.msra.mxu0 0
        %1363 = vmatprep.subr.bf16.mxu0 0
        %1364 = vmatpush1.bf16.msra.mxu0 0
        %1365 = vmatprep.subr.bf16.mxu0 0
        %1366 = vmatpush1.bf16.msra.mxu0 0
        %1367 = vmatprep.subr.bf16.mxu0 0
        %1368 = vmatpush1.bf16.msra.mxu0 0
        %1369 = vmatprep.subr.bf16.mxu0 0
        %1370 = vmatpush1.bf16.msra.mxu0 0
        %1371 = vmatprep.subr.bf16.mxu0 0
        %1372 = vmatpush1.bf16.msra.mxu0 0
        %1373 = vmatprep.subr.bf16.mxu0 0
        %1374 = vmatpush1.bf16.msra.mxu0 0
        %1375 = vmatprep.subr.bf16.mxu0 0
        %1376 = vmatpush1.bf16.msra.mxu0 0
        %1377 = vmatprep.subr.bf16.mxu0 0
        %1378 = vmatpush1.bf16.msra.mxu0 0
        %1379 = vmatprep.subr.bf16.mxu0 0
        %1380 = vmatpush1.bf16.msra.mxu0 0
        %1381 = vmatprep.subr.bf16.mxu0 0
        %1382 = vmatpush1.bf16.msra.mxu0 0
        %1383 = vmatprep.subr.bf16.mxu0 0
        %1384 = vmatpush1.bf16.msra.mxu0 0
        %1385 = vmatprep.subr.bf16.mxu0 0
        %1386 = vmatpush1.bf16.msra.mxu0 0
        %1387 = vmatprep.subr.bf16.mxu0 0
        %1388 = vmatpush1.bf16.msra.mxu0 0
        %1389 = vmatprep.mubr.bf16.mxu0 0
        %1390 = vmatmul.mubr.bf16.gmra.mrb[0].mxu0 %v1027
        %v1391 = vpop.f32.mrb[0].mxu0
        %v1392 = vadd.f32 0.0, %v1391
        %v1393 = vpop.f32.mrb[0].mxu0
        %v1394 = vpop.f32.mrb[0].mxu0
        %v1395 = vpop.f32.mrb[0].mxu0
        %1396 = vdwg.mxu0
        %v1401 = vunpack.c.l.b16 %v1237
        %v1402 = vunpack.c.l.b16 %v1238
        %v1403 = vunpack.c.l.b16 %v1239
        %v1404 = vunpack.c.l.b16 %v1240
        %v1405 = vpack.c.b16 %v1402, %v1401
        %v1406 = vpack.c.b16 %v1404, %v1403
        %1409 = vmatprep.subr.bf16.mxu0 0
        %1410 = vmatpush1.bf16.msra.mxu0 %v1405
        %1411 = vmatprep.subr.bf16.mxu0 0
        %1412 = vmatpush1.bf16.msra.mxu0 %v1406
        %1413 = vmatprep.subr.bf16.mxu0 0
        %1414 = vmatpush1.bf16.msra.mxu0 0
        %1415 = vmatprep.subr.bf16.mxu0 0
        %1416 = vmatpush1.bf16.msra.mxu0 0
        %1417 = vmatprep.subr.bf16.mxu0 0
        %1418 = vmatpush1.bf16.msra.mxu0 0
        %1419 = vmatprep.subr.bf16.mxu0 0
        %1420 = vmatpush1.bf16.msra.mxu0 0
        %1421 = vmatprep.subr.bf16.mxu0 0
        %1422 = vmatpush1.bf16.msra.mxu0 0
        %1423 = vmatprep.subr.bf16.mxu0 0
        %1424 = vmatpush1.bf16.msra.mxu0 0
        %1425 = vmatprep.subr.bf16.mxu0 0
        %1426 = vmatpush1.bf16.msra.mxu0 0
        %1427 = vmatprep.subr.bf16.mxu0 0
        %1428 = vmatpush1.bf16.msra.mxu0 0
        %1429 = vmatprep.subr.bf16.mxu0 0
        %1430 = vmatpush1.bf16.msra.mxu0 0
        %1431 = vmatprep.subr.bf16.mxu0 0
        %1432 = vmatpush1.bf16.msra.mxu0 0
        %1433 = vmatprep.subr.bf16.mxu0 0
        %1434 = vmatpush1.bf16.msra.mxu0 0
        %1435 = vmatprep.subr.bf16.mxu0 0
        %1436 = vmatpush1.bf16.msra.mxu0 0
        %1437 = vmatprep.subr.bf16.mxu0 0
        %1438 = vmatpush1.bf16.msra.mxu0 0
        %1439 = vmatprep.subr.bf16.mxu0 0
        %1440 = vmatpush1.bf16.msra.mxu0 0
        %1441 = vmatprep.mubr.bf16.mxu0 0
        %1442 = vmatmul.mubr.bf16.gmra.mrb[0].mxu0 %v1027
        %v1443 = vpop.f32.mrb[0].mxu0
        %v1444 = vadd.f32 0.0, %v1443
        %v1445 = vpop.f32.mrb[0].mxu0
        %v1446 = vpop.f32.mrb[0].mxu0
        %v1447 = vpop.f32.mrb[0].mxu0
        %1448 = vdwg.mxu0
        %v1449 = vld [vmem:[%s4] sm:$0xf]
        %v1450 = vld [vmem:[%s4 + $0x4] sm:$0xf]
        %v1451 = vld [vmem:[%s4 + $0x8] sm:$0xf]
        %v1452 = vld [vmem:[%s4 + $0xc] sm:$0xf]
        %v1453 = vld [vmem:[%s4 + $0x10] sm:$0xf]
        %v1454 = vld [vmem:[%s4 + $0x14] sm:$0xf]
        %v1455 = vld [vmem:[%s4 + $0x18] sm:$0xf]
        %v1456 = vld [vmem:[%s4 + $0x1c] sm:$0xf]
        %v1457 = vld [vmem:[%s4 + $0x20] sm:$0xf]
        %v1458 = vld [vmem:[%s4 + $0x24] sm:$0xf]
        %v1459 = vld [vmem:[%s4 + $0x28] sm:$0xf]
        %v1460 = vld [vmem:[%s4 + $0x2c] sm:$0xf]
        %v1461 = vld [vmem:[%s4 + $0x30] sm:$0xf]
        %v1462 = vld [vmem:[%s4 + $0x34] sm:$0xf]
        %v1463 = vld [vmem:[%s4 + $0x38] sm:$0xf]
        %v1464 = vld [vmem:[%s4 + $0x3c] sm:$0xf]
        %v1469 = vunpack.c.l.b16 %v1449
        %v1470 = vunpack.c.l.b16 %v1450
        %v1471 = vunpack.c.l.b16 %v1451
        %v1472 = vunpack.c.l.b16 %v1452
        %v1473 = vpack.c.b16 %v1470, %v1469
        %v1474 = vpack.c.b16 %v1472, %v1471
        %1477 = vmatprep.subr.bf16.mxu0 0
        %1478 = vmatpush1.bf16.msra.mxu0 %v1473
        %1479 = vmatprep.subr.bf16.mxu0 0
        %1480 = vmatpush1.bf16.msra.mxu0 %v1474
        %1481 = vmatprep.subr.bf16.mxu0 0
        %1482 = vmatpush1.bf16.msra.mxu0 0
        %1483 = vmatprep.subr.bf16.mxu0 0
        %1484 = vmatpush1.bf16.msra.mxu0 0
        %1485 = vmatprep.subr.bf16.mxu0 0
        %1486 = vmatpush1.bf16.msra.mxu0 0
        %1487 = vmatprep.subr.bf16.mxu0 0
        %1488 = vmatpush1.bf16.msra.mxu0 0
        %1489 = vmatprep.subr.bf16.mxu0 0
        %1490 = vmatpush1.bf16.msra.mxu0 0
        %1491 = vmatprep.subr.bf16.mxu0 0
        %1492 = vmatpush1.bf16.msra.mxu0 0
        %1493 = vmatprep.subr.bf16.mxu0 0
        %1494 = vmatpush1.bf16.msra.mxu0 0
        %1495 = vmatprep.subr.bf16.mxu0 0
        %1496 = vmatpush1.bf16.msra.mxu0 0
        %1497 = vmatprep.subr.bf16.mxu0 0
        %1498 = vmatpush1.bf16.msra.mxu0 0
        %1499 = vmatprep.subr.bf16.mxu0 0
        %1500 = vmatpush1.bf16.msra.mxu0 0
        %1501 = vmatprep.subr.bf16.mxu0 0
        %1502 = vmatpush1.bf16.msra.mxu0 0
        %1503 = vmatprep.subr.bf16.mxu0 0
        %1504 = vmatpush1.bf16.msra.mxu0 0
        %1505 = vmatprep.subr.bf16.mxu0 0
        %1506 = vmatpush1.bf16.msra.mxu0 0
        %1507 = vmatprep.subr.bf16.mxu0 0
        %1508 = vmatpush1.bf16.msra.mxu0 0
        %1509 = vmatprep.mubr.bf16.mxu0 0
        %1510 = vmatmul.mubr.bf16.gmra.mrb[0].mxu0 %v1027
        %v1511 = vpop.f32.mrb[0].mxu0
        %v1512 = vadd.f32 0.0, %v1511
        %v1513 = vpop.f32.mrb[0].mxu0
        %v1514 = vpop.f32.mrb[0].mxu0
        %v1515 = vpop.f32.mrb[0].mxu0
        %1516 = vdwg.mxu0
        %v1521 = vunpack.c.l.b16 %v1453
        %v1522 = vunpack.c.l.b16 %v1454
        %v1523 = vunpack.c.l.b16 %v1455
        %v1524 = vunpack.c.l.b16 %v1456
        %v1525 = vpack.c.b16 %v1522, %v1521
        %v1526 = vpack.c.b16 %v1524, %v1523
        %1529 = vmatprep.subr.bf16.mxu0 0
        %1530 = vmatpush1.bf16.msra.mxu0 %v1525
        %1531 = vmatprep.subr.bf16.mxu0 0
        %1532 = vmatpush1.bf16.msra.mxu0 %v1526
        %1533 = vmatprep.subr.bf16.mxu0 0
        %1534 = vmatpush1.bf16.msra.mxu0 0
        %1535 = vmatprep.subr.bf16.mxu0 0
        %1536 = vmatpush1.bf16.msra.mxu0 0
        %1537 = vmatprep.subr.bf16.mxu0 0
        %1538 = vmatpush1.bf16.msra.mxu0 0
        %1539 = vmatprep.subr.bf16.mxu0 0
        %1540 = vmatpush1.bf16.msra.mxu0 0
        %1541 = vmatprep.subr.bf16.mxu0 0
        %1542 = vmatpush1.bf16.msra.mxu0 0
        %1543 = vmatprep.subr.bf16.mxu0 0
        %1544 = vmatpush1.bf16.msra.mxu0 0
        %1545 = vmatprep.subr.bf16.mxu0 0
        %1546 = vmatpush1.bf16.msra.mxu0 0
        %1547 = vmatprep.subr.bf16.mxu0 0
        %1548 = vmatpush1.bf16.msra.mxu0 0
        %1549 = vmatprep.subr.bf16.mxu0 0
        %1550 = vmatpush1.bf16.msra.mxu0 0
        %1551 = vmatprep.subr.bf16.mxu0 0
        %1552 = vmatpush1.bf16.msra.mxu0 0
        %1553 = vmatprep.subr.bf16.mxu0 0
        %1554 = vmatpush1.bf16.msra.mxu0 0
        %1555 = vmatprep.subr.bf16.mxu0 0
        %1556 = vmatpush1.bf16.msra.mxu0 0
        %1557 = vmatprep.subr.bf16.mxu0 0
        %1558 = vmatpush1.bf16.msra.mxu0 0
        %1559 = vmatprep.subr.bf16.mxu0 0
        %1560 = vmatpush1.bf16.msra.mxu0 0
        %1561 = vmatprep.mubr.bf16.mxu0 0
        %1562 = vmatmul.mubr.bf16.gmra.mrb[0].mxu0 %v1027
        %v1563 = vpop.f32.mrb[0].mxu0
        %v1564 = vadd.f32 0.0, %v1563
        %v1565 = vpop.f32.mrb[0].mxu0
        %v1566 = vpop.f32.mrb[0].mxu0
        %v1567 = vpop.f32.mrb[0].mxu0
        %1568 = vdwg.mxu0
        %v1573 = vunpack.c.l.b16 %v1457
        %v1574 = vunpack.c.l.b16 %v1458
        %v1575 = vunpack.c.l.b16 %v1459
        %v1576 = vunpack.c.l.b16 %v1460
        %v1577 = vpack.c.b16 %v1574, %v1573
        %v1578 = vpack.c.b16 %v1576, %v1575
        %1581 = vmatprep.subr.bf16.mxu0 0
        %1582 = vmatpush1.bf16.msra.mxu0 %v1577
        %1583 = vmatprep.subr.bf16.mxu0 0
        %1584 = vmatpush1.bf16.msra.mxu0 %v1578
        %1585 = vmatprep.subr.bf16.mxu0 0
        %1586 = vmatpush1.bf16.msra.mxu0 0
        %1587 = vmatprep.subr.bf16.mxu0 0
        %1588 = vmatpush1.bf16.msra.mxu0 0
        %1589 = vmatprep.subr.bf16.mxu0 0
        %1590 = vmatpush1.bf16.msra.mxu0 0
        %1591 = vmatprep.subr.bf16.mxu0 0
        %1592 = vmatpush1.bf16.msra.mxu0 0
        %1593 = vmatprep.subr.bf16.mxu0 0
        %1594 = vmatpush1.bf16.msra.mxu0 0
        %1595 = vmatprep.subr.bf16.mxu0 0
        %1596 = vmatpush1.bf16.msra.mxu0 0
        %1597 = vmatprep.subr.bf16.mxu0 0
        %1598 = vmatpush1.bf16.msra.mxu0 0
        %1599 = vmatprep.subr.bf16.mxu0 0
        %1600 = vmatpush1.bf16.msra.mxu0 0
        %1601 = vmatprep.subr.bf16.mxu0 0
        %1602 = vmatpush1.bf16.msra.mxu0 0
        %1603 = vmatprep.subr.bf16.mxu0 0
        %1604 = vmatpush1.bf16.msra.mxu0 0
        %1605 = vmatprep.subr.bf16.mxu0 0
        %1606 = vmatpush1.bf16.msra.mxu0 0
        %1607 = vmatprep.subr.bf16.mxu0 0
        %1608 = vmatpush1.bf16.msra.mxu0 0
        %1609 = vmatprep.subr.bf16.mxu0 0
        %1610 = vmatpush1.bf16.msra.mxu0 0
        %1611 = vmatprep.subr.bf16.mxu0 0
        %1612 = vmatpush1.bf16.msra.mxu0 0
        %1613 = vmatprep.mubr.bf16.mxu0 0
        %1614 = vmatmul.mubr.bf16.gmra.mrb[0].mxu0 %v1027
        %v1615 = vpop.f32.mrb[0].mxu0
        %v1616 = vadd.f32 0.0, %v1615
        %v1617 = vpop.f32.mrb[0].mxu0
        %v1618 = vpop.f32.mrb[0].mxu0
        %v1619 = vpop.f32.mrb[0].mxu0
        %1620 = vdwg.mxu0
        %v1625 = vunpack.c.l.b16 %v1461
        %v1626 = vunpack.c.l.b16 %v1462
        %v1627 = vunpack.c.l.b16 %v1463
        %v1628 = vunpack.c.l.b16 %v1464
        %v1629 = vpack.c.b16 %v1626, %v1625
        %v1630 = vpack.c.b16 %v1628, %v1627
        %1633 = vmatprep.subr.bf16.mxu0 0
        %1634 = vmatpush1.bf16.msra.mxu0 %v1629
        %1635 = vmatprep.subr.bf16.mxu0 0
        %1636 = vmatpush1.bf16.msra.mxu0 %v1630
        %1637 = vmatprep.subr.bf16.mxu0 0
        %1638 = vmatpush1.bf16.msra.mxu0 0
        %1639 = vmatprep.subr.bf16.mxu0 0
        %1640 = vmatpush1.bf16.msra.mxu0 0
        %1641 = vmatprep.subr.bf16.mxu0 0
        %1642 = vmatpush1.bf16.msra.mxu0 0
        %1643 = vmatprep.subr.bf16.mxu0 0
        %1644 = vmatpush1.bf16.msra.mxu0 0
        %1645 = vmatprep.subr.bf16.mxu0 0
        %1646 = vmatpush1.bf16.msra.mxu0 0
        %1647 = vmatprep.subr.bf16.mxu0 0
        %1648 = vmatpush1.bf16.msra.mxu0 0
        %1649 = vmatprep.subr.bf16.mxu0 0
        %1650 = vmatpush1.bf16.msra.mxu0 0
        %1651 = vmatprep.subr.bf16.mxu0 0
        %1652 = vmatpush1.bf16.msra.mxu0 0
        %1653 = vmatprep.subr.bf16.mxu0 0
        %1654 = vmatpush1.bf16.msra.mxu0 0
        %1655 = vmatprep.subr.bf16.mxu0 0
        %1656 = vmatpush1.bf16.msra.mxu0 0
        %1657 = vmatprep.subr.bf16.mxu0 0
        %1658 = vmatpush1.bf16.msra.mxu0 0
        %1659 = vmatprep.subr.bf16.mxu0 0
        %1660 = vmatpush1.bf16.msra.mxu0 0
        %1661 = vmatprep.subr.bf16.mxu0 0
        %1662 = vmatpush1.bf16.msra.mxu0 0
        %1663 = vmatprep.subr.bf16.mxu0 0
        %1664 = vmatpush1.bf16.msra.mxu0 0
        %1665 = vmatprep.mubr.bf16.mxu0 0
        %1666 = vmatmul.mubr.bf16.gmra.mrb[0].mxu0 %v1027
        %v1667 = vpop.f32.mrb[0].mxu0
        %v1668 = vadd.f32 0.0, %v1667
        %v1669 = vpop.f32.mrb[0].mxu0
        %v1670 = vpop.f32.mrb[0].mxu0
        %v1671 = vpop.f32.mrb[0].mxu0
        %1672 = vdwg.mxu0
        %v1673 = vld [vmem:[%s5] sm:$0xf]
        %v1674 = vld [vmem:[%s5 + $0x4] sm:$0xf]
        %v1675 = vld [vmem:[%s5 + $0x8] sm:$0xf]
        %v1676 = vld [vmem:[%s5 + $0xc] sm:$0xf]
        %v1677 = vld [vmem:[%s5 + $0x10] sm:$0xf]
        %v1678 = vld [vmem:[%s5 + $0x14] sm:$0xf]
        %v1679 = vld [vmem:[%s5 + $0x18] sm:$0xf]
        %v1680 = vld [vmem:[%s5 + $0x1c] sm:$0xf]
        %v1681 = vld [vmem:[%s5 + $0x20] sm:$0xf]
        %v1682 = vld [vmem:[%s5 + $0x24] sm:$0xf]
        %v1683 = vld [vmem:[%s5 + $0x28] sm:$0xf]
        %v1684 = vld [vmem:[%s5 + $0x2c] sm:$0xf]
        %v1685 = vld [vmem:[%s5 + $0x30] sm:$0xf]
        %v1686 = vld [vmem:[%s5 + $0x34] sm:$0xf]
        %v1687 = vld [vmem:[%s5 + $0x38] sm:$0xf]
        %v1688 = vld [vmem:[%s5 + $0x3c] sm:$0xf]
        %v1693 = vunpack.c.l.b16 %v1673
        %v1694 = vunpack.c.l.b16 %v1674
        %v1695 = vunpack.c.l.b16 %v1675
        %v1696 = vunpack.c.l.b16 %v1676
        %v1697 = vpack.c.b16 %v1694, %v1693
        %v1698 = vpack.c.b16 %v1696, %v1695
        %1701 = vmatprep.subr.bf16.mxu0 0
        %1702 = vmatpush1.bf16.msra.mxu0 %v1697
        %1703 = vmatprep.subr.bf16.mxu0 0
        %1704 = vmatpush1.bf16.msra.mxu0 %v1698
        %1705 = vmatprep.subr.bf16.mxu0 0
        %1706 = vmatpush1.bf16.msra.mxu0 0
        %1707 = vmatprep.subr.bf16.mxu0 0
        %1708 = vmatpush1.bf16.msra.mxu0 0
        %1709 = vmatprep.subr.bf16.mxu0 0
        %1710 = vmatpush1.bf16.msra.mxu0 0
        %1711 = vmatprep.subr.bf16.mxu0 0
        %1712 = vmatpush1.bf16.msra.mxu0 0
        %1713 = vmatprep.subr.bf16.mxu0 0
        %1714 = vmatpush1.bf16.msra.mxu0 0
        %1715 = vmatprep.subr.bf16.mxu0 0
        %1716 = vmatpush1.bf16.msra.mxu0 0
        %1717 = vmatprep.subr.bf16.mxu0 0
        %1718 = vmatpush1.bf16.msra.mxu0 0
        %1719 = vmatprep.subr.bf16.mxu0 0
        %1720 = vmatpush1.bf16.msra.mxu0 0
        %1721 = vmatprep.subr.bf16.mxu0 0
        %1722 = vmatpush1.bf16.msra.mxu0 0
        %1723 = vmatprep.subr.bf16.mxu0 0
        %1724 = vmatpush1.bf16.msra.mxu0 0
        %1725 = vmatprep.subr.bf16.mxu0 0
        %1726 = vmatpush1.bf16.msra.mxu0 0
        %1727 = vmatprep.subr.bf16.mxu0 0
        %1728 = vmatpush1.bf16.msra.mxu0 0
        %1729 = vmatprep.subr.bf16.mxu0 0
        %1730 = vmatpush1.bf16.msra.mxu0 0
        %1731 = vmatprep.subr.bf16.mxu0 0
        %1732 = vmatpush1.bf16.msra.mxu0 0
        %1733 = vmatprep.mubr.bf16.mxu0 0
        %1734 = vmatmul.mubr.bf16.gmra.mrb[0].mxu0 %v1027
        %v1735 = vpop.f32.mrb[0].mxu0
        %v1736 = vadd.f32 0.0, %v1735
        %v1737 = vpop.f32.mrb[0].mxu0
        %v1738 = vpop.f32.mrb[0].mxu0
        %v1739 = vpop.f32.mrb[0].mxu0
        %1740 = vdwg.mxu0
        %v1745 = vunpack.c.l.b16 %v1677
        %v1746 = vunpack.c.l.b16 %v1678
        %v1747 = vunpack.c.l.b16 %v1679
        %v1748 = vunpack.c.l.b16 %v1680
        %v1749 = vpack.c.b16 %v1746, %v1745
        %v1750 = vpack.c.b16 %v1748, %v1747
        %1753 = vmatprep.subr.bf16.mxu0 0
        %1754 = vmatpush1.bf16.msra.mxu0 %v1749
        %1755 = vmatprep.subr.bf16.mxu0 0
        %1756 = vmatpush1.bf16.msra.mxu0 %v1750
        %1757 = vmatprep.subr.bf16.mxu0 0
        %1758 = vmatpush1.bf16.msra.mxu0 0
        %1759 = vmatprep.subr.bf16.mxu0 0
        %1760 = vmatpush1.bf16.msra.mxu0 0
        %1761 = vmatprep.subr.bf16.mxu0 0
        %1762 = vmatpush1.bf16.msra.mxu0 0
        %1763 = vmatprep.subr.bf16.mxu0 0
        %1764 = vmatpush1.bf16.msra.mxu0 0
        %1765 = vmatprep.subr.bf16.mxu0 0
        %1766 = vmatpush1.bf16.msra.mxu0 0
        %1767 = vmatprep.subr.bf16.mxu0 0
        %1768 = vmatpush1.bf16.msra.mxu0 0
        %1769 = vmatprep.subr.bf16.mxu0 0
        %1770 = vmatpush1.bf16.msra.mxu0 0
        %1771 = vmatprep.subr.bf16.mxu0 0
        %1772 = vmatpush1.bf16.msra.mxu0 0
        %1773 = vmatprep.subr.bf16.mxu0 0
        %1774 = vmatpush1.bf16.msra.mxu0 0
        %1775 = vmatprep.subr.bf16.mxu0 0
        %1776 = vmatpush1.bf16.msra.mxu0 0
        %1777 = vmatprep.subr.bf16.mxu0 0
        %1778 = vmatpush1.bf16.msra.mxu0 0
        %1779 = vmatprep.subr.bf16.mxu0 0
        %1780 = vmatpush1.bf16.msra.mxu0 0
        %1781 = vmatprep.subr.bf16.mxu0 0
        %1782 = vmatpush1.bf16.msra.mxu0 0
        %1783 = vmatprep.subr.bf16.mxu0 0
        %1784 = vmatpush1.bf16.msra.mxu0 0
        %1785 = vmatprep.mubr.bf16.mxu0 0
        %1786 = vmatmul.mubr.bf16.gmra.mrb[0].mxu0 %v1027
        %v1787 = vpop.f32.mrb[0].mxu0
        %v1788 = vadd.f32 0.0, %v1787
        %v1789 = vpop.f32.mrb[0].mxu0
        %v1790 = vpop.f32.mrb[0].mxu0
        %v1791 = vpop.f32.mrb[0].mxu0
        %1792 = vdwg.mxu0
        %v1797 = vunpack.c.l.b16 %v1681
        %v1798 = vunpack.c.l.b16 %v1682
        %v1799 = vunpack.c.l.b16 %v1683
        %v1800 = vunpack.c.l.b16 %v1684
        %v1801 = vpack.c.b16 %v1798, %v1797
        %v1802 = vpack.c.b16 %v1800, %v1799
        %1805 = vmatprep.subr.bf16.mxu0 0
        %1806 = vmatpush1.bf16.msra.mxu0 %v1801
        %1807 = vmatprep.subr.bf16.mxu0 0
        %1808 = vmatpush1.bf16.msra.mxu0 %v1802
        %1809 = vmatprep.subr.bf16.mxu0 0
        %1810 = vmatpush1.bf16.msra.mxu0 0
        %1811 = vmatprep.subr.bf16.mxu0 0
        %1812 = vmatpush1.bf16.msra.mxu0 0
        %1813 = vmatprep.subr.bf16.mxu0 0
        %1814 = vmatpush1.bf16.msra.mxu0 0
        %1815 = vmatprep.subr.bf16.mxu0 0
        %1816 = vmatpush1.bf16.msra.mxu0 0
        %1817 = vmatprep.subr.bf16.mxu0 0
        %1818 = vmatpush1.bf16.msra.mxu0 0
        %1819 = vmatprep.subr.bf16.mxu0 0
        %1820 = vmatpush1.bf16.msra.mxu0 0
        %1821 = vmatprep.subr.bf16.mxu0 0
        %1822 = vmatpush1.bf16.msra.mxu0 0
        %1823 = vmatprep.subr.bf16.mxu0 0
        %1824 = vmatpush1.bf16.msra.mxu0 0
        %1825 = vmatprep.subr.bf16.mxu0 0
        %1826 = vmatpush1.bf16.msra.mxu0 0
        %1827 = vmatprep.subr.bf16.mxu0 0
        %1828 = vmatpush1.bf16.msra.mxu0 0
        %1829 = vmatprep.subr.bf16.mxu0 0
        %1830 = vmatpush1.bf16.msra.mxu0 0
        %1831 = vmatprep.subr.bf16.mxu0 0
        %1832 = vmatpush1.bf16.msra.mxu0 0
        %1833 = vmatprep.subr.bf16.mxu0 0
        %1834 = vmatpush1.bf16.msra.mxu0 0
        %1835 = vmatprep.subr.bf16.mxu0 0
        %1836 = vmatpush1.bf16.msra.mxu0 0
        %1837 = vmatprep.mubr.bf16.mxu0 0
        %1838 = vmatmul.mubr.bf16.gmra.mrb[0].mxu0 %v1027
        %v1839 = vpop.f32.mrb[0].mxu0
        %v1840 = vadd.f32 0.0, %v1839
        %v1841 = vpop.f32.mrb[0].mxu0
        %v1842 = vpop.f32.mrb[0].mxu0
        %v1843 = vpop.f32.mrb[0].mxu0
        %1844 = vdwg.mxu0
        %v1849 = vunpack.c.l.b16 %v1685
        %v1850 = vunpack.c.l.b16 %v1686
        %v1851 = vunpack.c.l.b16 %v1687
        %v1852 = vunpack.c.l.b16 %v1688
        %v1853 = vpack.c.b16 %v1850, %v1849
        %v1854 = vpack.c.b16 %v1852, %v1851
        %1857 = vmatprep.subr.bf16.mxu0 0
        %1858 = vmatpush1.bf16.msra.mxu0 %v1853
        %1859 = vmatprep.subr.bf16.mxu0 0
        %1860 = vmatpush1.bf16.msra.mxu0 %v1854
        %1861 = vmatprep.subr.bf16.mxu0 0
        %1862 = vmatpush1.bf16.msra.mxu0 0
        %1863 = vmatprep.subr.bf16.mxu0 0
        %1864 = vmatpush1.bf16.msra.mxu0 0
        %1865 = vmatprep.subr.bf16.mxu0 0
        %1866 = vmatpush1.bf16.msra.mxu0 0
        %1867 = vmatprep.subr.bf16.mxu0 0
        %1868 = vmatpush1.bf16.msra.mxu0 0
        %1869 = vmatprep.subr.bf16.mxu0 0
        %1870 = vmatpush1.bf16.msra.mxu0 0
        %1871 = vmatprep.subr.bf16.mxu0 0
        %1872 = vmatpush1.bf16.msra.mxu0 0
        %1873 = vmatprep.subr.bf16.mxu0 0
        %1874 = vmatpush1.bf16.msra.mxu0 0
        %1875 = vmatprep.subr.bf16.mxu0 0
        %1876 = vmatpush1.bf16.msra.mxu0 0
        %1877 = vmatprep.subr.bf16.mxu0 0
        %1878 = vmatpush1.bf16.msra.mxu0 0
        %1879 = vmatprep.subr.bf16.mxu0 0
        %1880 = vmatpush1.bf16.msra.mxu0 0
        %1881 = vmatprep.subr.bf16.mxu0 0
        %1882 = vmatpush1.bf16.msra.mxu0 0
        %1883 = vmatprep.subr.bf16.mxu0 0
        %1884 = vmatpush1.bf16.msra.mxu0 0
        %1885 = vmatprep.subr.bf16.mxu0 0
        %1886 = vmatpush1.bf16.msra.mxu0 0
        %1887 = vmatprep.subr.bf16.mxu0 0
        %1888 = vmatpush1.bf16.msra.mxu0 0
        %1889 = vmatprep.mubr.bf16.mxu0 0
        %1890 = vmatmul.mubr.bf16.gmra.mrb[0].mxu0 %v1027
        %v1891 = vpop.f32.mrb[0].mxu0
        %v1892 = vadd.f32 0.0, %v1891
        %v1893 = vpop.f32.mrb[0].mxu0
        %v1894 = vpop.f32.mrb[0].mxu0
        %v1895 = vpop.f32.mrb[0].mxu0
        %1896 = vdwg.mxu0
        %v1897 = vld [vmem:[%s939] sm:$0xf]
        %v1898 = vld [vmem:[%s939 + $0x4] sm:$0xf]
        %v1899 = vld [vmem:[%s939 + $0x8] sm:$0xf]
        %v1900 = vld [vmem:[%s939 + $0xc] sm:$0xf]
        %v1901 = vld [vmem:[%s939 + $0x10] sm:$0xf]
        %v1902 = vld [vmem:[%s939 + $0x14] sm:$0xf]
        %v1903 = vld [vmem:[%s939 + $0x18] sm:$0xf]
        %v1904 = vld [vmem:[%s939 + $0x1c] sm:$0xf]
        %v1905 = vld [vmem:[%s939 + $0x20] sm:$0xf]
        %v1906 = vld [vmem:[%s939 + $0x24] sm:$0xf]
        %v1907 = vld [vmem:[%s939 + $0x28] sm:$0xf]
        %v1908 = vld [vmem:[%s939 + $0x2c] sm:$0xf]
        %v1909 = vld [vmem:[%s939 + $0x30] sm:$0xf]
        %v1910 = vld [vmem:[%s939 + $0x34] sm:$0xf]
        %v1911 = vld [vmem:[%s939 + $0x38] sm:$0xf]
        %v1912 = vld [vmem:[%s939 + $0x3c] sm:$0xf]
        %v1917 = vunpack.c.l.b16 %v1897
        %v1918 = vunpack.c.l.b16 %v1898
        %v1919 = vunpack.c.l.b16 %v1899
        %v1920 = vunpack.c.l.b16 %v1900
        %v1921 = vpack.c.b16 %v1918, %v1917
        %v1922 = vpack.c.b16 %v1920, %v1919
        %1925 = vmatprep.subr.bf16.mxu0 0
        %1926 = vmatpush1.bf16.msra.mxu0 %v1921
        %1927 = vmatprep.subr.bf16.mxu0 0
        %1928 = vmatpush1.bf16.msra.mxu0 %v1922
        %1929 = vmatprep.subr.bf16.mxu0 0
        %1930 = vmatpush1.bf16.msra.mxu0 0
        %1931 = vmatprep.subr.bf16.mxu0 0
        %1932 = vmatpush1.bf16.msra.mxu0 0
        %1933 = vmatprep.subr.bf16.mxu0 0
        %1934 = vmatpush1.bf16.msra.mxu0 0
        %1935 = vmatprep.subr.bf16.mxu0 0
        %1936 = vmatpush1.bf16.msra.mxu0 0
        %1937 = vmatprep.subr.bf16.mxu0 0
        %1938 = vmatpush1.bf16.msra.mxu0 0
        %1939 = vmatprep.subr.bf16.mxu0 0
        %1940 = vmatpush1.bf16.msra.mxu0 0
        %1941 = vmatprep.subr.bf16.mxu0 0
        %1942 = vmatpush1.bf16.msra.mxu0 0
        %1943 = vmatprep.subr.bf16.mxu0 0
        %1944 = vmatpush1.bf16.msra.mxu0 0
        %1945 = vmatprep.subr.bf16.mxu0 0
        %1946 = vmatpush1.bf16.msra.mxu0 0
        %1947 = vmatprep.subr.bf16.mxu0 0
        %1948 = vmatpush1.bf16.msra.mxu0 0
        %1949 = vmatprep.subr.bf16.mxu0 0
        %1950 = vmatpush1.bf16.msra.mxu0 0
        %1951 = vmatprep.subr.bf16.mxu0 0
        %1952 = vmatpush1.bf16.msra.mxu0 0
        %1953 = vmatprep.subr.bf16.mxu0 0
        %1954 = vmatpush1.bf16.msra.mxu0 0
        %1955 = vmatprep.subr.bf16.mxu0 0
        %1956 = vmatpush1.bf16.msra.mxu0 0
        %1957 = vmatprep.mubr.bf16.mxu0 0
        %1958 = vmatmul.mubr.bf16.gmra.mrb[0].mxu0 %v1027
        %v1959 = vpop.f32.mrb[0].mxu0
        %v1960 = vadd.f32 0.0, %v1959
        %v1961 = vpop.f32.mrb[0].mxu0
        %v1962 = vpop.f32.mrb[0].mxu0
        %v1963 = vpop.f32.mrb[0].mxu0
        %1964 = vdwg.mxu0
        %v1969 = vunpack.c.l.b16 %v1901
        %v1970 = vunpack.c.l.b16 %v1902
        %v1971 = vunpack.c.l.b16 %v1903
        %v1972 = vunpack.c.l.b16 %v1904
        %v1973 = vpack.c.b16 %v1970, %v1969
        %v1974 = vpack.c.b16 %v1972, %v1971
        %1977 = vmatprep.subr.bf16.mxu0 0
        %1978 = vmatpush1.bf16.msra.mxu0 %v1973
        %1979 = vmatprep.subr.bf16.mxu0 0
        %1980 = vmatpush1.bf16.msra.mxu0 %v1974
        %1981 = vmatprep.subr.bf16.mxu0 0
        %1982 = vmatpush1.bf16.msra.mxu0 0
        %1983 = vmatprep.subr.bf16.mxu0 0
        %1984 = vmatpush1.bf16.msra.mxu0 0
        %1985 = vmatprep.subr.bf16.mxu0 0
        %1986 = vmatpush1.bf16.msra.mxu0 0
        %1987 = vmatprep.subr.bf16.mxu0 0
        %1988 = vmatpush1.bf16.msra.mxu0 0
        %1989 = vmatprep.subr.bf16.mxu0 0
        %1990 = vmatpush1.bf16.msra.mxu0 0
        %1991 = vmatprep.subr.bf16.mxu0 0
        %1992 = vmatpush1.bf16.msra.mxu0 0
        %1993 = vmatprep.subr.bf16.mxu0 0
        %1994 = vmatpush1.bf16.msra.mxu0 0
        %1995 = vmatprep.subr.bf16.mxu0 0
        %1996 = vmatpush1.bf16.msra.mxu0 0
        %1997 = vmatprep.subr.bf16.mxu0 0
        %1998 = vmatpush1.bf16.msra.mxu0 0
        %1999 = vmatprep.subr.bf16.mxu0 0
        %2000 = vmatpush1.bf16.msra.mxu0 0
        %2001 = vmatprep.subr.bf16.mxu0 0
        %2002 = vmatpush1.bf16.msra.mxu0 0
        %2003 = vmatprep.subr.bf16.mxu0 0
        %2004 = vmatpush1.bf16.msra.mxu0 0
        %2005 = vmatprep.subr.bf16.mxu0 0
        %2006 = vmatpush1.bf16.msra.mxu0 0
        %2007 = vmatprep.subr.bf16.mxu0 0
        %2008 = vmatpush1.bf16.msra.mxu0 0
        %2009 = vmatprep.mubr.bf16.mxu0 0
        %2010 = vmatmul.mubr.bf16.gmra.mrb[0].mxu0 %v1027
        %v2011 = vpop.f32.mrb[0].mxu0
        %v2012 = vadd.f32 0.0, %v2011
        %v2013 = vpop.f32.mrb[0].mxu0
        %v2014 = vpop.f32.mrb[0].mxu0
        %v2015 = vpop.f32.mrb[0].mxu0
        %2016 = vdwg.mxu0
        %v2021 = vunpack.c.l.b16 %v1905
        %v2022 = vunpack.c.l.b16 %v1906
        %v2023 = vunpack.c.l.b16 %v1907
        %v2024 = vunpack.c.l.b16 %v1908
        %v2025 = vpack.c.b16 %v2022, %v2021
        %v2026 = vpack.c.b16 %v2024, %v2023
        %2029 = vmatprep.subr.bf16.mxu0 0
        %2030 = vmatpush1.bf16.msra.mxu0 %v2025
        %2031 = vmatprep.subr.bf16.mxu0 0
        %2032 = vmatpush1.bf16.msra.mxu0 %v2026
        %2033 = vmatprep.subr.bf16.mxu0 0
        %2034 = vmatpush1.bf16.msra.mxu0 0
        %2035 = vmatprep.subr.bf16.mxu0 0
        %2036 = vmatpush1.bf16.msra.mxu0 0
        %2037 = vmatprep.subr.bf16.mxu0 0
        %2038 = vmatpush1.bf16.msra.mxu0 0
        %2039 = vmatprep.subr.bf16.mxu0 0
        %2040 = vmatpush1.bf16.msra.mxu0 0
        %2041 = vmatprep.subr.bf16.mxu0 0
        %2042 = vmatpush1.bf16.msra.mxu0 0
        %2043 = vmatprep.subr.bf16.mxu0 0
        %2044 = vmatpush1.bf16.msra.mxu0 0
        %2045 = vmatprep.subr.bf16.mxu0 0
        %2046 = vmatpush1.bf16.msra.mxu0 0
        %2047 = vmatprep.subr.bf16.mxu0 0
        %2048 = vmatpush1.bf16.msra.mxu0 0
        %2049 = vmatprep.subr.bf16.mxu0 0
        %2050 = vmatpush1.bf16.msra.mxu0 0
        %2051 = vmatprep.subr.bf16.mxu0 0
        %2052 = vmatpush1.bf16.msra.mxu0 0
        %2053 = vmatprep.subr.bf16.mxu0 0
        %2054 = vmatpush1.bf16.msra.mxu0 0
        %2055 = vmatprep.subr.bf16.mxu0 0
        %2056 = vmatpush1.bf16.msra.mxu0 0
        %2057 = vmatprep.subr.bf16.mxu0 0
        %2058 = vmatpush1.bf16.msra.mxu0 0
        %2059 = vmatprep.subr.bf16.mxu0 0
        %2060 = vmatpush1.bf16.msra.mxu0 0
        %2061 = vmatprep.mubr.bf16.mxu0 0
        %2062 = vmatmul.mubr.bf16.gmra.mrb[0].mxu0 %v1027
        %v2063 = vpop.f32.mrb[0].mxu0
        %v2064 = vadd.f32 0.0, %v2063
        %v2065 = vpop.f32.mrb[0].mxu0
        %v2066 = vpop.f32.mrb[0].mxu0
        %v2067 = vpop.f32.mrb[0].mxu0
        %2068 = vdwg.mxu0
        %v2073 = vunpack.c.l.b16 %v1909
        %v2074 = vunpack.c.l.b16 %v1910
        %v2075 = vunpack.c.l.b16 %v1911
        %v2076 = vunpack.c.l.b16 %v1912
        %v2077 = vpack.c.b16 %v2074, %v2073
        %v2078 = vpack.c.b16 %v2076, %v2075
        %2081 = vmatprep.subr.bf16.mxu0 0
        %2082 = vmatpush1.bf16.msra.mxu0 %v2077
        %2083 = vmatprep.subr.bf16.mxu0 0
        %2084 = vmatpush1.bf16.msra.mxu0 %v2078
        %2085 = vmatprep.subr.bf16.mxu0 0
        %2086 = vmatpush1.bf16.msra.mxu0 0
        %2087 = vmatprep.subr.bf16.mxu0 0
        %2088 = vmatpush1.bf16.msra.mxu0 0
        %2089 = vmatprep.subr.bf16.mxu0 0
        %2090 = vmatpush1.bf16.msra.mxu0 0
        %2091 = vmatprep.subr.bf16.mxu0 0
        %2092 = vmatpush1.bf16.msra.mxu0 0
        %2093 = vmatprep.subr.bf16.mxu0 0
        %2094 = vmatpush1.bf16.msra.mxu0 0
        %2095 = vmatprep.subr.bf16.mxu0 0
        %2096 = vmatpush1.bf16.msra.mxu0 0
        %2097 = vmatprep.subr.bf16.mxu0 0
        %2098 = vmatpush1.bf16.msra.mxu0 0
        %2099 = vmatprep.subr.bf16.mxu0 0
        %2100 = vmatpush1.bf16.msra.mxu0 0
        %2101 = vmatprep.subr.bf16.mxu0 0
        %2102 = vmatpush1.bf16.msra.mxu0 0
        %2103 = vmatprep.subr.bf16.mxu0 0
        %2104 = vmatpush1.bf16.msra.mxu0 0
        %2105 = vmatprep.subr.bf16.mxu0 0
        %2106 = vmatpush1.bf16.msra.mxu0 0
        %2107 = vmatprep.subr.bf16.mxu0 0
        %2108 = vmatpush1.bf16.msra.mxu0 0
        %2109 = vmatprep.subr.bf16.mxu0 0
        %2110 = vmatpush1.bf16.msra.mxu0 0
        %2111 = vmatprep.subr.bf16.mxu0 0
        %2112 = vmatpush1.bf16.msra.mxu0 0
        %2113 = vmatprep.mubr.bf16.mxu0 0
        %2114 = vmatmul.mubr.bf16.gmra.mrb[0].mxu0 %v1027
        %v2115 = vpop.f32.mrb[0].mxu0
        %v2116 = vadd.f32 0.0, %v2115
        %v2117 = vpop.f32.mrb[0].mxu0
        %v2118 = vpop.f32.mrb[0].mxu0
        %v2119 = vpop.f32.mrb[0].mxu0
        %2120 = vdwg.mxu0
        %v2121 = vld [vmem:[%s943] sm:$0x1]
        %v2122 = vld [vmem:[%s943 + $0x1] sm:$0x1]
        %v2123 = vld [vmem:[%s943 + $0x2] sm:$0x1]
        %v2124 = vld [vmem:[%s943 + $0x3] sm:$0x1]
        %v2125 = vld [vmem:[%s947] sm:$0x1]
        %v2126 = vld [vmem:[%s947 + $0x1] sm:$0x1]
        %v2127 = vld [vmem:[%s947 + $0x2] sm:$0x1]
        %v2128 = vld [vmem:[%s947 + $0x3] sm:$0x1]
        %v2129 = vld [vmem:[%s951] sm:$0x1]
        %v2130 = vld [vmem:[%s951 + $0x1] sm:$0x1]
        %v2131 = vld [vmem:[%s951 + $0x2] sm:$0x1]
        %v2132 = vld [vmem:[%s951 + $0x3] sm:$0x1]
        %v2133 = vld [vmem:[%s955] sm:$0x1]
        %v2134 = vld [vmem:[%s955 + $0x1] sm:$0x1]
        %v2135 = vld [vmem:[%s955 + $0x2] sm:$0x1]
        %v2136 = vld [vmem:[%s955 + $0x3] sm:$0x1]
        %v2141 = vlaneseq
        %v2142 = vshrl.u32 %v2141, 7
        %v2143 = vsub.s32 0, %v2142
        %v2144 = vrot.slane %v2121, %v2143
        %v2145 = vlaneseq
        %v2146 = vshrl.u32 %v2145, 7
        %v2147 = vsub.s32 0, %v2146
        %v2148 = vrot.slane %v2122, %v2147
        %v2149 = vlaneseq
        %v2150 = vshrl.u32 %v2149, 7
        %v2151 = vsub.s32 0, %v2150
        %v2152 = vrot.slane %v2123, %v2151
        %v2153 = vlaneseq
        %v2154 = vshrl.u32 %v2153, 7
        %v2155 = vsub.s32 0, %v2154
        %v2156 = vrot.slane %v2124, %v2155
        %v2161 = vadd.f32 %v1064, %v2144
        %v2162 = vadd.f32 %v1116, %v2148
        %v2163 = vadd.f32 %v1168, %v2152
        %v2164 = vadd.f32 %v1220, %v2156
        %v2165 = vpack.c.bf16 %v2161, %v2161
        %v2166 = vpack.c.bf16 %v2162, %v2162
        %v2167 = vpack.c.bf16 %v2163, %v2163
        %v2168 = vpack.c.bf16 %v2164, %v2164
        %v2169 = vpack.c.bf16 %v1512, %v1512
        %v2170 = vpack.c.bf16 %v1564, %v1564
        %v2171 = vpack.c.bf16 %v1616, %v1616
        %v2172 = vpack.c.bf16 %v1668, %v1668
        %v2177 = vlaneseq
        %v2178 = vshrl.u32 %v2177, 7
        %v2179 = vsub.s32 0, %v2178
        %v2180 = vrot.slane %v2125, %v2179
        %v2181 = vlaneseq
        %v2182 = vshrl.u32 %v2181, 7
        %v2183 = vsub.s32 0, %v2182
        %v2184 = vrot.slane %v2126, %v2183
        %v2185 = vlaneseq
        %v2186 = vshrl.u32 %v2185, 7
        %v2187 = vsub.s32 0, %v2186
        %v2188 = vrot.slane %v2127, %v2187
        %v2189 = vlaneseq
        %v2190 = vshrl.u32 %v2189, 7
        %v2191 = vsub.s32 0, %v2190
        %v2192 = vrot.slane %v2128, %v2191
        %v2197 = vadd.f32 %v1288, %v2180
        %v2198 = vadd.f32 %v1340, %v2184
        %v2199 = vadd.f32 %v1392, %v2188
        %v2200 = vadd.f32 %v1444, %v2192
        %v2201 = vpack.c.bf16 %v2197, %v2197
        %v2202 = vpack.c.bf16 %v2198, %v2198
        %v2203 = vpack.c.bf16 %v2199, %v2199
        %v2204 = vpack.c.bf16 %v2200, %v2200
        %v2205 = vpack.c.bf16 %v1736, %v1736
        %v2206 = vpack.c.bf16 %v1788, %v1788
        %v2207 = vpack.c.bf16 %v1840, %v1840
        %v2208 = vpack.c.bf16 %v1892, %v1892
        %vm2209 = vcmask 31744
        %v2211 = vsel %vm2209, %v2201, 0
        %v2214 = vsel %vm2209, %v2205, 0
        %2216 = vmatprep.subr.bf16.mxu0 0
        %2217 = vmatpush1.bf16.xpose.msra.mxu0 %v2214
        %2218 = vmatprep.subr.bf16.mxu0 0
        %2219 = vmatpush1.bf16.xpose.msra.mxu0 0
        %2220 = vmatprep.subr.bf16.mxu0 0
        %2221 = vmatpush1.bf16.xpose.msra.mxu0 0
        %2222 = vmatprep.subr.bf16.mxu0 0
        %2223 = vmatpush1.bf16.xpose.msra.mxu0 0
        %2224 = vmatprep.subr.bf16.mxu0 0
        %2225 = vmatpush1.bf16.xpose.msra.mxu0 0
        %2226 = vmatprep.subr.bf16.mxu0 0
        %2227 = vmatpush1.bf16.xpose.msra.mxu0 0
        %2228 = vmatprep.subr.bf16.mxu0 0
        %2229 = vmatpush1.bf16.xpose.msra.mxu0 0
        %2230 = vmatprep.subr.bf16.mxu0 0
        %2231 = vmatpush1.bf16.xpose.msra.mxu0 0
        %2232 = vmatprep.subr.bf16.mxu0 0
        %2233 = vmatpush1.bf16.xpose.msra.mxu0 0
        %2234 = vmatprep.subr.bf16.mxu0 0
        %2235 = vmatpush1.bf16.xpose.msra.mxu0 0
        %2236 = vmatprep.subr.bf16.mxu0 0
        %2237 = vmatpush1.bf16.xpose.msra.mxu0 0
        %2238 = vmatprep.subr.bf16.mxu0 0
        %2239 = vmatpush1.bf16.xpose.msra.mxu0 0
        %2240 = vmatprep.subr.bf16.mxu0 0
        %2241 = vmatpush1.bf16.xpose.msra.mxu0 0
        %2242 = vmatprep.subr.bf16.mxu0 0
        %2243 = vmatpush1.bf16.xpose.msra.mxu0 0
        %2244 = vmatprep.subr.bf16.mxu0 0
        %2245 = vmatpush1.bf16.xpose.msra.mxu0 0
        %2246 = vmatprep.subr.bf16.mxu0 0
        %2247 = vmatpush1.bf16.xpose.msra.mxu0 0
        %2248 = vmatprep.mubr.bf16.mxu0 0
        %2249 = vmatmul.mubr.bf16.gmra.mrb[0].mxu0 %v2211
        %v2250 = vpop.f32.mrb[0].mxu0
        %v2251 = vadd.f32 0.0, %v2250
        %v2252 = vpop.f32.mrb[0].mxu0
        %v2253 = vpop.f32.mrb[0].mxu0
        %v2254 = vpop.f32.mrb[0].mxu0
        %2255 = vdwg.mxu0
        %v2257 = vsel %vm2209, %v2202, 0
        %v2260 = vsel %vm2209, %v2206, 0
        %2262 = vmatprep.subr.bf16.mxu0 0
        %2263 = vmatpush1.bf16.xpose.msra.mxu0 %v2260
        %2264 = vmatprep.subr.bf16.mxu0 0
        %2265 = vmatpush1.bf16.xpose.msra.mxu0 0
        %2266 = vmatprep.subr.bf16.mxu0 0
        %2267 = vmatpush1.bf16.xpose.msra.mxu0 0
        %2268 = vmatprep.subr.bf16.mxu0 0
        %2269 = vmatpush1.bf16.xpose.msra.mxu0 0
        %2270 = vmatprep.subr.bf16.mxu0 0
        %2271 = vmatpush1.bf16.xpose.msra.mxu0 0
        %2272 = vmatprep.subr.bf16.mxu0 0
        %2273 = vmatpush1.bf16.xpose.msra.mxu0 0
        %2274 = vmatprep.subr.bf16.mxu0 0
        %2275 = vmatpush1.bf16.xpose.msra.mxu0 0
        %2276 = vmatprep.subr.bf16.mxu0 0
        %2277 = vmatpush1.bf16.xpose.msra.mxu0 0
        %2278 = vmatprep.subr.bf16.mxu0 0
        %2279 = vmatpush1.bf16.xpose.msra.mxu0 0
        %2280 = vmatprep.subr.bf16.mxu0 0
        %2281 = vmatpush1.bf16.xpose.msra.mxu0 0
        %2282 = vmatprep.subr.bf16.mxu0 0
        %2283 = vmatpush1.bf16.xpose.msra.mxu0 0
        %2284 = vmatprep.subr.bf16.mxu0 0
        %2285 = vmatpush1.bf16.xpose.msra.mxu0 0
        %2286 = vmatprep.subr.bf16.mxu0 0
        %2287 = vmatpush1.bf16.xpose.msra.mxu0 0
        %2288 = vmatprep.subr.bf16.mxu0 0
        %2289 = vmatpush1.bf16.xpose.msra.mxu0 0
        %2290 = vmatprep.subr.bf16.mxu0 0
        %2291 = vmatpush1.bf16.xpose.msra.mxu0 0
        %2292 = vmatprep.subr.bf16.mxu0 0
        %2293 = vmatpush1.bf16.xpose.msra.mxu0 0
        %2294 = vmatprep.mubr.bf16.mxu0 0
        %2295 = vmatmul.mubr.bf16.gmra.mrb[0].mxu0 %v2257
        %v2296 = vpop.f32.mrb[0].mxu0
        %v2297 = vadd.f32 0.0, %v2296
        %v2298 = vpop.f32.mrb[0].mxu0
        %v2299 = vpop.f32.mrb[0].mxu0
        %v2300 = vpop.f32.mrb[0].mxu0
        %2301 = vdwg.mxu0
        %v2303 = vsel %vm2209, %v2203, 0
        %v2306 = vsel %vm2209, %v2207, 0
        %2308 = vmatprep.subr.bf16.mxu0 0
        %2309 = vmatpush1.bf16.xpose.msra.mxu0 %v2306
        %2310 = vmatprep.subr.bf16.mxu0 0
        %2311 = vmatpush1.bf16.xpose.msra.mxu0 0
        %2312 = vmatprep.subr.bf16.mxu0 0
        %2313 = vmatpush1.bf16.xpose.msra.mxu0 0
        %2314 = vmatprep.subr.bf16.mxu0 0
        %2315 = vmatpush1.bf16.xpose.msra.mxu0 0
        %2316 = vmatprep.subr.bf16.mxu0 0
        %2317 = vmatpush1.bf16.xpose.msra.mxu0 0
        %2318 = vmatprep.subr.bf16.mxu0 0
        %2319 = vmatpush1.bf16.xpose.msra.mxu0 0
        %2320 = vmatprep.subr.bf16.mxu0 0
        %2321 = vmatpush1.bf16.xpose.msra.mxu0 0
        %2322 = vmatprep.subr.bf16.mxu0 0
        %2323 = vmatpush1.bf16.xpose.msra.mxu0 0
        %2324 = vmatprep.subr.bf16.mxu0 0
        %2325 = vmatpush1.bf16.xpose.msra.mxu0 0
        %2326 = vmatprep.subr.bf16.mxu0 0
        %2327 = vmatpush1.bf16.xpose.msra.mxu0 0
        %2328 = vmatprep.subr.bf16.mxu0 0
        %2329 = vmatpush1.bf16.xpose.msra.mxu0 0
        %2330 = vmatprep.subr.bf16.mxu0 0
        %2331 = vmatpush1.bf16.xpose.msra.mxu0 0
        %2332 = vmatprep.subr.bf16.mxu0 0
        %2333 = vmatpush1.bf16.xpose.msra.mxu0 0
        %2334 = vmatprep.subr.bf16.mxu0 0
        %2335 = vmatpush1.bf16.xpose.msra.mxu0 0
        %2336 = vmatprep.subr.bf16.mxu0 0
        %2337 = vmatpush1.bf16.xpose.msra.mxu0 0
        %2338 = vmatprep.subr.bf16.mxu0 0
        %2339 = vmatpush1.bf16.xpose.msra.mxu0 0
        %2340 = vmatprep.mubr.bf16.mxu0 0
        %2341 = vmatmul.mubr.bf16.gmra.mrb[0].mxu0 %v2303
        %v2342 = vpop.f32.mrb[0].mxu0
        %v2343 = vadd.f32 0.0, %v2342
        %v2344 = vpop.f32.mrb[0].mxu0
        %v2345 = vpop.f32.mrb[0].mxu0
        %v2346 = vpop.f32.mrb[0].mxu0
        %2347 = vdwg.mxu0
        %v2349 = vsel %vm2209, %v2204, 0
        %v2352 = vsel %vm2209, %v2208, 0
        %2354 = vmatprep.subr.bf16.mxu0 0
        %2355 = vmatpush1.bf16.xpose.msra.mxu0 %v2352
        %2356 = vmatprep.subr.bf16.mxu0 0
        %2357 = vmatpush1.bf16.xpose.msra.mxu0 0
        %2358 = vmatprep.subr.bf16.mxu0 0
        %2359 = vmatpush1.bf16.xpose.msra.mxu0 0
        %2360 = vmatprep.subr.bf16.mxu0 0
        %2361 = vmatpush1.bf16.xpose.msra.mxu0 0
        %2362 = vmatprep.subr.bf16.mxu0 0
        %2363 = vmatpush1.bf16.xpose.msra.mxu0 0
        %2364 = vmatprep.subr.bf16.mxu0 0
        %2365 = vmatpush1.bf16.xpose.msra.mxu0 0
        %2366 = vmatprep.subr.bf16.mxu0 0
        %2367 = vmatpush1.bf16.xpose.msra.mxu0 0
        %2368 = vmatprep.subr.bf16.mxu0 0
        %2369 = vmatpush1.bf16.xpose.msra.mxu0 0
        %2370 = vmatprep.subr.bf16.mxu0 0
        %2371 = vmatpush1.bf16.xpose.msra.mxu0 0
        %2372 = vmatprep.subr.bf16.mxu0 0
        %2373 = vmatpush1.bf16.xpose.msra.mxu0 0
        %2374 = vmatprep.subr.bf16.mxu0 0
        %2375 = vmatpush1.bf16.xpose.msra.mxu0 0
        %2376 = vmatprep.subr.bf16.mxu0 0
        %2377 = vmatpush1.bf16.xpose.msra.mxu0 0
        %2378 = vmatprep.subr.bf16.mxu0 0
        %2379 = vmatpush1.bf16.xpose.msra.mxu0 0
        %2380 = vmatprep.subr.bf16.mxu0 0
        %2381 = vmatpush1.bf16.xpose.msra.mxu0 0
        %2382 = vmatprep.subr.bf16.mxu0 0
        %2383 = vmatpush1.bf16.xpose.msra.mxu0 0
        %2384 = vmatprep.subr.bf16.mxu0 0
        %2385 = vmatpush1.bf16.xpose.msra.mxu0 0
        %2386 = vmatprep.mubr.bf16.mxu0 0
        %2387 = vmatmul.mubr.bf16.gmra.mrb[0].mxu0 %v2349
        %v2388 = vpop.f32.mrb[0].mxu0
        %v2389 = vadd.f32 0.0, %v2388
        %v2390 = vpop.f32.mrb[0].mxu0
        %v2391 = vpop.f32.mrb[0].mxu0
        %v2392 = vpop.f32.mrb[0].mxu0
        %2393 = vdwg.mxu0
        %v2395 = vsel %vm2209, %v2165, 0
        %v2398 = vsel %vm2209, %v2169, 0
        %2400 = vmatprep.subr.bf16.mxu0 0
        %2401 = vmatpush1.bf16.xpose.msra.mxu0 %v2398
        %2402 = vmatprep.subr.bf16.mxu0 0
        %2403 = vmatpush1.bf16.xpose.msra.mxu0 0
        %2404 = vmatprep.subr.bf16.mxu0 0
        %2405 = vmatpush1.bf16.xpose.msra.mxu0 0
        %2406 = vmatprep.subr.bf16.mxu0 0
        %2407 = vmatpush1.bf16.xpose.msra.mxu0 0
        %2408 = vmatprep.subr.bf16.mxu0 0
        %2409 = vmatpush1.bf16.xpose.msra.mxu0 0
        %2410 = vmatprep.subr.bf16.mxu0 0
        %2411 = vmatpush1.bf16.xpose.msra.mxu0 0
        %2412 = vmatprep.subr.bf16.mxu0 0
        %2413 = vmatpush1.bf16.xpose.msra.mxu0 0
        %2414 = vmatprep.subr.bf16.mxu0 0
        %2415 = vmatpush1.bf16.xpose.msra.mxu0 0
        %2416 = vmatprep.subr.bf16.mxu0 0
        %2417 = vmatpush1.bf16.xpose.msra.mxu0 0
        %2418 = vmatprep.subr.bf16.mxu0 0
        %2419 = vmatpush1.bf16.xpose.msra.mxu0 0
        %2420 = vmatprep.subr.bf16.mxu0 0
        %2421 = vmatpush1.bf16.xpose.msra.mxu0 0
        %2422 = vmatprep.subr.bf16.mxu0 0
        %2423 = vmatpush1.bf16.xpose.msra.mxu0 0
        %2424 = vmatprep.subr.bf16.mxu0 0
        %2425 = vmatpush1.bf16.xpose.msra.mxu0 0
        %2426 = vmatprep.subr.bf16.mxu0 0
        %2427 = vmatpush1.bf16.xpose.msra.mxu0 0
        %2428 = vmatprep.subr.bf16.mxu0 0
        %2429 = vmatpush1.bf16.xpose.msra.mxu0 0
        %2430 = vmatprep.subr.bf16.mxu0 0
        %2431 = vmatpush1.bf16.xpose.msra.mxu0 0
        %2432 = vmatprep.mubr.bf16.mxu0 0
        %2433 = vmatmul.mubr.bf16.gmra.mrb[0].mxu0 %v2395
        %v2434 = vpop.f32.mrb[0].mxu0
        %v2435 = vadd.f32 %v2251, %v2434
        %v2436 = vpop.f32.mrb[0].mxu0
        %v2437 = vpop.f32.mrb[0].mxu0
        %v2438 = vpop.f32.mrb[0].mxu0
        %2439 = vdwg.mxu0
        %v2441 = vsel %vm2209, %v2166, 0
        %v2444 = vsel %vm2209, %v2170, 0
        %2446 = vmatprep.subr.bf16.mxu0 0
        %2447 = vmatpush1.bf16.xpose.msra.mxu0 %v2444
        %2448 = vmatprep.subr.bf16.mxu0 0
        %2449 = vmatpush1.bf16.xpose.msra.mxu0 0
        %2450 = vmatprep.subr.bf16.mxu0 0
        %2451 = vmatpush1.bf16.xpose.msra.mxu0 0
        %2452 = vmatprep.subr.bf16.mxu0 0
        %2453 = vmatpush1.bf16.xpose.msra.mxu0 0
        %2454 = vmatprep.subr.bf16.mxu0 0
        %2455 = vmatpush1.bf16.xpose.msra.mxu0 0
        %2456 = vmatprep.subr.bf16.mxu0 0
        %2457 = vmatpush1.bf16.xpose.msra.mxu0 0
        %2458 = vmatprep.subr.bf16.mxu0 0
        %2459 = vmatpush1.bf16.xpose.msra.mxu0 0
        %2460 = vmatprep.subr.bf16.mxu0 0
        %2461 = vmatpush1.bf16.xpose.msra.mxu0 0
        %2462 = vmatprep.subr.bf16.mxu0 0
        %2463 = vmatpush1.bf16.xpose.msra.mxu0 0
        %2464 = vmatprep.subr.bf16.mxu0 0
        %2465 = vmatpush1.bf16.xpose.msra.mxu0 0
        %2466 = vmatprep.subr.bf16.mxu0 0
        %2467 = vmatpush1.bf16.xpose.msra.mxu0 0
        %2468 = vmatprep.subr.bf16.mxu0 0
        %2469 = vmatpush1.bf16.xpose.msra.mxu0 0
        %2470 = vmatprep.subr.bf16.mxu0 0
        %2471 = vmatpush1.bf16.xpose.msra.mxu0 0
        %2472 = vmatprep.subr.bf16.mxu0 0
        %2473 = vmatpush1.bf16.xpose.msra.mxu0 0
        %2474 = vmatprep.subr.bf16.mxu0 0
        %2475 = vmatpush1.bf16.xpose.msra.mxu0 0
        %2476 = vmatprep.subr.bf16.mxu0 0
        %2477 = vmatpush1.bf16.xpose.msra.mxu0 0
        %2478 = vmatprep.mubr.bf16.mxu0 0
        %2479 = vmatmul.mubr.bf16.gmra.mrb[0].mxu0 %v2441
        %v2480 = vpop.f32.mrb[0].mxu0
        %v2481 = vadd.f32 %v2297, %v2480
        %v2482 = vpop.f32.mrb[0].mxu0
        %v2483 = vpop.f32.mrb[0].mxu0
        %v2484 = vpop.f32.mrb[0].mxu0
        %2485 = vdwg.mxu0
        %v2487 = vsel %vm2209, %v2167, 0
        %v2490 = vsel %vm2209, %v2171, 0
        %2492 = vmatprep.subr.bf16.mxu0 0
        %2493 = vmatpush1.bf16.xpose.msra.mxu0 %v2490
        %2494 = vmatprep.subr.bf16.mxu0 0
        %2495 = vmatpush1.bf16.xpose.msra.mxu0 0
        %2496 = vmatprep.subr.bf16.mxu0 0
        %2497 = vmatpush1.bf16.xpose.msra.mxu0 0
        %2498 = vmatprep.subr.bf16.mxu0 0
        %2499 = vmatpush1.bf16.xpose.msra.mxu0 0
        %2500 = vmatprep.subr.bf16.mxu0 0
        %2501 = vmatpush1.bf16.xpose.msra.mxu0 0
        %2502 = vmatprep.subr.bf16.mxu0 0
        %2503 = vmatpush1.bf16.xpose.msra.mxu0 0
        %2504 = vmatprep.subr.bf16.mxu0 0
        %2505 = vmatpush1.bf16.xpose.msra.mxu0 0
        %2506 = vmatprep.subr.bf16.mxu0 0
        %2507 = vmatpush1.bf16.xpose.msra.mxu0 0
        %2508 = vmatprep.subr.bf16.mxu0 0
        %2509 = vmatpush1.bf16.xpose.msra.mxu0 0
        %2510 = vmatprep.subr.bf16.mxu0 0
        %2511 = vmatpush1.bf16.xpose.msra.mxu0 0
        %2512 = vmatprep.subr.bf16.mxu0 0
        %2513 = vmatpush1.bf16.xpose.msra.mxu0 0
        %2514 = vmatprep.subr.bf16.mxu0 0
        %2515 = vmatpush1.bf16.xpose.msra.mxu0 0
        %2516 = vmatprep.subr.bf16.mxu0 0
        %2517 = vmatpush1.bf16.xpose.msra.mxu0 0
        %2518 = vmatprep.subr.bf16.mxu0 0
        %2519 = vmatpush1.bf16.xpose.msra.mxu0 0
        %2520 = vmatprep.subr.bf16.mxu0 0
        %2521 = vmatpush1.bf16.xpose.msra.mxu0 0
        %2522 = vmatprep.subr.bf16.mxu0 0
        %2523 = vmatpush1.bf16.xpose.msra.mxu0 0
        %2524 = vmatprep.mubr.bf16.mxu0 0
        %2525 = vmatmul.mubr.bf16.gmra.mrb[0].mxu0 %v2487
        %v2526 = vpop.f32.mrb[0].mxu0
        %v2527 = vadd.f32 %v2343, %v2526
        %v2528 = vpop.f32.mrb[0].mxu0
        %v2529 = vpop.f32.mrb[0].mxu0
        %v2530 = vpop.f32.mrb[0].mxu0
        %2531 = vdwg.mxu0
        %v2533 = vsel %vm2209, %v2168, 0
        %v2536 = vsel %vm2209, %v2172, 0
        %2538 = vmatprep.subr.bf16.mxu0 0
        %2539 = vmatpush1.bf16.xpose.msra.mxu0 %v2536
        %2540 = vmatprep.subr.bf16.mxu0 0
        %2541 = vmatpush1.bf16.xpose.msra.mxu0 0
        %2542 = vmatprep.subr.bf16.mxu0 0
        %2543 = vmatpush1.bf16.xpose.msra.mxu0 0
        %2544 = vmatprep.subr.bf16.mxu0 0
        %2545 = vmatpush1.bf16.xpose.msra.mxu0 0
        %2546 = vmatprep.subr.bf16.mxu0 0
        %2547 = vmatpush1.bf16.xpose.msra.mxu0 0
        %2548 = vmatprep.subr.bf16.mxu0 0
        %2549 = vmatpush1.bf16.xpose.msra.mxu0 0
        %2550 = vmatprep.subr.bf16.mxu0 0
        %2551 = vmatpush1.bf16.xpose.msra.mxu0 0
        %2552 = vmatprep.subr.bf16.mxu0 0
        %2553 = vmatpush1.bf16.xpose.msra.mxu0 0
        %2554 = vmatprep.subr.bf16.mxu0 0
        %2555 = vmatpush1.bf16.xpose.msra.mxu0 0
        %2556 = vmatprep.subr.bf16.mxu0 0
        %2557 = vmatpush1.bf16.xpose.msra.mxu0 0
        %2558 = vmatprep.subr.bf16.mxu0 0
        %2559 = vmatpush1.bf16.xpose.msra.mxu0 0
        %2560 = vmatprep.subr.bf16.mxu0 0
        %2561 = vmatpush1.bf16.xpose.msra.mxu0 0
        %2562 = vmatprep.subr.bf16.mxu0 0
        %2563 = vmatpush1.bf16.xpose.msra.mxu0 0
        %2564 = vmatprep.subr.bf16.mxu0 0
        %2565 = vmatpush1.bf16.xpose.msra.mxu0 0
        %2566 = vmatprep.subr.bf16.mxu0 0
        %2567 = vmatpush1.bf16.xpose.msra.mxu0 0
        %2568 = vmatprep.subr.bf16.mxu0 0
        %2569 = vmatpush1.bf16.xpose.msra.mxu0 0
        %2570 = vmatprep.mubr.bf16.mxu0 0
        %2571 = vmatmul.mubr.bf16.gmra.mrb[0].mxu0 %v2533
        %v2572 = vpop.f32.mrb[0].mxu0
        %v2573 = vadd.f32 %v2389, %v2572
        %v2574 = vpop.f32.mrb[0].mxu0
        %v2575 = vpop.f32.mrb[0].mxu0
        %v2576 = vpop.f32.mrb[0].mxu0
        %2577 = vdwg.mxu0
        %v2582 = vlaneseq
        %v2583 = vshrl.u32 %v2582, 7
        %v2584 = vsub.s32 0, %v2583
        %v2585 = vrot.slane %v2129, %v2584
        %v2586 = vlaneseq
        %v2587 = vshrl.u32 %v2586, 7
        %v2588 = vsub.s32 0, %v2587
        %v2589 = vrot.slane %v2130, %v2588
        %v2590 = vlaneseq
        %v2591 = vshrl.u32 %v2590, 7
        %v2592 = vsub.s32 0, %v2591
        %v2593 = vrot.slane %v2131, %v2592
        %v2594 = vlaneseq
        %v2595 = vshrl.u32 %v2594, 7
        %v2596 = vsub.s32 0, %v2595
        %v2597 = vrot.slane %v2132, %v2596
        %v2602 = vadd.f32 %v1064, %v2585
        %v2603 = vadd.f32 %v1116, %v2589
        %v2604 = vadd.f32 %v1168, %v2593
        %v2605 = vadd.f32 %v1220, %v2597
        %v2610 = vlaneseq
        %v2611 = vshrl.u32 %v2610, 7
        %v2612 = vsub.s32 0, %v2611
        %v2613 = vrot.slane %v2133, %v2612
        %v2614 = vlaneseq
        %v2615 = vshrl.u32 %v2614, 7
        %v2616 = vsub.s32 0, %v2615
        %v2617 = vrot.slane %v2134, %v2616
        %v2618 = vlaneseq
        %v2619 = vshrl.u32 %v2618, 7
        %v2620 = vsub.s32 0, %v2619
        %v2621 = vrot.slane %v2135, %v2620
        %v2622 = vlaneseq
        %v2623 = vshrl.u32 %v2622, 7
        %v2624 = vsub.s32 0, %v2623
        %v2625 = vrot.slane %v2136, %v2624
        %v2630 = vadd.f32 %v1288, %v2613
        %v2631 = vadd.f32 %v1340, %v2617
        %v2632 = vadd.f32 %v1392, %v2621
        %v2633 = vadd.f32 %v1444, %v2625
        %v2634 = vmul.f32 %v2602, %v995
        %v2635 = vmul.f32 %v2603, %v995
        %v2636 = vmul.f32 %v2604, %v995
        %v2637 = vmul.f32 %v2605, %v995
        %v2638 = vmul.f32 %v2630, %v994
        %v2639 = vmul.f32 %v2631, %v994
        %v2640 = vmul.f32 %v2632, %v994
        %v2641 = vmul.f32 %v2633, %v994
        %v2642 = vadd.f32 %v2634, %v2638
        %v2643 = vadd.f32 %v2635, %v2639
        %v2644 = vadd.f32 %v2636, %v2640
        %v2645 = vadd.f32 %v2637, %v2641
        %v2646 = vpack.c.bf16 %v2642, %v2642
        %v2647 = vpack.c.bf16 %v2643, %v2643
        %v2648 = vpack.c.bf16 %v2644, %v2644
        %v2649 = vpack.c.bf16 %v2645, %v2645
        %v2650 = vpack.c.bf16 %v994, %v994
        %v2651 = vmul.f32 %v2630, %v995
        %v2652 = vmul.f32 %v2631, %v995
        %v2653 = vmul.f32 %v2632, %v995
        %v2654 = vmul.f32 %v2633, %v995
        %v2655 = vmul.f32 %v2602, %v994
        %v2656 = vmul.f32 %v2603, %v994
        %v2657 = vmul.f32 %v2604, %v994
        %v2658 = vmul.f32 %v2605, %v994
        %v2659 = vsub.f32 %v2651, %v2655
        %v2660 = vsub.f32 %v2652, %v2656
        %v2661 = vsub.f32 %v2653, %v2657
        %v2662 = vsub.f32 %v2654, %v2658
        %v2663 = vpack.c.bf16 %v2659, %v2659
        %v2664 = vpack.c.bf16 %v2660, %v2660
        %v2665 = vpack.c.bf16 %v2661, %v2661
        %v2666 = vpack.c.bf16 %v2662, %v2662
        %v2667 = vpack.c.bf16 %v995, %v995
        %v2669 = vsel %vm2209, %v2663, 0
        %v2672 = vsel %vm2209, %v2667, 0
        %2674 = vmatprep.subr.bf16.mxu0 0
        %2675 = vmatpush1.bf16.xpose.msra.mxu0 %v2672
        %2676 = vmatprep.subr.bf16.mxu0 0
        %2677 = vmatpush1.bf16.xpose.msra.mxu0 0
        %2678 = vmatprep.subr.bf16.mxu0 0
        %2679 = vmatpush1.bf16.xpose.msra.mxu0 0
        %2680 = vmatprep.subr.bf16.mxu0 0
        %2681 = vmatpush1.bf16.xpose.msra.mxu0 0
        %2682 = vmatprep.subr.bf16.mxu0 0
        %2683 = vmatpush1.bf16.xpose.msra.mxu0 0
        %2684 = vmatprep.subr.bf16.mxu0 0
        %2685 = vmatpush1.bf16.xpose.msra.mxu0 0
        %2686 = vmatprep.subr.bf16.mxu0 0
        %2687 = vmatpush1.bf16.xpose.msra.mxu0 0
        %2688 = vmatprep.subr.bf16.mxu0 0
        %2689 = vmatpush1.bf16.xpose.msra.mxu0 0
        %2690 = vmatprep.subr.bf16.mxu0 0
        %2691 = vmatpush1.bf16.xpose.msra.mxu0 0
        %2692 = vmatprep.subr.bf16.mxu0 0
        %2693 = vmatpush1.bf16.xpose.msra.mxu0 0
        %2694 = vmatprep.subr.bf16.mxu0 0
        %2695 = vmatpush1.bf16.xpose.msra.mxu0 0
        %2696 = vmatprep.subr.bf16.mxu0 0
        %2697 = vmatpush1.bf16.xpose.msra.mxu0 0
        %2698 = vmatprep.subr.bf16.mxu0 0
        %2699 = vmatpush1.bf16.xpose.msra.mxu0 0
        %2700 = vmatprep.subr.bf16.mxu0 0
        %2701 = vmatpush1.bf16.xpose.msra.mxu0 0
        %2702 = vmatprep.subr.bf16.mxu0 0
        %2703 = vmatpush1.bf16.xpose.msra.mxu0 0
        %2704 = vmatprep.subr.bf16.mxu0 0
        %2705 = vmatpush1.bf16.xpose.msra.mxu0 0
        %2706 = vmatprep.mubr.bf16.mxu0 0
        %2707 = vmatmul.mubr.bf16.gmra.mrb[0].mxu0 %v2669
        %v2708 = vpop.f32.mrb[0].mxu0
        %v2709 = vadd.f32 0.0, %v2708
        %v2710 = vpop.f32.mrb[0].mxu0
        %v2711 = vpop.f32.mrb[0].mxu0
        %v2712 = vpop.f32.mrb[0].mxu0
        %2713 = vdwg.mxu0
        %v2715 = vsel %vm2209, %v2664, 0
        %2717 = vmatprep.subr.bf16.mxu0 0
        %2718 = vmatpush1.bf16.xpose.msra.mxu0 %v2672
        %2719 = vmatprep.subr.bf16.mxu0 0
        %2720 = vmatpush1.bf16.xpose.msra.mxu0 0
        %2721 = vmatprep.subr.bf16.mxu0 0
        %2722 = vmatpush1.bf16.xpose.msra.mxu0 0
        %2723 = vmatprep.subr.bf16.mxu0 0
        %2724 = vmatpush1.bf16.xpose.msra.mxu0 0
        %2725 = vmatprep.subr.bf16.mxu0 0
        %2726 = vmatpush1.bf16.xpose.msra.mxu0 0
        %2727 = vmatprep.subr.bf16.mxu0 0
        %2728 = vmatpush1.bf16.xpose.msra.mxu0 0
        %2729 = vmatprep.subr.bf16.mxu0 0
        %2730 = vmatpush1.bf16.xpose.msra.mxu0 0
        %2731 = vmatprep.subr.bf16.mxu0 0
        %2732 = vmatpush1.bf16.xpose.msra.mxu0 0
        %2733 = vmatprep.subr.bf16.mxu0 0
        %2734 = vmatpush1.bf16.xpose.msra.mxu0 0
        %2735 = vmatprep.subr.bf16.mxu0 0
        %2736 = vmatpush1.bf16.xpose.msra.mxu0 0
        %2737 = vmatprep.subr.bf16.mxu0 0
        %2738 = vmatpush1.bf16.xpose.msra.mxu0 0
        %2739 = vmatprep.subr.bf16.mxu0 0
        %2740 = vmatpush1.bf16.xpose.msra.mxu0 0
        %2741 = vmatprep.subr.bf16.mxu0 0
        %2742 = vmatpush1.bf16.xpose.msra.mxu0 0
        %2743 = vmatprep.subr.bf16.mxu0 0
        %2744 = vmatpush1.bf16.xpose.msra.mxu0 0
        %2745 = vmatprep.subr.bf16.mxu0 0
        %2746 = vmatpush1.bf16.xpose.msra.mxu0 0
        %2747 = vmatprep.subr.bf16.mxu0 0
        %2748 = vmatpush1.bf16.xpose.msra.mxu0 0
        %2749 = vmatprep.mubr.bf16.mxu0 0
        %2750 = vmatmul.mubr.bf16.gmra.mrb[0].mxu0 %v2715
        %v2751 = vpop.f32.mrb[0].mxu0
        %v2752 = vadd.f32 0.0, %v2751
        %v2753 = vpop.f32.mrb[0].mxu0
        %v2754 = vpop.f32.mrb[0].mxu0
        %v2755 = vpop.f32.mrb[0].mxu0
        %2756 = vdwg.mxu0
        %v2758 = vsel %vm2209, %v2665, 0
        %2760 = vmatprep.subr.bf16.mxu0 0
        %2761 = vmatpush1.bf16.xpose.msra.mxu0 %v2672
        %2762 = vmatprep.subr.bf16.mxu0 0
        %2763 = vmatpush1.bf16.xpose.msra.mxu0 0
        %2764 = vmatprep.subr.bf16.mxu0 0
        %2765 = vmatpush1.bf16.xpose.msra.mxu0 0
        %2766 = vmatprep.subr.bf16.mxu0 0
        %2767 = vmatpush1.bf16.xpose.msra.mxu0 0
        %2768 = vmatprep.subr.bf16.mxu0 0
        %2769 = vmatpush1.bf16.xpose.msra.mxu0 0
        %2770 = vmatprep.subr.bf16.mxu0 0
        %2771 = vmatpush1.bf16.xpose.msra.mxu0 0
        %2772 = vmatprep.subr.bf16.mxu0 0
        %2773 = vmatpush1.bf16.xpose.msra.mxu0 0
        %2774 = vmatprep.subr.bf16.mxu0 0
        %2775 = vmatpush1.bf16.xpose.msra.mxu0 0
        %2776 = vmatprep.subr.bf16.mxu0 0
        %2777 = vmatpush1.bf16.xpose.msra.mxu0 0
        %2778 = vmatprep.subr.bf16.mxu0 0
        %2779 = vmatpush1.bf16.xpose.msra.mxu0 0
        %2780 = vmatprep.subr.bf16.mxu0 0
        %2781 = vmatpush1.bf16.xpose.msra.mxu0 0
        %2782 = vmatprep.subr.bf16.mxu0 0
        %2783 = vmatpush1.bf16.xpose.msra.mxu0 0
        %2784 = vmatprep.subr.bf16.mxu0 0
        %2785 = vmatpush1.bf16.xpose.msra.mxu0 0
        %2786 = vmatprep.subr.bf16.mxu0 0
        %2787 = vmatpush1.bf16.xpose.msra.mxu0 0
        %2788 = vmatprep.subr.bf16.mxu0 0
        %2789 = vmatpush1.bf16.xpose.msra.mxu0 0
        %2790 = vmatprep.subr.bf16.mxu0 0
        %2791 = vmatpush1.bf16.xpose.msra.mxu0 0
        %2792 = vmatprep.mubr.bf16.mxu0 0
        %2793 = vmatmul.mubr.bf16.gmra.mrb[0].mxu0 %v2758
        %v2794 = vpop.f32.mrb[0].mxu0
        %v2795 = vadd.f32 0.0, %v2794
        %v2796 = vpop.f32.mrb[0].mxu0
        %v2797 = vpop.f32.mrb[0].mxu0
        %v2798 = vpop.f32.mrb[0].mxu0
        %2799 = vdwg.mxu0
        %v2801 = vsel %vm2209, %v2666, 0
        %2803 = vmatprep.subr.bf16.mxu0 0
        %2804 = vmatpush1.bf16.xpose.msra.mxu0 %v2672
        %2805 = vmatprep.subr.bf16.mxu0 0
        %2806 = vmatpush1.bf16.xpose.msra.mxu0 0
        %2807 = vmatprep.subr.bf16.mxu0 0
        %2808 = vmatpush1.bf16.xpose.msra.mxu0 0
        %2809 = vmatprep.subr.bf16.mxu0 0
        %2810 = vmatpush1.bf16.xpose.msra.mxu0 0
        %2811 = vmatprep.subr.bf16.mxu0 0
        %2812 = vmatpush1.bf16.xpose.msra.mxu0 0
        %2813 = vmatprep.subr.bf16.mxu0 0
        %2814 = vmatpush1.bf16.xpose.msra.mxu0 0
        %2815 = vmatprep.subr.bf16.mxu0 0
        %2816 = vmatpush1.bf16.xpose.msra.mxu0 0
        %2817 = vmatprep.subr.bf16.mxu0 0
        %2818 = vmatpush1.bf16.xpose.msra.mxu0 0
        %2819 = vmatprep.subr.bf16.mxu0 0
        %2820 = vmatpush1.bf16.xpose.msra.mxu0 0
        %2821 = vmatprep.subr.bf16.mxu0 0
        %2822 = vmatpush1.bf16.xpose.msra.mxu0 0
        %2823 = vmatprep.subr.bf16.mxu0 0
        %2824 = vmatpush1.bf16.xpose.msra.mxu0 0
        %2825 = vmatprep.subr.bf16.mxu0 0
        %2826 = vmatpush1.bf16.xpose.msra.mxu0 0
        %2827 = vmatprep.subr.bf16.mxu0 0
        %2828 = vmatpush1.bf16.xpose.msra.mxu0 0
        %2829 = vmatprep.subr.bf16.mxu0 0
        %2830 = vmatpush1.bf16.xpose.msra.mxu0 0
        %2831 = vmatprep.subr.bf16.mxu0 0
        %2832 = vmatpush1.bf16.xpose.msra.mxu0 0
        %2833 = vmatprep.subr.bf16.mxu0 0
        %2834 = vmatpush1.bf16.xpose.msra.mxu0 0
        %2835 = vmatprep.mubr.bf16.mxu0 0
        %2836 = vmatmul.mubr.bf16.gmra.mrb[0].mxu0 %v2801
        %v2837 = vpop.f32.mrb[0].mxu0
        %v2838 = vadd.f32 0.0, %v2837
        %v2839 = vpop.f32.mrb[0].mxu0
        %v2840 = vpop.f32.mrb[0].mxu0
        %v2841 = vpop.f32.mrb[0].mxu0
        %2842 = vdwg.mxu0
        %v2844 = vsel %vm2209, %v2646, 0
        %v2847 = vsel %vm2209, %v2650, 0
        %2849 = vmatprep.subr.bf16.mxu0 0
        %2850 = vmatpush1.bf16.xpose.msra.mxu0 %v2847
        %2851 = vmatprep.subr.bf16.mxu0 0
        %2852 = vmatpush1.bf16.xpose.msra.mxu0 0
        %2853 = vmatprep.subr.bf16.mxu0 0
        %2854 = vmatpush1.bf16.xpose.msra.mxu0 0
        %2855 = vmatprep.subr.bf16.mxu0 0
        %2856 = vmatpush1.bf16.xpose.msra.mxu0 0
        %2857 = vmatprep.subr.bf16.mxu0 0
        %2858 = vmatpush1.bf16.xpose.msra.mxu0 0
        %2859 = vmatprep.subr.bf16.mxu0 0
        %2860 = vmatpush1.bf16.xpose.msra.mxu0 0
        %2861 = vmatprep.subr.bf16.mxu0 0
        %2862 = vmatpush1.bf16.xpose.msra.mxu0 0
        %2863 = vmatprep.subr.bf16.mxu0 0
        %2864 = vmatpush1.bf16.xpose.msra.mxu0 0
        %2865 = vmatprep.subr.bf16.mxu0 0
        %2866 = vmatpush1.bf16.xpose.msra.mxu0 0
        %2867 = vmatprep.subr.bf16.mxu0 0
        %2868 = vmatpush1.bf16.xpose.msra.mxu0 0
        %2869 = vmatprep.subr.bf16.mxu0 0
        %2870 = vmatpush1.bf16.xpose.msra.mxu0 0
        %2871 = vmatprep.subr.bf16.mxu0 0
        %2872 = vmatpush1.bf16.xpose.msra.mxu0 0
        %2873 = vmatprep.subr.bf16.mxu0 0
        %2874 = vmatpush1.bf16.xpose.msra.mxu0 0
        %2875 = vmatprep.subr.bf16.mxu0 0
        %2876 = vmatpush1.bf16.xpose.msra.mxu0 0
        %2877 = vmatprep.subr.bf16.mxu0 0
        %2878 = vmatpush1.bf16.xpose.msra.mxu0 0
        %2879 = vmatprep.subr.bf16.mxu0 0
        %2880 = vmatpush1.bf16.xpose.msra.mxu0 0
        %2881 = vmatprep.mubr.bf16.mxu0 0
        %2882 = vmatmul.mubr.bf16.gmra.mrb[0].mxu0 %v2844
        %v2883 = vpop.f32.mrb[0].mxu0
        %v2884 = vadd.f32 %v2709, %v2883
        %v2885 = vpop.f32.mrb[0].mxu0
        %v2886 = vpop.f32.mrb[0].mxu0
        %v2887 = vpop.f32.mrb[0].mxu0
        %2888 = vdwg.mxu0
        %v2890 = vsel %vm2209, %v2647, 0
        %2892 = vmatprep.subr.bf16.mxu0 0
        %2893 = vmatpush1.bf16.xpose.msra.mxu0 %v2847
        %2894 = vmatprep.subr.bf16.mxu0 0
        %2895 = vmatpush1.bf16.xpose.msra.mxu0 0
        %2896 = vmatprep.subr.bf16.mxu0 0
        %2897 = vmatpush1.bf16.xpose.msra.mxu0 0
        %2898 = vmatprep.subr.bf16.mxu0 0
        %2899 = vmatpush1.bf16.xpose.msra.mxu0 0
        %2900 = vmatprep.subr.bf16.mxu0 0
        %2901 = vmatpush1.bf16.xpose.msra.mxu0 0
        %2902 = vmatprep.subr.bf16.mxu0 0
        %2903 = vmatpush1.bf16.xpose.msra.mxu0 0
        %2904 = vmatprep.subr.bf16.mxu0 0
        %2905 = vmatpush1.bf16.xpose.msra.mxu0 0
        %2906 = vmatprep.subr.bf16.mxu0 0
        %2907 = vmatpush1.bf16.xpose.msra.mxu0 0
        %2908 = vmatprep.subr.bf16.mxu0 0
        %2909 = vmatpush1.bf16.xpose.msra.mxu0 0
        %2910 = vmatprep.subr.bf16.mxu0 0
        %2911 = vmatpush1.bf16.xpose.msra.mxu0 0
        %2912 = vmatprep.subr.bf16.mxu0 0
        %2913 = vmatpush1.bf16.xpose.msra.mxu0 0
        %2914 = vmatprep.subr.bf16.mxu0 0
        %2915 = vmatpush1.bf16.xpose.msra.mxu0 0
        %2916 = vmatprep.subr.bf16.mxu0 0
        %2917 = vmatpush1.bf16.xpose.msra.mxu0 0
        %2918 = vmatprep.subr.bf16.mxu0 0
        %2919 = vmatpush1.bf16.xpose.msra.mxu0 0
        %2920 = vmatprep.subr.bf16.mxu0 0
        %2921 = vmatpush1.bf16.xpose.msra.mxu0 0
        %2922 = vmatprep.subr.bf16.mxu0 0
        %2923 = vmatpush1.bf16.xpose.msra.mxu0 0
        %2924 = vmatprep.mubr.bf16.mxu0 0
        %2925 = vmatmul.mubr.bf16.gmra.mrb[0].mxu0 %v2890
        %v2926 = vpop.f32.mrb[0].mxu0
        %v2927 = vadd.f32 %v2752, %v2926
        %v2928 = vpop.f32.mrb[0].mxu0
        %v2929 = vpop.f32.mrb[0].mxu0
        %v2930 = vpop.f32.mrb[0].mxu0
        %2931 = vdwg.mxu0
        %v2933 = vsel %vm2209, %v2648, 0
        %2935 = vmatprep.subr.bf16.mxu0 0
        %2936 = vmatpush1.bf16.xpose.msra.mxu0 %v2847
        %2937 = vmatprep.subr.bf16.mxu0 0
        %2938 = vmatpush1.bf16.xpose.msra.mxu0 0
        %2939 = vmatprep.subr.bf16.mxu0 0
        %2940 = vmatpush1.bf16.xpose.msra.mxu0 0
        %2941 = vmatprep.subr.bf16.mxu0 0
        %2942 = vmatpush1.bf16.xpose.msra.mxu0 0
        %2943 = vmatprep.subr.bf16.mxu0 0
        %2944 = vmatpush1.bf16.xpose.msra.mxu0 0
        %2945 = vmatprep.subr.bf16.mxu0 0
        %2946 = vmatpush1.bf16.xpose.msra.mxu0 0
        %2947 = vmatprep.subr.bf16.mxu0 0
        %2948 = vmatpush1.bf16.xpose.msra.mxu0 0
        %2949 = vmatprep.subr.bf16.mxu0 0
        %2950 = vmatpush1.bf16.xpose.msra.mxu0 0
        %2951 = vmatprep.subr.bf16.mxu0 0
        %2952 = vmatpush1.bf16.xpose.msra.mxu0 0
        %2953 = vmatprep.subr.bf16.mxu0 0
        %2954 = vmatpush1.bf16.xpose.msra.mxu0 0
        %2955 = vmatprep.subr.bf16.mxu0 0
        %2956 = vmatpush1.bf16.xpose.msra.mxu0 0
        %2957 = vmatprep.subr.bf16.mxu0 0
        %2958 = vmatpush1.bf16.xpose.msra.mxu0 0
        %2959 = vmatprep.subr.bf16.mxu0 0
        %2960 = vmatpush1.bf16.xpose.msra.mxu0 0
        %2961 = vmatprep.subr.bf16.mxu0 0
        %2962 = vmatpush1.bf16.xpose.msra.mxu0 0
        %2963 = vmatprep.subr.bf16.mxu0 0
        %2964 = vmatpush1.bf16.xpose.msra.mxu0 0
        %2965 = vmatprep.subr.bf16.mxu0 0
        %2966 = vmatpush1.bf16.xpose.msra.mxu0 0
        %2967 = vmatprep.mubr.bf16.mxu0 0
        %2968 = vmatmul.mubr.bf16.gmra.mrb[0].mxu0 %v2933
        %v2969 = vpop.f32.mrb[0].mxu0
        %v2970 = vadd.f32 %v2795, %v2969
        %v2971 = vpop.f32.mrb[0].mxu0
        %v2972 = vpop.f32.mrb[0].mxu0
        %v2973 = vpop.f32.mrb[0].mxu0
        %2974 = vdwg.mxu0
        %v2976 = vsel %vm2209, %v2649, 0
        %2978 = vmatprep.subr.bf16.mxu0 0
        %2979 = vmatpush1.bf16.xpose.msra.mxu0 %v2847
        %2980 = vmatprep.subr.bf16.mxu0 0
        %2981 = vmatpush1.bf16.xpose.msra.mxu0 0
        %2982 = vmatprep.subr.bf16.mxu0 0
        %2983 = vmatpush1.bf16.xpose.msra.mxu0 0
        %2984 = vmatprep.subr.bf16.mxu0 0
        %2985 = vmatpush1.bf16.xpose.msra.mxu0 0
        %2986 = vmatprep.subr.bf16.mxu0 0
        %2987 = vmatpush1.bf16.xpose.msra.mxu0 0
        %2988 = vmatprep.subr.bf16.mxu0 0
        %2989 = vmatpush1.bf16.xpose.msra.mxu0 0
        %2990 = vmatprep.subr.bf16.mxu0 0
        %2991 = vmatpush1.bf16.xpose.msra.mxu0 0
        %2992 = vmatprep.subr.bf16.mxu0 0
        %2993 = vmatpush1.bf16.xpose.msra.mxu0 0
        %2994 = vmatprep.subr.bf16.mxu0 0
        %2995 = vmatpush1.bf16.xpose.msra.mxu0 0
        %2996 = vmatprep.subr.bf16.mxu0 0
        %2997 = vmatpush1.bf16.xpose.msra.mxu0 0
        %2998 = vmatprep.subr.bf16.mxu0 0
        %2999 = vmatpush1.bf16.xpose.msra.mxu0 0
        %3000 = vmatprep.subr.bf16.mxu0 0
        %3001 = vmatpush1.bf16.xpose.msra.mxu0 0
        %3002 = vmatprep.subr.bf16.mxu0 0
        %3003 = vmatpush1.bf16.xpose.msra.mxu0 0
        %3004 = vmatprep.subr.bf16.mxu0 0
        %3005 = vmatpush1.bf16.xpose.msra.mxu0 0
        %3006 = vmatprep.subr.bf16.mxu0 0
        %3007 = vmatpush1.bf16.xpose.msra.mxu0 0
        %3008 = vmatprep.subr.bf16.mxu0 0
        %3009 = vmatpush1.bf16.xpose.msra.mxu0 0
        %3010 = vmatprep.mubr.bf16.mxu0 0
        %3011 = vmatmul.mubr.bf16.gmra.mrb[0].mxu0 %v2976
        %v3012 = vpop.f32.mrb[0].mxu0
        %v3013 = vadd.f32 %v2838, %v3012
        %v3014 = vpop.f32.mrb[0].mxu0
        %v3015 = vpop.f32.mrb[0].mxu0
        %v3016 = vpop.f32.mrb[0].mxu0
        %3017 = vdwg.mxu0
        %v3018 = vmul.f32 %v1512, %v995
        %v3019 = vmul.f32 %v1564, %v995
        %v3020 = vmul.f32 %v1616, %v995
        %v3021 = vmul.f32 %v1668, %v995
        %v3022 = vmul.f32 %v1736, %v994
        %v3023 = vmul.f32 %v1788, %v994
        %v3024 = vmul.f32 %v1840, %v994
        %v3025 = vmul.f32 %v1892, %v994
        %v3026 = vadd.f32 %v3018, %v3022
        %v3027 = vadd.f32 %v3019, %v3023
        %v3028 = vadd.f32 %v3020, %v3024
        %v3029 = vadd.f32 %v3021, %v3025
        %v3030 = vpack.c.bf16 %v3026, %v3026
        %v3031 = vpack.c.bf16 %v3027, %v3027
        %v3032 = vpack.c.bf16 %v3028, %v3028
        %v3033 = vpack.c.bf16 %v3029, %v3029
        %v3034 = vmul.f32 %v1736, %v995
        %v3035 = vmul.f32 %v1788, %v995
        %v3036 = vmul.f32 %v1840, %v995
        %v3037 = vmul.f32 %v1892, %v995
        %v3038 = vmul.f32 %v1512, %v994
        %v3039 = vmul.f32 %v1564, %v994
        %v3040 = vmul.f32 %v1616, %v994
        %v3041 = vmul.f32 %v1668, %v994
        %v3042 = vsub.f32 %v3034, %v3038
        %v3043 = vsub.f32 %v3035, %v3039
        %v3044 = vsub.f32 %v3036, %v3040
        %v3045 = vsub.f32 %v3037, %v3041
        %v3046 = vpack.c.bf16 %v3042, %v3042
        %v3047 = vpack.c.bf16 %v3043, %v3043
        %v3048 = vpack.c.bf16 %v3044, %v3044
        %v3049 = vpack.c.bf16 %v3045, %v3045
        %v3051 = vsel %vm2209, %v3046, 0
        %3053 = vmatprep.subr.bf16.mxu0 0
        %3054 = vmatpush1.bf16.xpose.msra.mxu0 %v3051
        %3055 = vmatprep.subr.bf16.mxu0 0
        %3056 = vmatpush1.bf16.xpose.msra.mxu0 0
        %3057 = vmatprep.subr.bf16.mxu0 0
        %3058 = vmatpush1.bf16.xpose.msra.mxu0 0
        %3059 = vmatprep.subr.bf16.mxu0 0
        %3060 = vmatpush1.bf16.xpose.msra.mxu0 0
        %3061 = vmatprep.subr.bf16.mxu0 0
        %3062 = vmatpush1.bf16.xpose.msra.mxu0 0
        %3063 = vmatprep.subr.bf16.mxu0 0
        %3064 = vmatpush1.bf16.xpose.msra.mxu0 0
        %3065 = vmatprep.subr.bf16.mxu0 0
        %3066 = vmatpush1.bf16.xpose.msra.mxu0 0
        %3067 = vmatprep.subr.bf16.mxu0 0
        %3068 = vmatpush1.bf16.xpose.msra.mxu0 0
        %3069 = vmatprep.subr.bf16.mxu0 0
        %3070 = vmatpush1.bf16.xpose.msra.mxu0 0
        %3071 = vmatprep.subr.bf16.mxu0 0
        %3072 = vmatpush1.bf16.xpose.msra.mxu0 0
        %3073 = vmatprep.subr.bf16.mxu0 0
        %3074 = vmatpush1.bf16.xpose.msra.mxu0 0
        %3075 = vmatprep.subr.bf16.mxu0 0
        %3076 = vmatpush1.bf16.xpose.msra.mxu0 0
        %3077 = vmatprep.subr.bf16.mxu0 0
        %3078 = vmatpush1.bf16.xpose.msra.mxu0 0
        %3079 = vmatprep.subr.bf16.mxu0 0
        %3080 = vmatpush1.bf16.xpose.msra.mxu0 0
        %3081 = vmatprep.subr.bf16.mxu0 0
        %3082 = vmatpush1.bf16.xpose.msra.mxu0 0
        %3083 = vmatprep.subr.bf16.mxu0 0
        %3084 = vmatpush1.bf16.xpose.msra.mxu0 0
        %3085 = vmatprep.mubr.bf16.mxu0 0
        %3086 = vmatmul.mubr.bf16.gmra.mrb[0].mxu0 %v2672
        %v3087 = vpop.f32.mrb[0].mxu0
        %v3088 = vadd.f32 0.0, %v3087
        %v3089 = vpop.f32.mrb[0].mxu0
        %v3090 = vpop.f32.mrb[0].mxu0
        %v3091 = vpop.f32.mrb[0].mxu0
        %3092 = vdwg.mxu0
        %v3094 = vsel %vm2209, %v3047, 0
        %3096 = vmatprep.subr.bf16.mxu0 0
        %3097 = vmatpush1.bf16.xpose.msra.mxu0 %v3094
        %3098 = vmatprep.subr.bf16.mxu0 0
        %3099 = vmatpush1.bf16.xpose.msra.mxu0 0
        %3100 = vmatprep.subr.bf16.mxu0 0
        %3101 = vmatpush1.bf16.xpose.msra.mxu0 0
        %3102 = vmatprep.subr.bf16.mxu0 0
        %3103 = vmatpush1.bf16.xpose.msra.mxu0 0
        %3104 = vmatprep.subr.bf16.mxu0 0
        %3105 = vmatpush1.bf16.xpose.msra.mxu0 0
        %3106 = vmatprep.subr.bf16.mxu0 0
        %3107 = vmatpush1.bf16.xpose.msra.mxu0 0
        %3108 = vmatprep.subr.bf16.mxu0 0
        %3109 = vmatpush1.bf16.xpose.msra.mxu0 0
        %3110 = vmatprep.subr.bf16.mxu0 0
        %3111 = vmatpush1.bf16.xpose.msra.mxu0 0
        %3112 = vmatprep.subr.bf16.mxu0 0
        %3113 = vmatpush1.bf16.xpose.msra.mxu0 0
        %3114 = vmatprep.subr.bf16.mxu0 0
        %3115 = vmatpush1.bf16.xpose.msra.mxu0 0
        %3116 = vmatprep.subr.bf16.mxu0 0
        %3117 = vmatpush1.bf16.xpose.msra.mxu0 0
        %3118 = vmatprep.subr.bf16.mxu0 0
        %3119 = vmatpush1.bf16.xpose.msra.mxu0 0
        %3120 = vmatprep.subr.bf16.mxu0 0
        %3121 = vmatpush1.bf16.xpose.msra.mxu0 0
        %3122 = vmatprep.subr.bf16.mxu0 0
        %3123 = vmatpush1.bf16.xpose.msra.mxu0 0
        %3124 = vmatprep.subr.bf16.mxu0 0
        %3125 = vmatpush1.bf16.xpose.msra.mxu0 0
        %3126 = vmatprep.subr.bf16.mxu0 0
        %3127 = vmatpush1.bf16.xpose.msra.mxu0 0
        %3128 = vmatprep.mubr.bf16.mxu0 0
        %3129 = vmatmul.mubr.bf16.gmra.mrb[0].mxu0 %v2672
        %v3130 = vpop.f32.mrb[0].mxu0
        %v3131 = vadd.f32 0.0, %v3130
        %v3132 = vpop.f32.mrb[0].mxu0
        %v3133 = vpop.f32.mrb[0].mxu0
        %v3134 = vpop.f32.mrb[0].mxu0
        %3135 = vdwg.mxu0
        %v3137 = vsel %vm2209, %v3048, 0
        %3139 = vmatprep.subr.bf16.mxu0 0
        %3140 = vmatpush1.bf16.xpose.msra.mxu0 %v3137
        %3141 = vmatprep.subr.bf16.mxu0 0
        %3142 = vmatpush1.bf16.xpose.msra.mxu0 0
        %3143 = vmatprep.subr.bf16.mxu0 0
        %3144 = vmatpush1.bf16.xpose.msra.mxu0 0
        %3145 = vmatprep.subr.bf16.mxu0 0
        %3146 = vmatpush1.bf16.xpose.msra.mxu0 0
        %3147 = vmatprep.subr.bf16.mxu0 0
        %3148 = vmatpush1.bf16.xpose.msra.mxu0 0
        %3149 = vmatprep.subr.bf16.mxu0 0
        %3150 = vmatpush1.bf16.xpose.msra.mxu0 0
        %3151 = vmatprep.subr.bf16.mxu0 0
        %3152 = vmatpush1.bf16.xpose.msra.mxu0 0
        %3153 = vmatprep.subr.bf16.mxu0 0
        %3154 = vmatpush1.bf16.xpose.msra.mxu0 0
        %3155 = vmatprep.subr.bf16.mxu0 0
        %3156 = vmatpush1.bf16.xpose.msra.mxu0 0
        %3157 = vmatprep.subr.bf16.mxu0 0
        %3158 = vmatpush1.bf16.xpose.msra.mxu0 0
        %3159 = vmatprep.subr.bf16.mxu0 0
        %3160 = vmatpush1.bf16.xpose.msra.mxu0 0
        %3161 = vmatprep.subr.bf16.mxu0 0
        %3162 = vmatpush1.bf16.xpose.msra.mxu0 0
        %3163 = vmatprep.subr.bf16.mxu0 0
        %3164 = vmatpush1.bf16.xpose.msra.mxu0 0
        %3165 = vmatprep.subr.bf16.mxu0 0
        %3166 = vmatpush1.bf16.xpose.msra.mxu0 0
        %3167 = vmatprep.subr.bf16.mxu0 0
        %3168 = vmatpush1.bf16.xpose.msra.mxu0 0
        %3169 = vmatprep.subr.bf16.mxu0 0
        %3170 = vmatpush1.bf16.xpose.msra.mxu0 0
        %3171 = vmatprep.mubr.bf16.mxu0 0
        %3172 = vmatmul.mubr.bf16.gmra.mrb[0].mxu0 %v2672
        %v3173 = vpop.f32.mrb[0].mxu0
        %v3174 = vadd.f32 0.0, %v3173
        %v3175 = vpop.f32.mrb[0].mxu0
        %v3176 = vpop.f32.mrb[0].mxu0
        %v3177 = vpop.f32.mrb[0].mxu0
        %3178 = vdwg.mxu0
        %v3180 = vsel %vm2209, %v3049, 0
        %3182 = vmatprep.subr.bf16.mxu0 0
        %3183 = vmatpush1.bf16.xpose.msra.mxu0 %v3180
        %3184 = vmatprep.subr.bf16.mxu0 0
        %3185 = vmatpush1.bf16.xpose.msra.mxu0 0
        %3186 = vmatprep.subr.bf16.mxu0 0
        %3187 = vmatpush1.bf16.xpose.msra.mxu0 0
        %3188 = vmatprep.subr.bf16.mxu0 0
        %3189 = vmatpush1.bf16.xpose.msra.mxu0 0
        %3190 = vmatprep.subr.bf16.mxu0 0
        %3191 = vmatpush1.bf16.xpose.msra.mxu0 0
        %3192 = vmatprep.subr.bf16.mxu0 0
        %3193 = vmatpush1.bf16.xpose.msra.mxu0 0
        %3194 = vmatprep.subr.bf16.mxu0 0
        %3195 = vmatpush1.bf16.xpose.msra.mxu0 0
        %3196 = vmatprep.subr.bf16.mxu0 0
        %3197 = vmatpush1.bf16.xpose.msra.mxu0 0
        %3198 = vmatprep.subr.bf16.mxu0 0
        %3199 = vmatpush1.bf16.xpose.msra.mxu0 0
        %3200 = vmatprep.subr.bf16.mxu0 0
        %3201 = vmatpush1.bf16.xpose.msra.mxu0 0
        %3202 = vmatprep.subr.bf16.mxu0 0
        %3203 = vmatpush1.bf16.xpose.msra.mxu0 0
        %3204 = vmatprep.subr.bf16.mxu0 0
        %3205 = vmatpush1.bf16.xpose.msra.mxu0 0
        %3206 = vmatprep.subr.bf16.mxu0 0
        %3207 = vmatpush1.bf16.xpose.msra.mxu0 0
        %3208 = vmatprep.subr.bf16.mxu0 0
        %3209 = vmatpush1.bf16.xpose.msra.mxu0 0
        %3210 = vmatprep.subr.bf16.mxu0 0
        %3211 = vmatpush1.bf16.xpose.msra.mxu0 0
        %3212 = vmatprep.subr.bf16.mxu0 0
        %3213 = vmatpush1.bf16.xpose.msra.mxu0 0
        %3214 = vmatprep.mubr.bf16.mxu0 0
        %3215 = vmatmul.mubr.bf16.gmra.mrb[0].mxu0 %v2672
        %v3216 = vpop.f32.mrb[0].mxu0
        %v3217 = vadd.f32 0.0, %v3216
        %v3218 = vpop.f32.mrb[0].mxu0
        %v3219 = vpop.f32.mrb[0].mxu0
        %v3220 = vpop.f32.mrb[0].mxu0
        %3221 = vdwg.mxu0
        %v3223 = vsel %vm2209, %v3030, 0
        %3225 = vmatprep.subr.bf16.mxu0 0
        %3226 = vmatpush1.bf16.xpose.msra.mxu0 %v3223
        %3227 = vmatprep.subr.bf16.mxu0 0
        %3228 = vmatpush1.bf16.xpose.msra.mxu0 0
        %3229 = vmatprep.subr.bf16.mxu0 0
        %3230 = vmatpush1.bf16.xpose.msra.mxu0 0
        %3231 = vmatprep.subr.bf16.mxu0 0
        %3232 = vmatpush1.bf16.xpose.msra.mxu0 0
        %3233 = vmatprep.subr.bf16.mxu0 0
        %3234 = vmatpush1.bf16.xpose.msra.mxu0 0
        %3235 = vmatprep.subr.bf16.mxu0 0
        %3236 = vmatpush1.bf16.xpose.msra.mxu0 0
        %3237 = vmatprep.subr.bf16.mxu0 0
        %3238 = vmatpush1.bf16.xpose.msra.mxu0 0
        %3239 = vmatprep.subr.bf16.mxu0 0
        %3240 = vmatpush1.bf16.xpose.msra.mxu0 0
        %3241 = vmatprep.subr.bf16.mxu0 0
        %3242 = vmatpush1.bf16.xpose.msra.mxu0 0
        %3243 = vmatprep.subr.bf16.mxu0 0
        %3244 = vmatpush1.bf16.xpose.msra.mxu0 0
        %3245 = vmatprep.subr.bf16.mxu0 0
        %3246 = vmatpush1.bf16.xpose.msra.mxu0 0
        %3247 = vmatprep.subr.bf16.mxu0 0
        %3248 = vmatpush1.bf16.xpose.msra.mxu0 0
        %3249 = vmatprep.subr.bf16.mxu0 0
        %3250 = vmatpush1.bf16.xpose.msra.mxu0 0
        %3251 = vmatprep.subr.bf16.mxu0 0
        %3252 = vmatpush1.bf16.xpose.msra.mxu0 0
        %3253 = vmatprep.subr.bf16.mxu0 0
        %3254 = vmatpush1.bf16.xpose.msra.mxu0 0
        %3255 = vmatprep.subr.bf16.mxu0 0
        %3256 = vmatpush1.bf16.xpose.msra.mxu0 0
        %3257 = vmatprep.mubr.bf16.mxu0 0
        %3258 = vmatmul.mubr.bf16.gmra.mrb[0].mxu0 %v2847
        %v3259 = vpop.f32.mrb[0].mxu0
        %v3260 = vadd.f32 %v3088, %v3259
        %v3261 = vpop.f32.mrb[0].mxu0
        %v3262 = vpop.f32.mrb[0].mxu0
        %v3263 = vpop.f32.mrb[0].mxu0
        %3264 = vdwg.mxu0
        %v3266 = vsel %vm2209, %v3031, 0
        %3268 = vmatprep.subr.bf16.mxu0 0
        %3269 = vmatpush1.bf16.xpose.msra.mxu0 %v3266
        %3270 = vmatprep.subr.bf16.mxu0 0
        %3271 = vmatpush1.bf16.xpose.msra.mxu0 0
        %3272 = vmatprep.subr.bf16.mxu0 0
        %3273 = vmatpush1.bf16.xpose.msra.mxu0 0
        %3274 = vmatprep.subr.bf16.mxu0 0
        %3275 = vmatpush1.bf16.xpose.msra.mxu0 0
        %3276 = vmatprep.subr.bf16.mxu0 0
        %3277 = vmatpush1.bf16.xpose.msra.mxu0 0
        %3278 = vmatprep.subr.bf16.mxu0 0
        %3279 = vmatpush1.bf16.xpose.msra.mxu0 0
        %3280 = vmatprep.subr.bf16.mxu0 0
        %3281 = vmatpush1.bf16.xpose.msra.mxu0 0
        %3282 = vmatprep.subr.bf16.mxu0 0
        %3283 = vmatpush1.bf16.xpose.msra.mxu0 0
        %3284 = vmatprep.subr.bf16.mxu0 0
        %3285 = vmatpush1.bf16.xpose.msra.mxu0 0
        %3286 = vmatprep.subr.bf16.mxu0 0
        %3287 = vmatpush1.bf16.xpose.msra.mxu0 0
        %3288 = vmatprep.subr.bf16.mxu0 0
        %3289 = vmatpush1.bf16.xpose.msra.mxu0 0
        %3290 = vmatprep.subr.bf16.mxu0 0
        %3291 = vmatpush1.bf16.xpose.msra.mxu0 0
        %3292 = vmatprep.subr.bf16.mxu0 0
        %3293 = vmatpush1.bf16.xpose.msra.mxu0 0
        %3294 = vmatprep.subr.bf16.mxu0 0
        %3295 = vmatpush1.bf16.xpose.msra.mxu0 0
        %3296 = vmatprep.subr.bf16.mxu0 0
        %3297 = vmatpush1.bf16.xpose.msra.mxu0 0
        %3298 = vmatprep.subr.bf16.mxu0 0
        %3299 = vmatpush1.bf16.xpose.msra.mxu0 0
        %3300 = vmatprep.mubr.bf16.mxu0 0
        %3301 = vmatmul.mubr.bf16.gmra.mrb[0].mxu0 %v2847
        %v3302 = vpop.f32.mrb[0].mxu0
        %v3303 = vadd.f32 %v3131, %v3302
        %v3304 = vpop.f32.mrb[0].mxu0
        %v3305 = vpop.f32.mrb[0].mxu0
        %v3306 = vpop.f32.mrb[0].mxu0
        %3307 = vdwg.mxu0
        %v3309 = vsel %vm2209, %v3032, 0
        %3311 = vmatprep.subr.bf16.mxu0 0
        %3312 = vmatpush1.bf16.xpose.msra.mxu0 %v3309
        %3313 = vmatprep.subr.bf16.mxu0 0
        %3314 = vmatpush1.bf16.xpose.msra.mxu0 0
        %3315 = vmatprep.subr.bf16.mxu0 0
        %3316 = vmatpush1.bf16.xpose.msra.mxu0 0
        %3317 = vmatprep.subr.bf16.mxu0 0
        %3318 = vmatpush1.bf16.xpose.msra.mxu0 0
        %3319 = vmatprep.subr.bf16.mxu0 0
        %3320 = vmatpush1.bf16.xpose.msra.mxu0 0
        %3321 = vmatprep.subr.bf16.mxu0 0
        %3322 = vmatpush1.bf16.xpose.msra.mxu0 0
        %3323 = vmatprep.subr.bf16.mxu0 0
        %3324 = vmatpush1.bf16.xpose.msra.mxu0 0
        %3325 = vmatprep.subr.bf16.mxu0 0
        %3326 = vmatpush1.bf16.xpose.msra.mxu0 0
        %3327 = vmatprep.subr.bf16.mxu0 0
        %3328 = vmatpush1.bf16.xpose.msra.mxu0 0
        %3329 = vmatprep.subr.bf16.mxu0 0
        %3330 = vmatpush1.bf16.xpose.msra.mxu0 0
        %3331 = vmatprep.subr.bf16.mxu0 0
        %3332 = vmatpush1.bf16.xpose.msra.mxu0 0
        %3333 = vmatprep.subr.bf16.mxu0 0
        %3334 = vmatpush1.bf16.xpose.msra.mxu0 0
        %3335 = vmatprep.subr.bf16.mxu0 0
        %3336 = vmatpush1.bf16.xpose.msra.mxu0 0
        %3337 = vmatprep.subr.bf16.mxu0 0
        %3338 = vmatpush1.bf16.xpose.msra.mxu0 0
        %3339 = vmatprep.subr.bf16.mxu0 0
        %3340 = vmatpush1.bf16.xpose.msra.mxu0 0
        %3341 = vmatprep.subr.bf16.mxu0 0
        %3342 = vmatpush1.bf16.xpose.msra.mxu0 0
        %3343 = vmatprep.mubr.bf16.mxu0 0
        %3344 = vmatmul.mubr.bf16.gmra.mrb[0].mxu0 %v2847
        %v3345 = vpop.f32.mrb[0].mxu0
        %v3346 = vadd.f32 %v3174, %v3345
        %v3347 = vpop.f32.mrb[0].mxu0
        %v3348 = vpop.f32.mrb[0].mxu0
        %v3349 = vpop.f32.mrb[0].mxu0
        %3350 = vdwg.mxu0
        %v3352 = vsel %vm2209, %v3033, 0
        %3354 = vmatprep.subr.bf16.mxu0 0
        %3355 = vmatpush1.bf16.xpose.msra.mxu0 %v3352
        %3356 = vmatprep.subr.bf16.mxu0 0
        %3357 = vmatpush1.bf16.xpose.msra.mxu0 0
        %3358 = vmatprep.subr.bf16.mxu0 0
        %3359 = vmatpush1.bf16.xpose.msra.mxu0 0
        %3360 = vmatprep.subr.bf16.mxu0 0
        %3361 = vmatpush1.bf16.xpose.msra.mxu0 0
        %3362 = vmatprep.subr.bf16.mxu0 0
        %3363 = vmatpush1.bf16.xpose.msra.mxu0 0
        %3364 = vmatprep.subr.bf16.mxu0 0
        %3365 = vmatpush1.bf16.xpose.msra.mxu0 0
        %3366 = vmatprep.subr.bf16.mxu0 0
        %3367 = vmatpush1.bf16.xpose.msra.mxu0 0
        %3368 = vmatprep.subr.bf16.mxu0 0
        %3369 = vmatpush1.bf16.xpose.msra.mxu0 0
        %3370 = vmatprep.subr.bf16.mxu0 0
        %3371 = vmatpush1.bf16.xpose.msra.mxu0 0
        %3372 = vmatprep.subr.bf16.mxu0 0
        %3373 = vmatpush1.bf16.xpose.msra.mxu0 0
        %3374 = vmatprep.subr.bf16.mxu0 0
        %3375 = vmatpush1.bf16.xpose.msra.mxu0 0
        %3376 = vmatprep.subr.bf16.mxu0 0
        %3377 = vmatpush1.bf16.xpose.msra.mxu0 0
        %3378 = vmatprep.subr.bf16.mxu0 0
        %3379 = vmatpush1.bf16.xpose.msra.mxu0 0
        %3380 = vmatprep.subr.bf16.mxu0 0
        %3381 = vmatpush1.bf16.xpose.msra.mxu0 0
        %3382 = vmatprep.subr.bf16.mxu0 0
        %3383 = vmatpush1.bf16.xpose.msra.mxu0 0
        %3384 = vmatprep.subr.bf16.mxu0 0
        %3385 = vmatpush1.bf16.xpose.msra.mxu0 0
        %3386 = vmatprep.mubr.bf16.mxu0 0
        %3387 = vmatmul.mubr.bf16.gmra.mrb[0].mxu0 %v2847
        %v3388 = vpop.f32.mrb[0].mxu0
        %v3389 = vadd.f32 %v3217, %v3388
        %v3390 = vpop.f32.mrb[0].mxu0
        %v3391 = vpop.f32.mrb[0].mxu0
        %v3392 = vpop.f32.mrb[0].mxu0
        %3393 = vdwg.mxu0
        %v3394 = vadd.f32 %v2435, %v2884
        %v3395 = vadd.f32 %v2481, %v2927
        %v3396 = vadd.f32 %v2527, %v2970
        %v3397 = vadd.f32 %v2573, %v3013
        %v3398 = vadd.f32 %v3394, %v3260
        %v3399 = vadd.f32 %v3395, %v3303
        %v3400 = vadd.f32 %v3396, %v3346
        %v3401 = vadd.f32 %v3397, %v3389
        %vm3402 = vcmp.gt.f32.partialorder %v993, 0.5
        %v3403 = vsel %vm3402, 1, 0
        %v3404 = vlaneseq
        %v3405 = vshrl.u32 %v3404, 7
        %v3406 = vsub.s32 0, %v3405
        %v3407 = vrot.slane %v3403, %v3406
        %vm3408 = vcmp.eq.s32.totalorder %v3407, 1
        %v3409 = vsel %vm3408, %v3398, -1e+30
        %v3410 = vsel %vm3408, %v3399, -1e+30
        %v3411 = vsel %vm3408, %v3400, -1e+30
        %v3412 = vsel %vm3408, %v3401, -1e+30
        %vm3413 = vcmask 64512
        %v3414 = vsel %vm3413, %v3409, -inf
        %3415 = vmax.xlane.f32.xlu0 %v3414
        %v3416 = vpop.xlane.xlu0 %3415
        %v3417 = vsel %vm3413, %v3410, -inf
        %3418 = vmax.xlane.f32.xlu0 %v3417
        %v3419 = vpop.xlane.xlu0 %3418
        %v3420 = vsel %vm3413, %v3411, -inf
        %3421 = vmax.xlane.f32.xlu0 %v3420
        %v3422 = vpop.xlane.xlu0 %3421
        %v3423 = vsel %vm3413, %v3412, -inf
        %3424 = vmax.xlane.f32.xlu0 %v3423
        %v3425 = vpop.xlane.xlu0 %3424
        %v3426 = vsub.f32 %v3409, %v3416
        %v3427 = vsub.f32 %v3410, %v3419
        %v3428 = vsub.f32 %v3411, %v3422
        %v3429 = vsub.f32 %v3412, %v3425
        %v3430 = vmul.f32 %v3426, 1.442695
        %v3431 = vpow.pop %v3430
        %v3432 = vmul.f32 %v3427, 1.442695
        %v3433 = vpow.pop %v3432
        %v3434 = vmul.f32 %v3428, 1.442695
        %v3435 = vpow.pop %v3434
        %v3436 = vmul.f32 %v3429, 1.442695
        %v3437 = vpow.pop %v3436
        %v3438 = vsel %vm3413, %v3431, 0.0
        %3439 = vadd.xlane.f32.xlu0 %v3438
        %v3440 = vpop.xlane.xlu0 %3439
        %v3441 = vsel %vm3413, %v3433, 0.0
        %3442 = vadd.xlane.f32.xlu0 %v3441
        %v3443 = vpop.xlane.xlu0 %3442
        %v3444 = vsel %vm3413, %v3435, 0.0
        %3445 = vadd.xlane.f32.xlu0 %v3444
        %v3446 = vpop.xlane.xlu0 %3445
        %v3447 = vsel %vm3413, %v3437, 0.0
        %3448 = vadd.xlane.f32.xlu0 %v3447
        %v3449 = vpop.xlane.xlu0 %3448
        %v3450 = vrcp.pop %v3440
        %v3451 = vrcp.pop %v3443
        %v3452 = vrcp.pop %v3446
        %v3453 = vrcp.pop %v3449
        %v3454 = vmul.f32 %v3431, %v3450
        %v3455 = vmul.f32 %v3433, %v3451
        %v3456 = vmul.f32 %v3435, %v3452
        %v3457 = vmul.f32 %v3437, %v3453
        %v3458 = vpack.c.bf16 %v3454, %v3454
        %v3459 = vpack.c.bf16 %v3455, %v3455
        %v3460 = vpack.c.bf16 %v3456, %v3456
        %v3461 = vpack.c.bf16 %v3457, %v3457
        %v3462 = vpack.c.bf16 %v1960, %v1960
        %v3463 = vpack.c.bf16 %v2012, %v2012
        %v3464 = vpack.c.bf16 %v2064, %v2064
        %v3465 = vpack.c.bf16 %v2116, %v2116
        %v3467 = vsel %vm3413, %v3458, 0
        %vm3469 = vcmask 1043456
        %v3471 = vsel %vm3469, %v3462, 0
        %3473 = vmatprep.subr.bf16.mxu0 0
        %3474 = vmatpush1.bf16.msra.mxu0 %v3471
        %3475 = vmatprep.subr.bf16.mxu0 0
        %3476 = vmatpush1.bf16.msra.mxu0 0
        %3477 = vmatprep.subr.bf16.mxu0 0
        %3478 = vmatpush1.bf16.msra.mxu0 0
        %3479 = vmatprep.subr.bf16.mxu0 0
        %3480 = vmatpush1.bf16.msra.mxu0 0
        %3481 = vmatprep.subr.bf16.mxu0 0
        %3482 = vmatpush1.bf16.msra.mxu0 0
        %3483 = vmatprep.subr.bf16.mxu0 0
        %3484 = vmatpush1.bf16.msra.mxu0 0
        %3485 = vmatprep.subr.bf16.mxu0 0
        %3486 = vmatpush1.bf16.msra.mxu0 0
        %3487 = vmatprep.subr.bf16.mxu0 0
        %3488 = vmatpush1.bf16.msra.mxu0 0
        %3489 = vmatprep.subr.bf16.mxu0 0
        %3490 = vmatpush1.bf16.msra.mxu0 0
        %3491 = vmatprep.subr.bf16.mxu0 0
        %3492 = vmatpush1.bf16.msra.mxu0 0
        %3493 = vmatprep.subr.bf16.mxu0 0
        %3494 = vmatpush1.bf16.msra.mxu0 0
        %3495 = vmatprep.subr.bf16.mxu0 0
        %3496 = vmatpush1.bf16.msra.mxu0 0
        %3497 = vmatprep.subr.bf16.mxu0 0
        %3498 = vmatpush1.bf16.msra.mxu0 0
        %3499 = vmatprep.subr.bf16.mxu0 0
        %3500 = vmatpush1.bf16.msra.mxu0 0
        %3501 = vmatprep.subr.bf16.mxu0 0
        %3502 = vmatpush1.bf16.msra.mxu0 0
        %3503 = vmatprep.subr.bf16.mxu0 0
        %3504 = vmatpush1.bf16.msra.mxu0 0
        %3505 = vmatprep.mubr.bf16.mxu0 0
        %3506 = vmatmul.mubr.bf16.gmra.mrb[0].mxu0 %v3467
        %v3507 = vpop.f32.mrb[0].mxu0
        %v3508 = vadd.f32 0.0, %v3507
        %v3509 = vpop.f32.mrb[0].mxu0
        %v3510 = vpop.f32.mrb[0].mxu0
        %v3511 = vpop.f32.mrb[0].mxu0
        %3512 = vdwg.mxu0
        %v3514 = vsel %vm3413, %v3459, 0
        %v3517 = vsel %vm3469, %v3463, 0
        %3519 = vmatprep.subr.bf16.mxu0 0
        %3520 = vmatpush1.bf16.msra.mxu0 %v3517
        %3521 = vmatprep.subr.bf16.mxu0 0
        %3522 = vmatpush1.bf16.msra.mxu0 0
        %3523 = vmatprep.subr.bf16.mxu0 0
        %3524 = vmatpush1.bf16.msra.mxu0 0
        %3525 = vmatprep.subr.bf16.mxu0 0
        %3526 = vmatpush1.bf16.msra.mxu0 0
        %3527 = vmatprep.subr.bf16.mxu0 0
        %3528 = vmatpush1.bf16.msra.mxu0 0
        %3529 = vmatprep.subr.bf16.mxu0 0
        %3530 = vmatpush1.bf16.msra.mxu0 0
        %3531 = vmatprep.subr.bf16.mxu0 0
        %3532 = vmatpush1.bf16.msra.mxu0 0
        %3533 = vmatprep.subr.bf16.mxu0 0
        %3534 = vmatpush1.bf16.msra.mxu0 0
        %3535 = vmatprep.subr.bf16.mxu0 0
        %3536 = vmatpush1.bf16.msra.mxu0 0
        %3537 = vmatprep.subr.bf16.mxu0 0
        %3538 = vmatpush1.bf16.msra.mxu0 0
        %3539 = vmatprep.subr.bf16.mxu0 0
        %3540 = vmatpush1.bf16.msra.mxu0 0
        %3541 = vmatprep.subr.bf16.mxu0 0
        %3542 = vmatpush1.bf16.msra.mxu0 0
        %3543 = vmatprep.subr.bf16.mxu0 0
        %3544 = vmatpush1.bf16.msra.mxu0 0
        %3545 = vmatprep.subr.bf16.mxu0 0
        %3546 = vmatpush1.bf16.msra.mxu0 0
        %3547 = vmatprep.subr.bf16.mxu0 0
        %3548 = vmatpush1.bf16.msra.mxu0 0
        %3549 = vmatprep.subr.bf16.mxu0 0
        %3550 = vmatpush1.bf16.msra.mxu0 0
        %3551 = vmatprep.mubr.bf16.mxu0 0
        %3552 = vmatmul.mubr.bf16.gmra.mrb[0].mxu0 %v3514
        %v3553 = vpop.f32.mrb[0].mxu0
        %v3554 = vadd.f32 0.0, %v3553
        %v3555 = vpop.f32.mrb[0].mxu0
        %v3556 = vpop.f32.mrb[0].mxu0
        %v3557 = vpop.f32.mrb[0].mxu0
        %3558 = vdwg.mxu0
        %v3560 = vsel %vm3413, %v3460, 0
        %v3563 = vsel %vm3469, %v3464, 0
        %3565 = vmatprep.subr.bf16.mxu0 0
        %3566 = vmatpush1.bf16.msra.mxu0 %v3563
        %3567 = vmatprep.subr.bf16.mxu0 0
        %3568 = vmatpush1.bf16.msra.mxu0 0
        %3569 = vmatprep.subr.bf16.mxu0 0
        %3570 = vmatpush1.bf16.msra.mxu0 0
        %3571 = vmatprep.subr.bf16.mxu0 0
        %3572 = vmatpush1.bf16.msra.mxu0 0
        %3573 = vmatprep.subr.bf16.mxu0 0
        %3574 = vmatpush1.bf16.msra.mxu0 0
        %3575 = vmatprep.subr.bf16.mxu0 0
        %3576 = vmatpush1.bf16.msra.mxu0 0
        %3577 = vmatprep.subr.bf16.mxu0 0
        %3578 = vmatpush1.bf16.msra.mxu0 0
        %3579 = vmatprep.subr.bf16.mxu0 0
        %3580 = vmatpush1.bf16.msra.mxu0 0
        %3581 = vmatprep.subr.bf16.mxu0 0
        %3582 = vmatpush1.bf16.msra.mxu0 0
        %3583 = vmatprep.subr.bf16.mxu0 0
        %3584 = vmatpush1.bf16.msra.mxu0 0
        %3585 = vmatprep.subr.bf16.mxu0 0
        %3586 = vmatpush1.bf16.msra.mxu0 0
        %3587 = vmatprep.subr.bf16.mxu0 0
        %3588 = vmatpush1.bf16.msra.mxu0 0
        %3589 = vmatprep.subr.bf16.mxu0 0
        %3590 = vmatpush1.bf16.msra.mxu0 0
        %3591 = vmatprep.subr.bf16.mxu0 0
        %3592 = vmatpush1.bf16.msra.mxu0 0
        %3593 = vmatprep.subr.bf16.mxu0 0
        %3594 = vmatpush1.bf16.msra.mxu0 0
        %3595 = vmatprep.subr.bf16.mxu0 0
        %3596 = vmatpush1.bf16.msra.mxu0 0
        %3597 = vmatprep.mubr.bf16.mxu0 0
        %3598 = vmatmul.mubr.bf16.gmra.mrb[0].mxu0 %v3560
        %v3599 = vpop.f32.mrb[0].mxu0
        %v3600 = vadd.f32 0.0, %v3599
        %v3601 = vpop.f32.mrb[0].mxu0
        %v3602 = vpop.f32.mrb[0].mxu0
        %v3603 = vpop.f32.mrb[0].mxu0
        %3604 = vdwg.mxu0
        %v3606 = vsel %vm3413, %v3461, 0
        %v3609 = vsel %vm3469, %v3465, 0
        %3611 = vmatprep.subr.bf16.mxu0 0
        %3612 = vmatpush1.bf16.msra.mxu0 %v3609
        %3613 = vmatprep.subr.bf16.mxu0 0
        %3614 = vmatpush1.bf16.msra.mxu0 0
        %3615 = vmatprep.subr.bf16.mxu0 0
        %3616 = vmatpush1.bf16.msra.mxu0 0
        %3617 = vmatprep.subr.bf16.mxu0 0
        %3618 = vmatpush1.bf16.msra.mxu0 0
        %3619 = vmatprep.subr.bf16.mxu0 0
        %3620 = vmatpush1.bf16.msra.mxu0 0
        %3621 = vmatprep.subr.bf16.mxu0 0
        %3622 = vmatpush1.bf16.msra.mxu0 0
        %3623 = vmatprep.subr.bf16.mxu0 0
        %3624 = vmatpush1.bf16.msra.mxu0 0
        %3625 = vmatprep.subr.bf16.mxu0 0
        %3626 = vmatpush1.bf16.msra.mxu0 0
        %3627 = vmatprep.subr.bf16.mxu0 0
        %3628 = vmatpush1.bf16.msra.mxu0 0
        %3629 = vmatprep.subr.bf16.mxu0 0
        %3630 = vmatpush1.bf16.msra.mxu0 0
        %3631 = vmatprep.subr.bf16.mxu0 0
        %3632 = vmatpush1.bf16.msra.mxu0 0
        %3633 = vmatprep.subr.bf16.mxu0 0
        %3634 = vmatpush1.bf16.msra.mxu0 0
        %3635 = vmatprep.subr.bf16.mxu0 0
        %3636 = vmatpush1.bf16.msra.mxu0 0
        %3637 = vmatprep.subr.bf16.mxu0 0
        %3638 = vmatpush1.bf16.msra.mxu0 0
        %3639 = vmatprep.subr.bf16.mxu0 0
        %3640 = vmatpush1.bf16.msra.mxu0 0
        %3641 = vmatprep.subr.bf16.mxu0 0
        %3642 = vmatpush1.bf16.msra.mxu0 0
        %3643 = vmatprep.mubr.bf16.mxu0 0
        %3644 = vmatmul.mubr.bf16.gmra.mrb[0].mxu0 %v3606
        %v3645 = vpop.f32.mrb[0].mxu0
        %v3646 = vadd.f32 0.0, %v3645
        %v3647 = vpop.f32.mrb[0].mxu0
        %v3648 = vpop.f32.mrb[0].mxu0
        %v3649 = vpop.f32.mrb[0].mxu0
        %3650 = vdwg.mxu0
        %v3651 = vadd.f32 %v3508, %v3554
        %v3652 = vadd.f32 %v3651, %v3600
        %v3653 = vadd.f32 %v3652, %v3646
        %v3654 = vadd.f32 %v992, %v3653
        %v3655 = vsel %vm1025, %v3654, 0.0
        %3656 = vadd.xlane.f32.xlu0 %v3655
        %v3657 = vpop.xlane.xlu0 %3656
        %v3658 = vrcp.pop 32.0
        %v3659 = vmul.f32 %v3657, %v3658
        %v3660 = vsub.f32 %v3654, %v3659
        %v3661 = vmul.f32 %v3660, %v3660
        %v3662 = vsel %vm1025, %v3661, 0.0
        %3663 = vadd.xlane.f32.xlu0 %v3662
        %v3664 = vpop.xlane.xlu0 %3663
        %v3665 = vmul.f32 %v3664, %v3658
        %v3666 = vadd.f32 %v3665, 1e-05
        %v3667 = vrsqrt.pop %v3666
        %v3668 = vmul.f32 %v3660, %v3667
        %v3669 = vld [vmem:[%s958] sm:$0x1]
        %v3671 = vlaneseq
        %v3672 = vshrl.u32 %v3671, 7
        %v3673 = vsub.s32 0, %v3672
        %v3674 = vrot.slane %v3669, %v3673
        %v3676 = vmul.f32 %v3668, %v3674
        %v3677 = vld [vmem:[%s961] sm:$0x1]
        %v3679 = vlaneseq
        %v3680 = vshrl.u32 %v3679, 7
        %v3681 = vsub.s32 0, %v3680
        %v3682 = vrot.slane %v3677, %v3681
        %v3684 = vadd.f32 %v3676, %v3682
        %v3685 = vpack.c.bf16 %v3684, %v3684
        %v3686 = vld [vmem:[%s966] sm:$0xf]
        %v3687 = vld [vmem:[%s966 + $0x4] sm:$0xf]
        %v3688 = vld [vmem:[%s966 + $0x8] sm:$0xf]
        %v3689 = vld [vmem:[%s966 + $0xc] sm:$0xf]
        %v3690 = vld [vmem:[%s969] sm:$0x1]
        %v3692 = vlaneseq
        %v3693 = vshrl.u32 %v3692, 7
        %v3694 = vsub.s32 0, %v3693
        %v3695 = vrot.slane %v3690, %v3694
        %v3701 = vunpack.c.l.b16 %v3686
        %v3702 = vunpack.c.l.b16 %v3687
        %v3703 = vunpack.c.l.b16 %v3688
        %v3704 = vunpack.c.l.b16 %v3689
        %v3705 = vpack.c.b16 %v3702, %v3701
        %v3706 = vpack.c.b16 %v3704, %v3703
        %v3710 = vsel %vm1025, %v3685, 0
        %3712 = vmatprep.subr.bf16.mxu0 0
        %3713 = vmatpush1.bf16.msra.mxu0 %v3705
        %3714 = vmatprep.subr.bf16.mxu0 0
        %3715 = vmatpush1.bf16.msra.mxu0 %v3706
        %3716 = vmatprep.subr.bf16.mxu0 0
        %3717 = vmatpush1.bf16.msra.mxu0 0
        %3718 = vmatprep.subr.bf16.mxu0 0
        %3719 = vmatpush1.bf16.msra.mxu0 0
        %3720 = vmatprep.subr.bf16.mxu0 0
        %3721 = vmatpush1.bf16.msra.mxu0 0
        %3722 = vmatprep.subr.bf16.mxu0 0
        %3723 = vmatpush1.bf16.msra.mxu0 0
        %3724 = vmatprep.subr.bf16.mxu0 0
        %3725 = vmatpush1.bf16.msra.mxu0 0
        %3726 = vmatprep.subr.bf16.mxu0 0
        %3727 = vmatpush1.bf16.msra.mxu0 0
        %3728 = vmatprep.subr.bf16.mxu0 0
        %3729 = vmatpush1.bf16.msra.mxu0 0
        %3730 = vmatprep.subr.bf16.mxu0 0
        %3731 = vmatpush1.bf16.msra.mxu0 0
        %3732 = vmatprep.subr.bf16.mxu0 0
        %3733 = vmatpush1.bf16.msra.mxu0 0
        %3734 = vmatprep.subr.bf16.mxu0 0
        %3735 = vmatpush1.bf16.msra.mxu0 0
        %3736 = vmatprep.subr.bf16.mxu0 0
        %3737 = vmatpush1.bf16.msra.mxu0 0
        %3738 = vmatprep.subr.bf16.mxu0 0
        %3739 = vmatpush1.bf16.msra.mxu0 0
        %3740 = vmatprep.subr.bf16.mxu0 0
        %3741 = vmatpush1.bf16.msra.mxu0 0
        %3742 = vmatprep.subr.bf16.mxu0 0
        %3743 = vmatpush1.bf16.msra.mxu0 0
        %3744 = vmatprep.mubr.bf16.mxu0 0
        %3745 = vmatmul.mubr.bf16.gmra.mrb[0].mxu0 %v3710
        %v3746 = vpop.f32.mrb[0].mxu0
        %v3747 = vadd.f32 %v3695, %v3746
        %v3748 = vpop.f32.mrb[0].mxu0
        %v3749 = vpop.f32.mrb[0].mxu0
        %v3750 = vpop.f32.mrb[0].mxu0
        %3751 = vdwg.mxu0
        %v3752 = vmax.f32 %v3747, 0.0
        %v3753 = vpack.c.bf16 %v3752, %v3752
        %v3754 = vld [vmem:[%s974] sm:$0xf]
        %v3755 = vld [vmem:[%s974 + $0x4] sm:$0xf]
        %v3756 = vld [vmem:[%s974 + $0x8] sm:$0xf]
        %v3757 = vld [vmem:[%s974 + $0xc] sm:$0xf]
        %v3758 = vld [vmem:[%s974 + $0x10] sm:$0xf]
        %v3759 = vld [vmem:[%s974 + $0x14] sm:$0xf]
        %v3760 = vld [vmem:[%s974 + $0x18] sm:$0xf]
        %v3761 = vld [vmem:[%s974 + $0x1c] sm:$0xf]
        %v3762 = vld [vmem:[%s977] sm:$0x1]
        %v3764 = vlaneseq
        %v3765 = vshrl.u32 %v3764, 7
        %v3766 = vsub.s32 0, %v3765
        %v3767 = vrot.slane %v3762, %v3766
        %v3777 = vunpack.c.l.b16 %v3754
        %v3778 = vunpack.c.l.b16 %v3755
        %v3779 = vunpack.c.l.b16 %v3756
        %v3780 = vunpack.c.l.b16 %v3757
        %v3781 = vunpack.c.l.b16 %v3758
        %v3782 = vunpack.c.l.b16 %v3759
        %v3783 = vunpack.c.l.b16 %v3760
        %v3784 = vunpack.c.l.b16 %v3761
        %v3785 = vpack.c.b16 %v3778, %v3777
        %v3786 = vpack.c.b16 %v3780, %v3779
        %v3787 = vpack.c.b16 %v3782, %v3781
        %v3788 = vpack.c.b16 %v3784, %v3783
        %vm3793 = vcmask 523264
        %v3795 = vsel %vm3793, %v3753, 0
        %3797 = vmatprep.subr.bf16.mxu0 0
        %3798 = vmatpush1.bf16.msra.mxu0 %v3785
        %3799 = vmatprep.subr.bf16.mxu0 0
        %3800 = vmatpush1.bf16.msra.mxu0 %v3786
        %3801 = vmatprep.subr.bf16.mxu0 0
        %3802 = vmatpush1.bf16.msra.mxu0 %v3787
        %3803 = vmatprep.subr.bf16.mxu0 0
        %3804 = vmatpush1.bf16.msra.mxu0 %v3788
        %3805 = vmatprep.subr.bf16.mxu0 0
        %3806 = vmatpush1.bf16.msra.mxu0 0
        %3807 = vmatprep.subr.bf16.mxu0 0
        %3808 = vmatpush1.bf16.msra.mxu0 0
        %3809 = vmatprep.subr.bf16.mxu0 0
        %3810 = vmatpush1.bf16.msra.mxu0 0
        %3811 = vmatprep.subr.bf16.mxu0 0
        %3812 = vmatpush1.bf16.msra.mxu0 0
        %3813 = vmatprep.subr.bf16.mxu0 0
        %3814 = vmatpush1.bf16.msra.mxu0 0
        %3815 = vmatprep.subr.bf16.mxu0 0
        %3816 = vmatpush1.bf16.msra.mxu0 0
        %3817 = vmatprep.subr.bf16.mxu0 0
        %3818 = vmatpush1.bf16.msra.mxu0 0
        %3819 = vmatprep.subr.bf16.mxu0 0
        %3820 = vmatpush1.bf16.msra.mxu0 0
        %3821 = vmatprep.subr.bf16.mxu0 0
        %3822 = vmatpush1.bf16.msra.mxu0 0
        %3823 = vmatprep.subr.bf16.mxu0 0
        %3824 = vmatpush1.bf16.msra.mxu0 0
        %3825 = vmatprep.subr.bf16.mxu0 0
        %3826 = vmatpush1.bf16.msra.mxu0 0
        %3827 = vmatprep.subr.bf16.mxu0 0
        %3828 = vmatpush1.bf16.msra.mxu0 0
        %3829 = vmatprep.mubr.bf16.mxu0 0
        %3830 = vmatmul.mubr.bf16.gmra.mrb[0].mxu0 %v3795
        %v3831 = vpop.f32.mrb[0].mxu0
        %v3832 = vadd.f32 %v3767, %v3831
        %v3833 = vpop.f32.mrb[0].mxu0
        %v3834 = vpop.f32.mrb[0].mxu0
        %v3835 = vpop.f32.mrb[0].mxu0
        %3836 = vdwg.mxu0
        %v3837 = vadd.f32 %v3684, %v3832
        %v3838 = vsel %vm1025, %v3837, 0.0
        %3839 = vadd.xlane.f32.xlu0 %v3838
        %v3840 = vpop.xlane.xlu0 %3839
        %v3841 = vmul.f32 %v3840, %v3658
        %v3842 = vsub.f32 %v3837, %v3841
        %v3843 = vmul.f32 %v3842, %v3842
        %v3844 = vsel %vm1025, %v3843, 0.0
        %3845 = vadd.xlane.f32.xlu0 %v3844
        %v3846 = vpop.xlane.xlu0 %3845
        %v3847 = vmul.f32 %v3846, %v3658
        %v3848 = vadd.f32 %v3847, 1e-05
        %v3849 = vrsqrt.pop %v3848
        %v3850 = vmul.f32 %v3842, %v3849
        %v3851 = vld [vmem:[%s980] sm:$0x1]
        %v3853 = vlaneseq
        %v3854 = vshrl.u32 %v3853, 7
        %v3855 = vsub.s32 0, %v3854
        %v3856 = vrot.slane %v3851, %v3855
        %v3858 = vmul.f32 %v3850, %v3856
        %v3859 = vld [vmem:[%s983] sm:$0x1]
        %v3861 = vlaneseq
        %v3862 = vshrl.u32 %v3861, 7
        %v3863 = vsub.s32 0, %v3862
        %v3864 = vrot.slane %v3859, %v3863
        %v3866 = vadd.f32 %v3858, %v3864
        %3867 = vst.msk [vmem:[#allocation2] sm:$0xff] %vm1025, %v3866
        %p3868 = scmp.eq.s32.totalorder %s42, 1
        // Predicated region
        $region117: #{tpu_custom_call.1} parent=111 // pred_check
          %p3869 = pneg %p3868
        $region118: #{tpu_custom_call.1} parent=111 // pred_check_branch
          %3871 = sbr.rel (%p3869) target = $region120
        $region119: #{tpu_custom_call.1} parent=111 // pred_region
          %v3872 = vpack.c.bf16 %v3866, %v3866
          %v3873 = vld [vmem:[%s21] sm:$0xf]
          %v3874 = vld [vmem:[%s21 + $0x4] sm:$0xf]
          %v3875 = vld [vmem:[%s21 + $0x8] sm:$0xf]
          %v3876 = vld [vmem:[%s21 + $0xc] sm:$0xf]
          %v3877 = vld [vmem:[%s22] sm:$0x1]
          %v3879 = vlaneseq
          %v3880 = vshrl.u32 %v3879, 7
          %v3881 = vsub.s32 0, %v3880
          %v3882 = vrot.slane %v3877, %v3881
          %v3888 = vunpack.c.l.b16 %v3873
          %v3889 = vunpack.c.l.b16 %v3874
          %v3890 = vunpack.c.l.b16 %v3875
          %v3891 = vunpack.c.l.b16 %v3876
          %v3892 = vpack.c.b16 %v3889, %v3888
          %v3893 = vpack.c.b16 %v3891, %v3890
          %v3897 = vsel %vm1025, %v3872, 0
          %3899 = vmatprep.subr.bf16.mxu0 0
          %3900 = vmatpush1.bf16.msra.mxu0 %v3892
          %3901 = vmatprep.subr.bf16.mxu0 0
          %3902 = vmatpush1.bf16.msra.mxu0 %v3893
          %3903 = vmatprep.subr.bf16.mxu0 0
          %3904 = vmatpush1.bf16.msra.mxu0 0
          %3905 = vmatprep.subr.bf16.mxu0 0
          %3906 = vmatpush1.bf16.msra.mxu0 0
          %3907 = vmatprep.subr.bf16.mxu0 0
          %3908 = vmatpush1.bf16.msra.mxu0 0
          %3909 = vmatprep.subr.bf16.mxu0 0
          %3910 = vmatpush1.bf16.msra.mxu0 0
          %3911 = vmatprep.subr.bf16.mxu0 0
          %3912 = vmatpush1.bf16.msra.mxu0 0
          %3913 = vmatprep.subr.bf16.mxu0 0
          %3914 = vmatpush1.bf16.msra.mxu0 0
          %3915 = vmatprep.subr.bf16.mxu0 0
          %3916 = vmatpush1.bf16.msra.mxu0 0
          %3917 = vmatprep.subr.bf16.mxu0 0
          %3918 = vmatpush1.bf16.msra.mxu0 0
          %3919 = vmatprep.subr.bf16.mxu0 0
          %3920 = vmatpush1.bf16.msra.mxu0 0
          %3921 = vmatprep.subr.bf16.mxu0 0
          %3922 = vmatpush1.bf16.msra.mxu0 0
          %3923 = vmatprep.subr.bf16.mxu0 0
          %3924 = vmatpush1.bf16.msra.mxu0 0
          %3925 = vmatprep.subr.bf16.mxu0 0
          %3926 = vmatpush1.bf16.msra.mxu0 0
          %3927 = vmatprep.subr.bf16.mxu0 0
          %3928 = vmatpush1.bf16.msra.mxu0 0
          %3929 = vmatprep.subr.bf16.mxu0 0
          %3930 = vmatpush1.bf16.msra.mxu0 0
          %3931 = vmatprep.mubr.bf16.mxu0 0
          %3932 = vmatmul.mubr.bf16.gmra.mrb[0].mxu0 %v3897
          %v3933 = vpop.f32.mrb[0].mxu0
          %v3934 = vadd.f32 %v3882, %v3933
          %v3935 = vpop.f32.mrb[0].mxu0
          %v3936 = vpop.f32.mrb[0].mxu0
          %v3937 = vpop.f32.mrb[0].mxu0
          %3938 = vdwg.mxu0
          %vm3939 = vcmask 80896
          %3940 = vst.msk [vmem:[%s917] sm:$0xff] %vm3939, %v3934
        $region120: #{tpu_custom_call.1} parent=111 // pred_fallthru
          _
        %s3941 = sand.u32 %s625, 1
        %s3942 = scalar_lea.sflag [#allocation4], %s3941
        %s3943 = sand.u32 %s625, 1
        %s3944 = smul.addr %s3943, 8
        %s3945 = scalar_lea.vmem [#allocation3], %s3944
        // Predicated region
        $region121: #{tpu_custom_call.1} parent=111 // pred_check
          %p3946 = pneg %p635
        $region122: #{tpu_custom_call.1} parent=111 // pred_check_branch
          %3948 = sbr.rel (%p3946) target = $region124
        $region123: #{tpu_custom_call.1} parent=111 // pred_region
          %s3950 = ssub.s32 128, 128
          %3951 = vsyncadd %s3942, %s3950
          %s3952 = smul.addr %s41, 128
          %s3953 = scalar_lea.hbm %s23, %s3952
          %s3955 = sshll.u32 %s3945, 4
          %s3956 = int_to_ptr.vmem [resolvable:$true] %s3955
          %3958 = dma.vmem_to_hbm [thread:$0]  %s3956, 128, %s3953, %s3942
        $region124: #{tpu_custom_call.1} parent=111 // pred_fallthru
          _
      $region112: #{tpu_custom_call.1} parent=5 // pred_fallthru
        _
      %p3959 = scmp.le.s32.totalorder 2, %s32
      // Predicated region
      $region125: #{tpu_custom_call.1} parent=5 // pred_check
        %p3960 = pneg %p3959
      $region126: #{tpu_custom_call.1} parent=5 // pred_check_branch
        %3962 = sbr.rel (%p3960) target = $region128
      $region127: #{tpu_custom_call.1} parent=5 // pred_region
        %s3963 = ssub.s32 %s32, 2
        // Predicated region
        $region129: #{tpu_custom_call.1} parent=127 // pred_check
          %p3964 = pneg %p641
        $region130: #{tpu_custom_call.1} parent=127 // pred_check_branch
          %3966 = sbr.rel (%p3964) target = $region132
        $region131: #{tpu_custom_call.1} parent=127 // pred_region
          %s3967 = sand.u32 %s626, 1
          %s3968 = scalar_lea.sflag [#allocation4], %s3967
          %s3969 = sand.u32 %s626, 1
          %s3970 = smul.addr %s3969, 8
          %s3971 = scalar_lea.vmem [#allocation3], %s3970
          %3972 = dma.done %s3968, 128
        $region132: #{tpu_custom_call.1} parent=127 // pred_fallthru
          _
      $region128: #{tpu_custom_call.1} parent=5 // pred_fallthru
        _
    $region6: #{tpu_custom_call.1} parent=1 // loop_footer
      %s36 = sadd.s32 1, %s32
    $region7: #{tpu_custom_call.1} parent=1 // loop_footer_branch
      %31 = sbr.rel target = $region3
    $region8: #{tpu_custom_call.1} parent=1 // loop_exit
      _
    %3973 = vsyncpa [#allocation4], 1
    %s3974 = scalar_lea.sflag [#allocation4], 1
    %3975 = vsyncpa %s3974, 1

</llo_original>
